<compile_context>
chip_gen: v7x
topology: tpu7x:2x2x1
jax: 0.10.0
libtpu: 0.0.40
codegen_flags: <defaults>
</compile_context>

<pallas_src>
import functools
import math

import jax
import jax.numpy as jnp
from jax.experimental import pallas as pl
from jax.experimental.pallas import tpu as pltpu

LN_EPS = 1e-5                      # nn.LayerNorm default
_INV_SQRT2 = 0.7071067811865476


def _layer_norm(y, gamma, beta):
    # Fused one-pass stats: E[x] and E[x^2]  ->  var = E[x^2] - E[x]^2.
    m = jnp.mean(y, axis=-1, keepdims=True)
    m2 = jnp.mean(y * y, axis=-1, keepdims=True)
    var = m2 - m * m
    return (y - m) * jax.lax.rsqrt(var + LN_EPS) * gamma + beta


def _gelu_exact(x):
    # PyTorch default GELU (erf-based, exact); 1/sqrt(2) hoisted to a constant.
    return 0.5 * x * (1.0 + jax.lax.erf(x * _INV_SQRT2))


def transformer_block_kernel(
    x_ref,
    wq_ref, bq_ref, wk_ref, bk_ref, wv_ref, bv_ref,
    wo_ref, bo_ref,
    w1_ref, b1_ref, w2_ref, b2_ref,
    gamma_ref, beta_ref,
    out_ref, attnw_ref,
    *, num_heads: int,
):
    # One batch element per grid step.
    x = x_ref[0]                                    # (S, E) f32
    S, E = x.shape
    hd = E // num_heads
    scale = 1.0 / math.sqrt(hd)

    gamma = gamma_ref[...]                          # (1, E)
    beta = beta_ref[...]                            # (1, E)

    xb = x.astype(jnp.bfloat16)

    # --- q/k/v projections (bf16 MXU operands, f32 accumulation) -------------
    q = jnp.dot(xb, wq_ref[...], preferred_element_type=jnp.float32) + bq_ref[...]
    k = jnp.dot(xb, wk_ref[...], preferred_element_type=jnp.float32) + bk_ref[...]
    v = jnp.dot(xb, wv_ref[...], preferred_element_type=jnp.float32) + bv_ref[...]

    # Fold 1/sqrt(hd) into q once (S*E mults instead of NH*S*S).
    q = q * scale

    # Head-batched layout (NH, S, hd): one batched matmul per attention stage.
    def split_heads(t):
        return jnp.transpose(t.reshape(S, num_heads, hd), (1, 0, 2))

    qh = split_heads(q.astype(jnp.bfloat16))
    kh = split_heads(k.astype(jnp.bfloat16))
    vh = split_heads(v.astype(jnp.bfloat16))

    energy = jnp.einsum("hqd,hkd->hqk", qh, kh,
                        preferred_element_type=jnp.float32)      # (NH, S, S)
    energy = energy - jnp.max(energy, axis=-1, keepdims=True)
    p = jnp.exp(energy)
    p = p * pl.reciprocal(jnp.sum(p, axis=-1, keepdims=True), approx=True)

    # Single full-block store of the attention weights.
    # TODO(synk): for S not a multiple of 128 this store is lane-sparse; for
    # production shapes pad S or emit an (S, NH*S) lane-dense slab instead.
    attnw_ref[0] = p

    attn = jnp.einsum("hqk,hkd->hqd", p.astype(jnp.bfloat16), vh,
                      preferred_element_type=jnp.float32)        # (NH, S, hd)
    attn = jnp.transpose(attn, (1, 0, 2)).reshape(S, E)          # (S, E)

    attn_out = (
        jnp.dot(attn.astype(jnp.bfloat16), wo_ref[...],
                preferred_element_type=jnp.float32) + bo_ref[...]
    )
    # Dropout (eval mode) -> identity.

    # --- residual + layer norm ------------------------------------------------
    normed = _layer_norm(x + attn_out, gamma, beta)              # (S, E)

    # --- MLP head ---------------------------------------------------------------
    # TODO(synk): for production-scale E/H (e.g. 768/3072) tile w1/w2 over the
    # hidden dim (extra grid axis or pltpu.emit_pipeline) so the FFN weights do
    # not have to be fully resident in v7x's 64 MiB VMEM.
    h1 = (
        jnp.dot(normed.astype(jnp.bfloat16), w1_ref[...],
                preferred_element_type=jnp.float32) + b1_ref[...]
    )
    h1 = _gelu_exact(h1)
    mlp = (
        jnp.dot(h1.astype(jnp.bfloat16), w2_ref[...],
                preferred_element_type=jnp.float32) + b2_ref[...]
    )

    # --- second residual + (shared) layer norm ----------------------------------
    out_ref[0] = _layer_norm(mlp + normed, gamma, beta)


def _vmem_limit_bytes(S, E, H, num_heads):
    f32, bf16 = 4, 2
    weights = (4 * E * E + 2 * E * H) * bf16                 # single-buffered bf16
    biases = (6 * E + H + 2 * E) * f32
    io = (S * E) * f32 + (S * E) * f32 + (num_heads * S * S) * f32
    interm = (4 * S * E + 2 * num_heads * S * S + 2 * S * H) * f32
    total = weights + biases + 2 * io + interm               # x2 for double-buffered I/O
    # Keep at least the comfortable default, never above v7x physical VMEM.
    return int(min(max(2 * total, 32 << 20), 64 << 20))


def _in_specs(S, E, H, single_buffer_weights):
    use_single = single_buffer_weights and hasattr(pl, "Buffered")

    def const_spec(shape):
        index_map = lambda b: (0,) * len(shape)
        if use_single:
            # Constant index_map -> double buffering buys nothing; halve VMEM.
            return pl.BlockSpec(shape, index_map, pipeline_mode=pl.Buffered(1))
        return pl.BlockSpec(shape, index_map)

    return [
        pl.BlockSpec((1, S, E), lambda b: (b, 0, 0)),        # x
        const_spec((E, E)), const_spec((1, E)),               # Wq, bq
        const_spec((E, E)), const_spec((1, E)),               # Wk, bk
        const_spec((E, E)), const_spec((1, E)),               # Wv, bv
        const_spec((E, E)), const_spec((1, E)),               # Wo, bo
        const_spec((E, H)), const_spec((1, H)),               # W1, b1
        const_spec((H, E)), const_spec((1, E)),               # W2, b2
        const_spec((1, E)), const_spec((1, E)),               # gamma, beta
    ]


def transformer_block(x, params, *, num_heads, single_buffer_weights=True):
    B, S, E = x.shape
    H = params["w1"].shape[1]
    bf16 = jnp.bfloat16

    args = (
        x,
        params["wq"].astype(bf16), params["bq"],
        params["wk"].astype(bf16), params["bk"],
        params["wv"].astype(bf16), params["bv"],
        params["wo"].astype(bf16), params["bo"],
        params["w1"].astype(bf16), params["b1"],
        params["w2"].astype(bf16), params["b2"],
        params["gamma"], params["beta"],
    )

    def build(single_buf):
        kernel = functools.partial(transformer_block_kernel, num_heads=num_heads)
        return pl.pallas_call(
            kernel,
            out_shape=(
                jax.ShapeDtypeStruct((B, S, E), jnp.float32),
                jax.ShapeDtypeStruct((B, num_heads, S, S), jnp.float32),
            ),
            grid_spec=pltpu.PrefetchScalarGridSpec(
                num_scalar_prefetch=0,
                grid=(B,),
                in_specs=_in_specs(S, E, H, single_buf),
                out_specs=[
                    pl.BlockSpec((1, S, E), lambda b: (b, 0, 0)),
                    pl.BlockSpec((1, num_heads, S, S), lambda b: (b, 0, 0, 0)),
                ],
            ),
            compiler_params=pltpu.CompilerParams(
                dimension_semantics=("parallel",),   # B>=2 -> both v7x TCs busy
                vmem_limit_bytes=_vmem_limit_bytes(S, E, H, num_heads),
            ),
        )

    try:
        return build(single_buffer_weights)(*args)
    except Exception:
        # Fallback if pl.Buffered(1) single-buffering is rejected by the
        # installed Pallas/Mosaic version: default double-buffered weights.
        return build(False)(*args)


# ---------------------------------------------------------------------------
# pure-JAX f32 reference (mirrors the PyTorch module exactly) for validation
# ---------------------------------------------------------------------------
def reference_block(x, params, *, num_heads):
    B, S, E = x.shape
    hd = E // num_heads

    def lin(a, w, b):
        return a @ w + b

    q = lin(x, params["wq"], params["bq"])
    k = lin(x, params["wk"], params["bk"])
    v = lin(x, params["wv"], params["bv"])
    q = q.reshape(B, S, num_heads, hd).transpose(0, 2, 1, 3)
    k = k.reshape(B, S, num_heads, hd).transpose(0, 2, 1, 3)
    v = v.reshape(B, S, num_heads, hd).transpose(0, 2, 1, 3)
    energy = jnp.einsum("bhqd,bhkd->bhqk", q, k) / math.sqrt(hd)
    attn_w = jax.nn.softmax(energy, axis=-1)
    attn = jnp.einsum("bhqk,bhkd->bhqd", attn_w, v)
    attn = attn.transpose(0, 2, 1, 3).reshape(B, S, E)
    attn_out = lin(attn, params["wo"], params["bo"])

    def ln(y):
        mean = jnp.mean(y, axis=-1, keepdims=True)
        var = jnp.mean((y - mean) ** 2, axis=-1, keepdims=True)
        return (y - mean) * jax.lax.rsqrt(var + LN_EPS) * params["gamma"] + params["beta"]

    normed = ln(x + attn_out)
    h1 = jax.nn.gelu(lin(normed, params["w1"], params["b1"]), approximate=False)
    mlp = lin(h1, params["w2"], params["b2"])
    return ln(mlp + normed), attn_w


def make_params(key, embed_dim, hidden_dim):
    keys = jax.random.split(key, 12)
    s = 0.05
    return {
        "wq": jax.random.normal(keys[0], (embed_dim, embed_dim), jnp.float32) * s,
        "bq": jax.random.normal(keys[1], (1, embed_dim), jnp.float32) * s,
        "wk": jax.random.normal(keys[2], (embed_dim, embed_dim), jnp.float32) * s,
        "bk": jax.random.normal(keys[3], (1, embed_dim), jnp.float32) * s,
        "wv": jax.random.normal(keys[4], (embed_dim, embed_dim), jnp.float32) * s,
        "bv": jax.random.normal(keys[5], (1, embed_dim), jnp.float32) * s,
        "wo": jax.random.normal(keys[6], (embed_dim, embed_dim), jnp.float32) * s,
        "bo": jax.random.normal(keys[7], (1, embed_dim), jnp.float32) * s,
        "w1": jax.random.normal(keys[8], (embed_dim, hidden_dim), jnp.float32) * s,
        "b1": jax.random.normal(keys[9], (1, hidden_dim), jnp.float32) * s,
        "w2": jax.random.normal(keys[10], (hidden_dim, embed_dim), jnp.float32) * s,
        "b2": jax.random.normal(keys[11], (1, embed_dim), jnp.float32) * s,
        "gamma": jnp.ones((1, embed_dim), jnp.float32),
        "beta": jnp.zeros((1, embed_dim), jnp.float32),
    }


if __name__ == "__main__":
    B, S, E, H, NH = 2, 8, 32, 64, 4

    key = jax.random.PRNGKey(0)
    kx, kp = jax.random.split(key)
    x = jax.random.normal(kx, (B, S, E), jnp.float32)
    params = make_params(kp, E, H)

    out, attn_w = transformer_block(x, params, num_heads=NH)
    out = jax.block_until_ready(out)
    attn_w = jax.block_until_ready(attn_w)

    ref_out, ref_attn = reference_block(x, params, num_heads=NH)
    assert out.shape == (B, S, E) and attn_w.shape == (B, NH, S, S)
    # bf16 MXU operands + approx EUP reciprocal -> looser tolerances than pure f32.
    assert jnp.allclose(out, ref_out, atol=3e-2, rtol=3e-2), \
        float(jnp.max(jnp.abs(out - ref_out)))
    assert jnp.allclose(attn_w, ref_attn, atol=1e-2, rtol=1e-2), \
        float(jnp.max(jnp.abs(attn_w - ref_attn)))

    print("KERNEL_OK")
</pallas_src>

<mosaic_0001>
module attributes {stable_mosaic.version = 11 : i64} {
  func.func @transformer_block_kernel(%arg0: i32, %arg1: memref<1x8x32xf32, #tpu.memory_space<vmem>>, %arg2: memref<32x32xbf16, #tpu.memory_space<vmem>>, %arg3: memref<1x32xf32, #tpu.memory_space<vmem>>, %arg4: memref<32x32xbf16, #tpu.memory_space<vmem>>, %arg5: memref<1x32xf32, #tpu.memory_space<vmem>>, %arg6: memref<32x32xbf16, #tpu.memory_space<vmem>>, %arg7: memref<1x32xf32, #tpu.memory_space<vmem>>, %arg8: memref<32x32xbf16, #tpu.memory_space<vmem>>, %arg9: memref<1x32xf32, #tpu.memory_space<vmem>>, %arg10: memref<32x64xbf16, #tpu.memory_space<vmem>>, %arg11: memref<1x64xf32, #tpu.memory_space<vmem>>, %arg12: memref<64x32xbf16, #tpu.memory_space<vmem>>, %arg13: memref<1x32xf32, #tpu.memory_space<vmem>>, %arg14: memref<1x32xf32, #tpu.memory_space<vmem>>, %arg15: memref<1x32xf32, #tpu.memory_space<vmem>>, %arg16: memref<1x8x32xf32, #tpu.memory_space<vmem>>, %arg17: memref<1x4x8x8xf32, #tpu.memory_space<vmem>>) attributes {dimension_semantics = [#tpu.dimension_semantics<parallel>], iteration_bounds = array<i64: 2>, scalar_prefetch = 0 : i64, scratch_operands = 0 : i64, tpu.core_type = #tpu.core_type<tc>, window_params = [{transform_indices = @transform_0, window_bounds = array<i64: 1, 8, 32>}, {pipeline_mode = #tpu.pipeline_mode<synchronous>, transform_indices = @transform_1, window_bounds = array<i64: 32, 32>}, {pipeline_mode = #tpu.pipeline_mode<synchronous>, transform_indices = @transform_2, window_bounds = array<i64: 1, 32>}, {pipeline_mode = #tpu.pipeline_mode<synchronous>, transform_indices = @transform_3, window_bounds = array<i64: 32, 32>}, {pipeline_mode = #tpu.pipeline_mode<synchronous>, transform_indices = @transform_4, window_bounds = array<i64: 1, 32>}, {pipeline_mode = #tpu.pipeline_mode<synchronous>, transform_indices = @transform_5, window_bounds = array<i64: 32, 32>}, {pipeline_mode = #tpu.pipeline_mode<synchronous>, transform_indices = @transform_6, window_bounds = array<i64: 1, 32>}, {pipeline_mode = #tpu.pipeline_mode<synchronous>, transform_indices = @transform_7, window_bounds = array<i64: 32, 32>}, {pipeline_mode = #tpu.pipeline_mode<synchronous>, transform_indices = @transform_8, window_bounds = array<i64: 1, 32>}, {pipeline_mode = #tpu.pipeline_mode<synchronous>, transform_indices = @transform_9, window_bounds = array<i64: 32, 64>}, {pipeline_mode = #tpu.pipeline_mode<synchronous>, transform_indices = @transform_10, window_bounds = array<i64: 1, 64>}, {pipeline_mode = #tpu.pipeline_mode<synchronous>, transform_indices = @transform_11, window_bounds = array<i64: 64, 32>}, {pipeline_mode = #tpu.pipeline_mode<synchronous>, transform_indices = @transform_12, window_bounds = array<i64: 1, 32>}, {pipeline_mode = #tpu.pipeline_mode<synchronous>, transform_indices = @transform_13, window_bounds = array<i64: 1, 32>}, {pipeline_mode = #tpu.pipeline_mode<synchronous>, transform_indices = @transform_14, window_bounds = array<i64: 1, 32>}, {transform_indices = @transform_15, window_bounds = array<i64: 1, 8, 32>}, {transform_indices = @transform_16, window_bounds = array<i64: 1, 4, 8, 8>}]} {
    %c0 = arith.constant 0 : index
    %c0_0 = arith.constant 0 : index
    %c0_1 = arith.constant 0 : index
    %0 = vector.load %arg1[%c0, %c0_0, %c0_1] : memref<1x8x32xf32, #tpu.memory_space<vmem>>, vector<1x8x32xf32>
    %1 = vector.shape_cast %0 : vector<1x8x32xf32> to vector<8x32xf32>
    %c0_2 = arith.constant 0 : index
    %c0_3 = arith.constant 0 : index
    %2 = vector.load %arg14[%c0_2, %c0_3] : memref<1x32xf32, #tpu.memory_space<vmem>>, vector<1x32xf32>
    %c0_4 = arith.constant 0 : index
    %c0_5 = arith.constant 0 : index
    %3 = vector.load %arg15[%c0_4, %c0_5] : memref<1x32xf32, #tpu.memory_space<vmem>>, vector<1x32xf32>
    %4 = arith.truncf %1 : vector<8x32xf32> to vector<8x32xbf16>
    %c0_6 = arith.constant 0 : index
    %c0_7 = arith.constant 0 : index
    %5 = vector.load %arg2[%c0_6, %c0_7] : memref<32x32xbf16, #tpu.memory_space<vmem>>, vector<32x32xbf16>
    %cst = arith.constant dense<0.000000e+00> : vector<8x32xf32>
    %6 = tpu.matmul %4, %5, %cst {dimension_numbers = #tpu.dot_dimension_numbers<[1], [0], [0], [1], [0, 0, 1, 1], [], []>} : vector<8x32xbf16>, vector<32x32xbf16>, vector<8x32xf32> -> vector<8x32xf32>
    %c0_8 = arith.constant 0 : index
    %c0_9 = arith.constant 0 : index
    %7 = vector.load %arg3[%c0_8, %c0_9] : memref<1x32xf32, #tpu.memory_space<vmem>>, vector<1x32xf32>
    %8 = vector.broadcast %7 : vector<1x32xf32> to vector<8x32xf32>
    %9 = arith.addf %6, %8 : vector<8x32xf32>
    %c0_10 = arith.constant 0 : index
    %c0_11 = arith.constant 0 : index
    %10 = vector.load %arg4[%c0_10, %c0_11] : memref<32x32xbf16, #tpu.memory_space<vmem>>, vector<32x32xbf16>
    %cst_12 = arith.constant dense<0.000000e+00> : vector<8x32xf32>
    %11 = tpu.matmul %4, %10, %cst_12 {dimension_numbers = #tpu.dot_dimension_numbers<[1], [0], [0], [1], [0, 0, 1, 1], [], []>} : vector<8x32xbf16>, vector<32x32xbf16>, vector<8x32xf32> -> vector<8x32xf32>
    %c0_13 = arith.constant 0 : index
    %c0_14 = arith.constant 0 : index
    %12 = vector.load %arg5[%c0_13, %c0_14] : memref<1x32xf32, #tpu.memory_space<vmem>>, vector<1x32xf32>
    %13 = vector.broadcast %12 : vector<1x32xf32> to vector<8x32xf32>
    %14 = arith.addf %11, %13 : vector<8x32xf32>
    %c0_15 = arith.constant 0 : index
    %c0_16 = arith.constant 0 : index
    %15 = vector.load %arg6[%c0_15, %c0_16] : memref<32x32xbf16, #tpu.memory_space<vmem>>, vector<32x32xbf16>
    %cst_17 = arith.constant dense<0.000000e+00> : vector<8x32xf32>
    %16 = tpu.matmul %4, %15, %cst_17 {dimension_numbers = #tpu.dot_dimension_numbers<[1], [0], [0], [1], [0, 0, 1, 1], [], []>} : vector<8x32xbf16>, vector<32x32xbf16>, vector<8x32xf32> -> vector<8x32xf32>
    %c0_18 = arith.constant 0 : index
    %c0_19 = arith.constant 0 : index
    %17 = vector.load %arg7[%c0_18, %c0_19] : memref<1x32xf32, #tpu.memory_space<vmem>>, vector<1x32xf32>
    %18 = vector.broadcast %17 : vector<1x32xf32> to vector<8x32xf32>
    %19 = arith.addf %16, %18 : vector<8x32xf32>
    %cst_20 = arith.constant 0.353553385 : f32
    %20 = vector.broadcast %cst_20 : f32 to vector<8x32xf32>
    %21 = arith.mulf %9, %20 : vector<8x32xf32>
    %22 = arith.truncf %21 : vector<8x32xf32> to vector<8x32xbf16>
    %23 = vector.shape_cast %22 : vector<8x32xbf16> to vector<8x4x8xbf16>
    %24 = tpu.transpose %23, [1, 0, 2] : vector<8x4x8xbf16> -> vector<4x8x8xbf16>
    %25 = arith.truncf %14 : vector<8x32xf32> to vector<8x32xbf16>
    %26 = vector.shape_cast %25 : vector<8x32xbf16> to vector<8x4x8xbf16>
    %27 = tpu.transpose %26, [1, 0, 2] : vector<8x4x8xbf16> -> vector<4x8x8xbf16>
    %28 = arith.truncf %19 : vector<8x32xf32> to vector<8x32xbf16>
    %29 = vector.shape_cast %28 : vector<8x32xbf16> to vector<8x4x8xbf16>
    %30 = tpu.transpose %29, [1, 0, 2] : vector<8x4x8xbf16> -> vector<4x8x8xbf16>
    "tpu.trace_start"() <{level = 10 : i32, message = "hqd,hkd->hqk"}> : () -> ()
    %cst_21 = arith.constant dense<0.000000e+00> : vector<4x8x8xf32>
    %31 = tpu.matmul %24, %27, %cst_21 {dimension_numbers = #tpu.dot_dimension_numbers<[2], [2], [1], [1], [0, 0, 0, 1, 1, 1], [0], [0]>} : vector<4x8x8xbf16>, vector<4x8x8xbf16>, vector<4x8x8xf32> -> vector<4x8x8xf32>
    "tpu.trace_stop"() : () -> ()
    %cst_22 = arith.constant dense<0xFF800000> : vector<4x8xf32>
    %32 = vector.multi_reduction <maximumf>, %31, %cst_22 [2] : vector<4x8x8xf32> to vector<4x8xf32>
    %33 = vector.shape_cast %32 : vector<4x8xf32> to vector<4x8x1xf32>
    %34 = vector.broadcast %33 : vector<4x8x1xf32> to vector<4x8x8xf32>
    %35 = arith.subf %31, %34 : vector<4x8x8xf32>
    %36 = math.exp %35 : vector<4x8x8xf32>
    %cst_23 = arith.constant dense<0.000000e+00> : vector<4x8xf32>
    %37 = vector.multi_reduction <add>, %36, %cst_23 [2] : vector<4x8x8xf32> to vector<4x8xf32>
    %38 = vector.shape_cast %37 : vector<4x8xf32> to vector<4x8x1xf32>
    %39 = tpu.reciprocal %38 {approx = true} : vector<4x8x1xf32> -> vector<4x8x1xf32>
    %40 = vector.broadcast %39 : vector<4x8x1xf32> to vector<4x8x8xf32>
    %41 = arith.mulf %36, %40 : vector<4x8x8xf32>
    %c0_24 = arith.constant 0 : index
    %c0_25 = arith.constant 0 : index
    %c0_26 = arith.constant 0 : index
    %c0_27 = arith.constant 0 : index
    %42 = vector.load %arg17[%c0_24, %c0_25, %c0_26, %c0_27] : memref<1x4x8x8xf32, #tpu.memory_space<vmem>>, vector<1x4x8x8xf32>
    %43 = vector.shape_cast %42 : vector<1x4x8x8xf32> to vector<4x8x8xf32>
    %44 = vector.shape_cast %41 : vector<4x8x8xf32> to vector<1x4x8x8xf32>
    tpu.vector_store %arg17[%c0_24, %c0_25, %c0_26, %c0_27], %44 {strides = array<i32>} : memref<1x4x8x8xf32, #tpu.memory_space<vmem>>, vector<1x4x8x8xf32>,
    %45 = arith.truncf %41 : vector<4x8x8xf32> to vector<4x8x8xbf16>
    "tpu.trace_start"() <{level = 10 : i32, message = "hqk,hkd->hqd"}> : () -> ()
    %cst_28 = arith.constant dense<0.000000e+00> : vector<4x8x8xf32>
    %46 = tpu.matmul %45, %30, %cst_28 {dimension_numbers = #tpu.dot_dimension_numbers<[2], [1], [1], [2], [0, 0, 0, 1, 1, 2], [0], [0]>} : vector<4x8x8xbf16>, vector<4x8x8xbf16>, vector<4x8x8xf32> -> vector<4x8x8xf32>
    "tpu.trace_stop"() : () -> ()
    %47 = tpu.transpose %46, [1, 0, 2] : vector<4x8x8xf32> -> vector<8x4x8xf32>
    %48 = vector.shape_cast %47 : vector<8x4x8xf32> to vector<8x32xf32>
    %49 = arith.truncf %48 : vector<8x32xf32> to vector<8x32xbf16>
    %c0_29 = arith.constant 0 : index
    %c0_30 = arith.constant 0 : index
    %50 = vector.load %arg8[%c0_29, %c0_30] : memref<32x32xbf16, #tpu.memory_space<vmem>>, vector<32x32xbf16>
    %cst_31 = arith.constant dense<0.000000e+00> : vector<8x32xf32>
    %51 = tpu.matmul %49, %50, %cst_31 {dimension_numbers = #tpu.dot_dimension_numbers<[1], [0], [0], [1], [0, 0, 1, 1], [], []>} : vector<8x32xbf16>, vector<32x32xbf16>, vector<8x32xf32> -> vector<8x32xf32>
    %c0_32 = arith.constant 0 : index
    %c0_33 = arith.constant 0 : index
    %52 = vector.load %arg9[%c0_32, %c0_33] : memref<1x32xf32, #tpu.memory_space<vmem>>, vector<1x32xf32>
    %53 = vector.broadcast %52 : vector<1x32xf32> to vector<8x32xf32>
    %54 = arith.addf %51, %53 : vector<8x32xf32>
    %55 = arith.addf %1, %54 : vector<8x32xf32>
    %cst_34 = arith.constant dense<0.000000e+00> : vector<8xf32>
    %56 = vector.multi_reduction <add>, %55, %cst_34 [1] : vector<8x32xf32> to vector<8xf32>
    %57 = vector.shape_cast %56 : vector<8xf32> to vector<8x1xf32>
    %cst_35 = arith.constant 3.200000e+01 : f32
    %58 = vector.broadcast %cst_35 : f32 to vector<8x1xf32>
    %59 = arith.divf %57, %58 : vector<8x1xf32>
    %60 = arith.mulf %55, %55 : vector<8x32xf32>
    %cst_36 = arith.constant dense<0.000000e+00> : vector<8xf32>
    %61 = vector.multi_reduction <add>, %60, %cst_36 [1] : vector<8x32xf32> to vector<8xf32>
    %62 = vector.shape_cast %61 : vector<8xf32> to vector<8x1xf32>
    %cst_37 = arith.constant 3.200000e+01 : f32
    %63 = vector.broadcast %cst_37 : f32 to vector<8x1xf32>
    %64 = arith.divf %62, %63 : vector<8x1xf32>
    %65 = arith.mulf %59, %59 : vector<8x1xf32>
    %66 = arith.subf %64, %65 : vector<8x1xf32>
    %67 = vector.broadcast %59 : vector<8x1xf32> to vector<8x32xf32>
    %68 = arith.subf %55, %67 : vector<8x32xf32>
    %cst_38 = arith.constant 9.99999974E-6 : f32
    %69 = vector.broadcast %cst_38 : f32 to vector<8x1xf32>
    %70 = arith.addf %66, %69 : vector<8x1xf32>
    %71 = math.rsqrt %70 : vector<8x1xf32>
    %72 = vector.broadcast %71 : vector<8x1xf32> to vector<8x32xf32>
    %73 = arith.mulf %68, %72 : vector<8x32xf32>
    %74 = vector.broadcast %2 : vector<1x32xf32> to vector<8x32xf32>
    %75 = arith.mulf %73, %74 : vector<8x32xf32>
    %76 = vector.broadcast %3 : vector<1x32xf32> to vector<8x32xf32>
    %77 = arith.addf %75, %76 : vector<8x32xf32>
    %78 = arith.truncf %77 : vector<8x32xf32> to vector<8x32xbf16>
    %c0_39 = arith.constant 0 : index
    %c0_40 = arith.constant 0 : index
    %79 = vector.load %arg10[%c0_39, %c0_40] : memref<32x64xbf16, #tpu.memory_space<vmem>>, vector<32x64xbf16>
    %cst_41 = arith.constant dense<0.000000e+00> : vector<8x64xf32>
    %80 = tpu.matmul %78, %79, %cst_41 {dimension_numbers = #tpu.dot_dimension_numbers<[1], [0], [0], [1], [0, 0, 1, 1], [], []>} : vector<8x32xbf16>, vector<32x64xbf16>, vector<8x64xf32> -> vector<8x64xf32>
    %c0_42 = arith.constant 0 : index
    %c0_43 = arith.constant 0 : index
    %81 = vector.load %arg11[%c0_42, %c0_43] : memref<1x64xf32, #tpu.memory_space<vmem>>, vector<1x64xf32>
    %82 = vector.broadcast %81 : vector<1x64xf32> to vector<8x64xf32>
    %83 = arith.addf %80, %82 : vector<8x64xf32>
    %cst_44 = arith.constant 5.000000e-01 : f32
    %84 = vector.broadcast %cst_44 : f32 to vector<8x64xf32>
    %85 = arith.mulf %84, %83 : vector<8x64xf32>
    %cst_45 = arith.constant 0.707106769 : f32
    %86 = vector.broadcast %cst_45 : f32 to vector<8x64xf32>
    %87 = arith.mulf %83, %86 : vector<8x64xf32>
    %88 = math.erf %87 : vector<8x64xf32>
    %cst_46 = arith.constant 1.000000e+00 : f32
    %89 = vector.broadcast %cst_46 : f32 to vector<8x64xf32>
    %90 = arith.addf %89, %88 : vector<8x64xf32>
    %91 = arith.mulf %85, %90 : vector<8x64xf32>
    %92 = arith.truncf %91 : vector<8x64xf32> to vector<8x64xbf16>
    %c0_47 = arith.constant 0 : index
    %c0_48 = arith.constant 0 : index
    %93 = vector.load %arg12[%c0_47, %c0_48] : memref<64x32xbf16, #tpu.memory_space<vmem>>, vector<64x32xbf16>
    %cst_49 = arith.constant dense<0.000000e+00> : vector<8x32xf32>
    %94 = tpu.matmul %92, %93, %cst_49 {dimension_numbers = #tpu.dot_dimension_numbers<[1], [0], [0], [1], [0, 0, 1, 1], [], []>} : vector<8x64xbf16>, vector<64x32xbf16>, vector<8x32xf32> -> vector<8x32xf32>
    %c0_50 = arith.constant 0 : index
    %c0_51 = arith.constant 0 : index
    %95 = vector.load %arg13[%c0_50, %c0_51] : memref<1x32xf32, #tpu.memory_space<vmem>>, vector<1x32xf32>
    %96 = vector.broadcast %95 : vector<1x32xf32> to vector<8x32xf32>
    %97 = arith.addf %94, %96 : vector<8x32xf32>
    %98 = arith.addf %97, %77 : vector<8x32xf32>
    %cst_52 = arith.constant dense<0.000000e+00> : vector<8xf32>
    %99 = vector.multi_reduction <add>, %98, %cst_52 [1] : vector<8x32xf32> to vector<8xf32>
    %100 = vector.shape_cast %99 : vector<8xf32> to vector<8x1xf32>
    %cst_53 = arith.constant 3.200000e+01 : f32
    %101 = vector.broadcast %cst_53 : f32 to vector<8x1xf32>
    %102 = arith.divf %100, %101 : vector<8x1xf32>
    %103 = arith.mulf %98, %98 : vector<8x32xf32>
    %cst_54 = arith.constant dense<0.000000e+00> : vector<8xf32>
    %104 = vector.multi_reduction <add>, %103, %cst_54 [1] : vector<8x32xf32> to vector<8xf32>
    %105 = vector.shape_cast %104 : vector<8xf32> to vector<8x1xf32>
    %cst_55 = arith.constant 3.200000e+01 : f32
    %106 = vector.broadcast %cst_55 : f32 to vector<8x1xf32>
    %107 = arith.divf %105, %106 : vector<8x1xf32>
    %108 = arith.mulf %102, %102 : vector<8x1xf32>
    %109 = arith.subf %107, %108 : vector<8x1xf32>
    %110 = vector.broadcast %102 : vector<8x1xf32> to vector<8x32xf32>
    %111 = arith.subf %98, %110 : vector<8x32xf32>
    %cst_56 = arith.constant 9.99999974E-6 : f32
    %112 = vector.broadcast %cst_56 : f32 to vector<8x1xf32>
    %113 = arith.addf %109, %112 : vector<8x1xf32>
    %114 = math.rsqrt %113 : vector<8x1xf32>
    %115 = vector.broadcast %114 : vector<8x1xf32> to vector<8x32xf32>
    %116 = arith.mulf %111, %115 : vector<8x32xf32>
    %117 = vector.broadcast %2 : vector<1x32xf32> to vector<8x32xf32>
    %118 = arith.mulf %116, %117 : vector<8x32xf32>
    %119 = vector.broadcast %3 : vector<1x32xf32> to vector<8x32xf32>
    %120 = arith.addf %118, %119 : vector<8x32xf32>
    %c0_57 = arith.constant 0 : index
    %c0_58 = arith.constant 0 : index
    %c0_59 = arith.constant 0 : index
    %121 = vector.load %arg16[%c0_57, %c0_58, %c0_59] : memref<1x8x32xf32, #tpu.memory_space<vmem>>, vector<1x8x32xf32>
    %122 = vector.shape_cast %121 : vector<1x8x32xf32> to vector<8x32xf32>
    %123 = vector.shape_cast %120 : vector<8x32xf32> to vector<1x8x32xf32>
    tpu.vector_store %arg16[%c0_57, %c0_58, %c0_59], %123 {strides = array<i32>} : memref<1x8x32xf32, #tpu.memory_space<vmem>>, vector<1x8x32xf32>,
    return
  }
  func.func @transform_0(%arg0: i32) -> (i32, i32, i32) {
    %c0_i32 = arith.constant 0 : i32
    %c0_i32_0 = arith.constant 0 : i32
    %c0_i32_1 = arith.constant 0 : i32
    return %arg0, %c0_i32, %c0_i32_0 : i32, i32, i32
  }
  func.func @transform_1(%arg0: i32) -> (i32, i32) {
    %c0_i32 = arith.constant 0 : i32
    %c0_i32_0 = arith.constant 0 : i32
    %c0_i32_1 = arith.constant 0 : i32
    return %c0_i32, %c0_i32_0 : i32, i32
  }
  func.func @transform_2(%arg0: i32) -> (i32, i32) {
    %c0_i32 = arith.constant 0 : i32
    %c0_i32_0 = arith.constant 0 : i32
    %c0_i32_1 = arith.constant 0 : i32
    return %c0_i32, %c0_i32_0 : i32, i32
  }
  func.func @transform_3(%arg0: i32) -> (i32, i32) {
    %c0_i32 = arith.constant 0 : i32
    %c0_i32_0 = arith.constant 0 : i32
    %c0_i32_1 = arith.constant 0 : i32
    return %c0_i32, %c0_i32_0 : i32, i32
  }
  func.func @transform_4(%arg0: i32) -> (i32, i32) {
    %c0_i32 = arith.constant 0 : i32
    %c0_i32_0 = arith.constant 0 : i32
    %c0_i32_1 = arith.constant 0 : i32
    return %c0_i32, %c0_i32_0 : i32, i32
  }
  func.func @transform_5(%arg0: i32) -> (i32, i32) {
    %c0_i32 = arith.constant 0 : i32
    %c0_i32_0 = arith.constant 0 : i32
    %c0_i32_1 = arith.constant 0 : i32
    return %c0_i32, %c0_i32_0 : i32, i32
  }
  func.func @transform_6(%arg0: i32) -> (i32, i32) {
    %c0_i32 = arith.constant 0 : i32
    %c0_i32_0 = arith.constant 0 : i32
    %c0_i32_1 = arith.constant 0 : i32
    return %c0_i32, %c0_i32_0 : i32, i32
  }
  func.func @transform_7(%arg0: i32) -> (i32, i32) {
    %c0_i32 = arith.constant 0 : i32
    %c0_i32_0 = arith.constant 0 : i32
    %c0_i32_1 = arith.constant 0 : i32
    return %c0_i32, %c0_i32_0 : i32, i32
  }
  func.func @transform_8(%arg0: i32) -> (i32, i32) {
    %c0_i32 = arith.constant 0 : i32
    %c0_i32_0 = arith.constant 0 : i32
    %c0_i32_1 = arith.constant 0 : i32
    return %c0_i32, %c0_i32_0 : i32, i32
  }
  func.func @transform_9(%arg0: i32) -> (i32, i32) {
    %c0_i32 = arith.constant 0 : i32
    %c0_i32_0 = arith.constant 0 : i32
    %c0_i32_1 = arith.constant 0 : i32
    return %c0_i32, %c0_i32_0 : i32, i32
  }
  func.func @transform_10(%arg0: i32) -> (i32, i32) {
    %c0_i32 = arith.constant 0 : i32
    %c0_i32_0 = arith.constant 0 : i32
    %c0_i32_1 = arith.constant 0 : i32
    return %c0_i32, %c0_i32_0 : i32, i32
  }
  func.func @transform_11(%arg0: i32) -> (i32, i32) {
    %c0_i32 = arith.constant 0 : i32
    %c0_i32_0 = arith.constant 0 : i32
    %c0_i32_1 = arith.constant 0 : i32
    return %c0_i32, %c0_i32_0 : i32, i32
  }
  func.func @transform_12(%arg0: i32) -> (i32, i32) {
    %c0_i32 = arith.constant 0 : i32
    %c0_i32_0 = arith.constant 0 : i32
    %c0_i32_1 = arith.constant 0 : i32
    return %c0_i32, %c0_i32_0 : i32, i32
  }
  func.func @transform_13(%arg0: i32) -> (i32, i32) {
    %c0_i32 = arith.constant 0 : i32
    %c0_i32_0 = arith.constant 0 : i32
    %c0_i32_1 = arith.constant 0 : i32
    return %c0_i32, %c0_i32_0 : i32, i32
  }
  func.func @transform_14(%arg0: i32) -> (i32, i32) {
    %c0_i32 = arith.constant 0 : i32
    %c0_i32_0 = arith.constant 0 : i32
    %c0_i32_1 = arith.constant 0 : i32
    return %c0_i32, %c0_i32_0 : i32, i32
  }
  func.func @transform_15(%arg0: i32) -> (i32, i32, i32) {
    %c0_i32 = arith.constant 0 : i32
    %c0_i32_0 = arith.constant 0 : i32
    %c0_i32_1 = arith.constant 0 : i32
    return %arg0, %c0_i32, %c0_i32_0 : i32, i32, i32
  }
  func.func @transform_16(%arg0: i32) -> (i32, i32, i32, i32) {
    %c0_i32 = arith.constant 0 : i32
    %c0_i32_0 = arith.constant 0 : i32
    %c0_i32_1 = arith.constant 0 : i32
    %c0_i32_2 = arith.constant 0 : i32
    return %arg0, %c0_i32, %c0_i32_0, %c0_i32_1 : i32, i32, i32, i32
  }
}

module attributes {stable_mosaic.version = 11 : i64} {
  func.func @transformer_block_kernel(%arg0: i32, %arg1: memref<1x8x32xf32, #tpu.memory_space<vmem>>, %arg2: memref<32x32xbf16, #tpu.memory_space<vmem>>, %arg3: memref<1x32xf32, #tpu.memory_space<vmem>>, %arg4: memref<32x32xbf16, #tpu.memory_space<vmem>>, %arg5: memref<1x32xf32, #tpu.memory_space<vmem>>, %arg6: memref<32x32xbf16, #tpu.memory_space<vmem>>, %arg7: memref<1x32xf32, #tpu.memory_space<vmem>>, %arg8: memref<32x32xbf16, #tpu.memory_space<vmem>>, %arg9: memref<1x32xf32, #tpu.memory_space<vmem>>, %arg10: memref<32x64xbf16, #tpu.memory_space<vmem>>, %arg11: memref<1x64xf32, #tpu.memory_space<vmem>>, %arg12: memref<64x32xbf16, #tpu.memory_space<vmem>>, %arg13: memref<1x32xf32, #tpu.memory_space<vmem>>, %arg14: memref<1x32xf32, #tpu.memory_space<vmem>>, %arg15: memref<1x32xf32, #tpu.memory_space<vmem>>, %arg16: memref<1x8x32xf32, #tpu.memory_space<vmem>>, %arg17: memref<1x4x8x8xf32, #tpu.memory_space<vmem>>) attributes {dimension_semantics = [#tpu.dimension_semantics<parallel>], iteration_bounds = array<i64: 2>, scalar_prefetch = 0 : i64, scratch_operands = 0 : i64, tpu.core_type = #tpu.core_type<tc>, window_params = [{transform_indices = @transform_0, window_bounds = array<i64: 1, 8, 32>}, {pipeline_mode = #tpu.pipeline_mode<synchronous>, transform_indices = @transform_1, window_bounds = array<i64: 32, 32>}, {pipeline_mode = #tpu.pipeline_mode<synchronous>, transform_indices = @transform_2, window_bounds = array<i64: 1, 32>}, {pipeline_mode = #tpu.pipeline_mode<synchronous>, transform_indices = @transform_3, window_bounds = array<i64: 32, 32>}, {pipeline_mode = #tpu.pipeline_mode<synchronous>, transform_indices = @transform_4, window_bounds = array<i64: 1, 32>}, {pipeline_mode = #tpu.pipeline_mode<synchronous>, transform_indices = @transform_5, window_bounds = array<i64: 32, 32>}, {pipeline_mode = #tpu.pipeline_mode<synchronous>, transform_indices = @transform_6, window_bounds = array<i64: 1, 32>}, {pipeline_mode = #tpu.pipeline_mode<synchronous>, transform_indices = @transform_7, window_bounds = array<i64: 32, 32>}, {pipeline_mode = #tpu.pipeline_mode<synchronous>, transform_indices = @transform_8, window_bounds = array<i64: 1, 32>}, {pipeline_mode = #tpu.pipeline_mode<synchronous>, transform_indices = @transform_9, window_bounds = array<i64: 32, 64>}, {pipeline_mode = #tpu.pipeline_mode<synchronous>, transform_indices = @transform_10, window_bounds = array<i64: 1, 64>}, {pipeline_mode = #tpu.pipeline_mode<synchronous>, transform_indices = @transform_11, window_bounds = array<i64: 64, 32>}, {pipeline_mode = #tpu.pipeline_mode<synchronous>, transform_indices = @transform_12, window_bounds = array<i64: 1, 32>}, {pipeline_mode = #tpu.pipeline_mode<synchronous>, transform_indices = @transform_13, window_bounds = array<i64: 1, 32>}, {pipeline_mode = #tpu.pipeline_mode<synchronous>, transform_indices = @transform_14, window_bounds = array<i64: 1, 32>}, {transform_indices = @transform_15, window_bounds = array<i64: 1, 8, 32>}, {transform_indices = @transform_16, window_bounds = array<i64: 1, 4, 8, 8>}]} {
    %c0 = arith.constant 0 : index
    %c0_0 = arith.constant 0 : index
    %c0_1 = arith.constant 0 : index
    %0 = vector.load %arg1[%c0, %c0_0, %c0_1] : memref<1x8x32xf32, #tpu.memory_space<vmem>>, vector<1x8x32xf32>
    %1 = vector.shape_cast %0 : vector<1x8x32xf32> to vector<8x32xf32>
    %c0_2 = arith.constant 0 : index
    %c0_3 = arith.constant 0 : index
    %2 = vector.load %arg14[%c0_2, %c0_3] : memref<1x32xf32, #tpu.memory_space<vmem>>, vector<1x32xf32>
    %c0_4 = arith.constant 0 : index
    %c0_5 = arith.constant 0 : index
    %3 = vector.load %arg15[%c0_4, %c0_5] : memref<1x32xf32, #tpu.memory_space<vmem>>, vector<1x32xf32>
    %4 = arith.truncf %1 : vector<8x32xf32> to vector<8x32xbf16>
    %c0_6 = arith.constant 0 : index
    %c0_7 = arith.constant 0 : index
    %5 = vector.load %arg2[%c0_6, %c0_7] : memref<32x32xbf16, #tpu.memory_space<vmem>>, vector<32x32xbf16>
    %cst = arith.constant dense<0.000000e+00> : vector<8x32xf32>
    %6 = tpu.matmul %4, %5, %cst {dimension_numbers = #tpu.dot_dimension_numbers<[1], [0], [0], [1], [0, 0, 1, 1], [], []>} : vector<8x32xbf16>, vector<32x32xbf16>, vector<8x32xf32> -> vector<8x32xf32>
    %c0_8 = arith.constant 0 : index
    %c0_9 = arith.constant 0 : index
    %7 = vector.load %arg3[%c0_8, %c0_9] : memref<1x32xf32, #tpu.memory_space<vmem>>, vector<1x32xf32>
    %8 = vector.broadcast %7 : vector<1x32xf32> to vector<8x32xf32>
    %9 = arith.addf %6, %8 : vector<8x32xf32>
    %c0_10 = arith.constant 0 : index
    %c0_11 = arith.constant 0 : index
    %10 = vector.load %arg4[%c0_10, %c0_11] : memref<32x32xbf16, #tpu.memory_space<vmem>>, vector<32x32xbf16>
    %cst_12 = arith.constant dense<0.000000e+00> : vector<8x32xf32>
    %11 = tpu.matmul %4, %10, %cst_12 {dimension_numbers = #tpu.dot_dimension_numbers<[1], [0], [0], [1], [0, 0, 1, 1], [], []>} : vector<8x32xbf16>, vector<32x32xbf16>, vector<8x32xf32> -> vector<8x32xf32>
    %c0_13 = arith.constant 0 : index
    %c0_14 = arith.constant 0 : index
    %12 = vector.load %arg5[%c0_13, %c0_14] : memref<1x32xf32, #tpu.memory_space<vmem>>, vector<1x32xf32>
    %13 = vector.broadcast %12 : vector<1x32xf32> to vector<8x32xf32>
    %14 = arith.addf %11, %13 : vector<8x32xf32>
    %c0_15 = arith.constant 0 : index
    %c0_16 = arith.constant 0 : index
    %15 = vector.load %arg6[%c0_15, %c0_16] : memref<32x32xbf16, #tpu.memory_space<vmem>>, vector<32x32xbf16>
    %cst_17 = arith.constant dense<0.000000e+00> : vector<8x32xf32>
    %16 = tpu.matmul %4, %15, %cst_17 {dimension_numbers = #tpu.dot_dimension_numbers<[1], [0], [0], [1], [0, 0, 1, 1], [], []>} : vector<8x32xbf16>, vector<32x32xbf16>, vector<8x32xf32> -> vector<8x32xf32>
    %c0_18 = arith.constant 0 : index
    %c0_19 = arith.constant 0 : index
    %17 = vector.load %arg7[%c0_18, %c0_19] : memref<1x32xf32, #tpu.memory_space<vmem>>, vector<1x32xf32>
    %18 = vector.broadcast %17 : vector<1x32xf32> to vector<8x32xf32>
    %19 = arith.addf %16, %18 : vector<8x32xf32>
    %cst_20 = arith.constant 0.353553385 : f32
    %20 = vector.broadcast %cst_20 : f32 to vector<8x32xf32>
    %21 = arith.mulf %9, %20 : vector<8x32xf32>
    %22 = arith.truncf %21 : vector<8x32xf32> to vector<8x32xbf16>
    %23 = vector.shape_cast %22 : vector<8x32xbf16> to vector<8x4x8xbf16>
    %24 = tpu.transpose %23, [1, 0, 2] : vector<8x4x8xbf16> -> vector<4x8x8xbf16>
    %25 = arith.truncf %14 : vector<8x32xf32> to vector<8x32xbf16>
    %26 = vector.shape_cast %25 : vector<8x32xbf16> to vector<8x4x8xbf16>
    %27 = tpu.transpose %26, [1, 0, 2] : vector<8x4x8xbf16> -> vector<4x8x8xbf16>
    %28 = arith.truncf %19 : vector<8x32xf32> to vector<8x32xbf16>
    %29 = vector.shape_cast %28 : vector<8x32xbf16> to vector<8x4x8xbf16>
    %30 = tpu.transpose %29, [1, 0, 2] : vector<8x4x8xbf16> -> vector<4x8x8xbf16>
    "tpu.trace_start"() <{level = 10 : i32, message = "hqd,hkd->hqk"}> : () -> ()
    %cst_21 = arith.constant dense<0.000000e+00> : vector<4x8x8xf32>
    %31 = tpu.matmul %24, %27, %cst_21 {dimension_numbers = #tpu.dot_dimension_numbers<[2], [2], [1], [1], [0, 0, 0, 1, 1, 1], [0], [0]>} : vector<4x8x8xbf16>, vector<4x8x8xbf16>, vector<4x8x8xf32> -> vector<4x8x8xf32>
    "tpu.trace_stop"() : () -> ()
    %cst_22 = arith.constant dense<0xFF800000> : vector<4x8xf32>
    %32 = vector.multi_reduction <maximumf>, %31, %cst_22 [2] : vector<4x8x8xf32> to vector<4x8xf32>
    %33 = vector.shape_cast %32 : vector<4x8xf32> to vector<4x8x1xf32>
    %34 = vector.broadcast %33 : vector<4x8x1xf32> to vector<4x8x8xf32>
    %35 = arith.subf %31, %34 : vector<4x8x8xf32>
    %36 = math.exp %35 : vector<4x8x8xf32>
    %cst_23 = arith.constant dense<0.000000e+00> : vector<4x8xf32>
    %37 = vector.multi_reduction <add>, %36, %cst_23 [2] : vector<4x8x8xf32> to vector<4x8xf32>
    %38 = vector.shape_cast %37 : vector<4x8xf32> to vector<4x8x1xf32>
    %39 = tpu.reciprocal %38 {approx = true} : vector<4x8x1xf32> -> vector<4x8x1xf32>
    %40 = vector.broadcast %39 : vector<4x8x1xf32> to vector<4x8x8xf32>
    %41 = arith.mulf %36, %40 : vector<4x8x8xf32>
    %c0_24 = arith.constant 0 : index
    %c0_25 = arith.constant 0 : index
    %c0_26 = arith.constant 0 : index
    %c0_27 = arith.constant 0 : index
    %42 = vector.load %arg17[%c0_24, %c0_25, %c0_26, %c0_27] : memref<1x4x8x8xf32, #tpu.memory_space<vmem>>, vector<1x4x8x8xf32>
    %43 = vector.shape_cast %42 : vector<1x4x8x8xf32> to vector<4x8x8xf32>
    %44 = vector.shape_cast %41 : vector<4x8x8xf32> to vector<1x4x8x8xf32>
    tpu.vector_store %arg17[%c0_24, %c0_25, %c0_26, %c0_27], %44 {strides = array<i32>} : memref<1x4x8x8xf32, #tpu.memory_space<vmem>>, vector<1x4x8x8xf32>,
    %45 = arith.truncf %41 : vector<4x8x8xf32> to vector<4x8x8xbf16>
    "tpu.trace_start"() <{level = 10 : i32, message = "hqk,hkd->hqd"}> : () -> ()
    %cst_28 = arith.constant dense<0.000000e+00> : vector<4x8x8xf32>
    %46 = tpu.matmul %45, %30, %cst_28 {dimension_numbers = #tpu.dot_dimension_numbers<[2], [1], [1], [2], [0, 0, 0, 1, 1, 2], [0], [0]>} : vector<4x8x8xbf16>, vector<4x8x8xbf16>, vector<4x8x8xf32> -> vector<4x8x8xf32>
    "tpu.trace_stop"() : () -> ()
    %47 = tpu.transpose %46, [1, 0, 2] : vector<4x8x8xf32> -> vector<8x4x8xf32>
    %48 = vector.shape_cast %47 : vector<8x4x8xf32> to vector<8x32xf32>
    %49 = arith.truncf %48 : vector<8x32xf32> to vector<8x32xbf16>
    %c0_29 = arith.constant 0 : index
    %c0_30 = arith.constant 0 : index
    %50 = vector.load %arg8[%c0_29, %c0_30] : memref<32x32xbf16, #tpu.memory_space<vmem>>, vector<32x32xbf16>
    %cst_31 = arith.constant dense<0.000000e+00> : vector<8x32xf32>
    %51 = tpu.matmul %49, %50, %cst_31 {dimension_numbers = #tpu.dot_dimension_numbers<[1], [0], [0], [1], [0, 0, 1, 1], [], []>} : vector<8x32xbf16>, vector<32x32xbf16>, vector<8x32xf32> -> vector<8x32xf32>
    %c0_32 = arith.constant 0 : index
    %c0_33 = arith.constant 0 : index
    %52 = vector.load %arg9[%c0_32, %c0_33] : memref<1x32xf32, #tpu.memory_space<vmem>>, vector<1x32xf32>
    %53 = vector.broadcast %52 : vector<1x32xf32> to vector<8x32xf32>
    %54 = arith.addf %51, %53 : vector<8x32xf32>
    %55 = arith.addf %1, %54 : vector<8x32xf32>
    %cst_34 = arith.constant dense<0.000000e+00> : vector<8xf32>
    %56 = vector.multi_reduction <add>, %55, %cst_34 [1] : vector<8x32xf32> to vector<8xf32>
    %57 = vector.shape_cast %56 : vector<8xf32> to vector<8x1xf32>
    %cst_35 = arith.constant 3.200000e+01 : f32
    %58 = vector.broadcast %cst_35 : f32 to vector<8x1xf32>
    %59 = arith.divf %57, %58 : vector<8x1xf32>
    %60 = arith.mulf %55, %55 : vector<8x32xf32>
    %cst_36 = arith.constant dense<0.000000e+00> : vector<8xf32>
    %61 = vector.multi_reduction <add>, %60, %cst_36 [1] : vector<8x32xf32> to vector<8xf32>
    %62 = vector.shape_cast %61 : vector<8xf32> to vector<8x1xf32>
    %cst_37 = arith.constant 3.200000e+01 : f32
    %63 = vector.broadcast %cst_37 : f32 to vector<8x1xf32>
    %64 = arith.divf %62, %63 : vector<8x1xf32>
    %65 = arith.mulf %59, %59 : vector<8x1xf32>
    %66 = arith.subf %64, %65 : vector<8x1xf32>
    %67 = vector.broadcast %59 : vector<8x1xf32> to vector<8x32xf32>
    %68 = arith.subf %55, %67 : vector<8x32xf32>
    %cst_38 = arith.constant 9.99999974E-6 : f32
    %69 = vector.broadcast %cst_38 : f32 to vector<8x1xf32>
    %70 = arith.addf %66, %69 : vector<8x1xf32>
    %71 = math.rsqrt %70 : vector<8x1xf32>
    %72 = vector.broadcast %71 : vector<8x1xf32> to vector<8x32xf32>
    %73 = arith.mulf %68, %72 : vector<8x32xf32>
    %74 = vector.broadcast %2 : vector<1x32xf32> to vector<8x32xf32>
    %75 = arith.mulf %73, %74 : vector<8x32xf32>
    %76 = vector.broadcast %3 : vector<1x32xf32> to vector<8x32xf32>
    %77 = arith.addf %75, %76 : vector<8x32xf32>
    %78 = arith.truncf %77 : vector<8x32xf32> to vector<8x32xbf16>
    %c0_39 = arith.constant 0 : index
    %c0_40 = arith.constant 0 : index
    %79 = vector.load %arg10[%c0_39, %c0_40] : memref<32x64xbf16, #tpu.memory_space<vmem>>, vector<32x64xbf16>
    %cst_41 = arith.constant dense<0.000000e+00> : vector<8x64xf32>
    %80 = tpu.matmul %78, %79, %cst_41 {dimension_numbers = #tpu.dot_dimension_numbers<[1], [0], [0], [1], [0, 0, 1, 1], [], []>} : vector<8x32xbf16>, vector<32x64xbf16>, vector<8x64xf32> -> vector<8x64xf32>
    %c0_42 = arith.constant 0 : index
    %c0_43 = arith.constant 0 : index
    %81 = vector.load %arg11[%c0_42, %c0_43] : memref<1x64xf32, #tpu.memory_space<vmem>>, vector<1x64xf32>
    %82 = vector.broadcast %81 : vector<1x64xf32> to vector<8x64xf32>
    %83 = arith.addf %80, %82 : vector<8x64xf32>
    %cst_44 = arith.constant 5.000000e-01 : f32
    %84 = vector.broadcast %cst_44 : f32 to vector<8x64xf32>
    %85 = arith.mulf %84, %83 : vector<8x64xf32>
    %cst_45 = arith.constant 0.707106769 : f32
    %86 = vector.broadcast %cst_45 : f32 to vector<8x64xf32>
    %87 = arith.mulf %83, %86 : vector<8x64xf32>
    %88 = math.erf %87 : vector<8x64xf32>
    %cst_46 = arith.constant 1.000000e+00 : f32
    %89 = vector.broadcast %cst_46 : f32 to vector<8x64xf32>
    %90 = arith.addf %89, %88 : vector<8x64xf32>
    %91 = arith.mulf %85, %90 : vector<8x64xf32>
    %92 = arith.truncf %91 : vector<8x64xf32> to vector<8x64xbf16>
    %c0_47 = arith.constant 0 : index
    %c0_48 = arith.constant 0 : index
    %93 = vector.load %arg12[%c0_47, %c0_48] : memref<64x32xbf16, #tpu.memory_space<vmem>>, vector<64x32xbf16>
    %cst_49 = arith.constant dense<0.000000e+00> : vector<8x32xf32>
    %94 = tpu.matmul %92, %93, %cst_49 {dimension_numbers = #tpu.dot_dimension_numbers<[1], [0], [0], [1], [0, 0, 1, 1], [], []>} : vector<8x64xbf16>, vector<64x32xbf16>, vector<8x32xf32> -> vector<8x32xf32>
    %c0_50 = arith.constant 0 : index
    %c0_51 = arith.constant 0 : index
    %95 = vector.load %arg13[%c0_50, %c0_51] : memref<1x32xf32, #tpu.memory_space<vmem>>, vector<1x32xf32>
    %96 = vector.broadcast %95 : vector<1x32xf32> to vector<8x32xf32>
    %97 = arith.addf %94, %96 : vector<8x32xf32>
    %98 = arith.addf %97, %77 : vector<8x32xf32>
    %cst_52 = arith.constant dense<0.000000e+00> : vector<8xf32>
    %99 = vector.multi_reduction <add>, %98, %cst_52 [1] : vector<8x32xf32> to vector<8xf32>
    %100 = vector.shape_cast %99 : vector<8xf32> to vector<8x1xf32>
    %cst_53 = arith.constant 3.200000e+01 : f32
    %101 = vector.broadcast %cst_53 : f32 to vector<8x1xf32>
    %102 = arith.divf %100, %101 : vector<8x1xf32>
    %103 = arith.mulf %98, %98 : vector<8x32xf32>
    %cst_54 = arith.constant dense<0.000000e+00> : vector<8xf32>
    %104 = vector.multi_reduction <add>, %103, %cst_54 [1] : vector<8x32xf32> to vector<8xf32>
    %105 = vector.shape_cast %104 : vector<8xf32> to vector<8x1xf32>
    %cst_55 = arith.constant 3.200000e+01 : f32
    %106 = vector.broadcast %cst_55 : f32 to vector<8x1xf32>
    %107 = arith.divf %105, %106 : vector<8x1xf32>
    %108 = arith.mulf %102, %102 : vector<8x1xf32>
    %109 = arith.subf %107, %108 : vector<8x1xf32>
    %110 = vector.broadcast %102 : vector<8x1xf32> to vector<8x32xf32>
    %111 = arith.subf %98, %110 : vector<8x32xf32>
    %cst_56 = arith.constant 9.99999974E-6 : f32
    %112 = vector.broadcast %cst_56 : f32 to vector<8x1xf32>
    %113 = arith.addf %109, %112 : vector<8x1xf32>
    %114 = math.rsqrt %113 : vector<8x1xf32>
    %115 = vector.broadcast %114 : vector<8x1xf32> to vector<8x32xf32>
    %116 = arith.mulf %111, %115 : vector<8x32xf32>
    %117 = vector.broadcast %2 : vector<1x32xf32> to vector<8x32xf32>
    %118 = arith.mulf %116, %117 : vector<8x32xf32>
    %119 = vector.broadcast %3 : vector<1x32xf32> to vector<8x32xf32>
    %120 = arith.addf %118, %119 : vector<8x32xf32>
    %c0_57 = arith.constant 0 : index
    %c0_58 = arith.constant 0 : index
    %c0_59 = arith.constant 0 : index
    %121 = vector.load %arg16[%c0_57, %c0_58, %c0_59] : memref<1x8x32xf32, #tpu.memory_space<vmem>>, vector<1x8x32xf32>
    %122 = vector.shape_cast %121 : vector<1x8x32xf32> to vector<8x32xf32>
    %123 = vector.shape_cast %120 : vector<8x32xf32> to vector<1x8x32xf32>
    tpu.vector_store %arg16[%c0_57, %c0_58, %c0_59], %123 {strides = array<i32>} : memref<1x8x32xf32, #tpu.memory_space<vmem>>, vector<1x8x32xf32>,
    return
  }
  func.func @transform_0(%arg0: i32) -> (i32, i32, i32) {
    %c0_i32 = arith.constant 0 : i32
    %c0_i32_0 = arith.constant 0 : i32
    %c0_i32_1 = arith.constant 0 : i32
    return %arg0, %c0_i32, %c0_i32_0 : i32, i32, i32
  }
  func.func @transform_1(%arg0: i32) -> (i32, i32) {
    %c0_i32 = arith.constant 0 : i32
    %c0_i32_0 = arith.constant 0 : i32
    %c0_i32_1 = arith.constant 0 : i32
    return %c0_i32, %c0_i32_0 : i32, i32
  }
  func.func @transform_2(%arg0: i32) -> (i32, i32) {
    %c0_i32 = arith.constant 0 : i32
    %c0_i32_0 = arith.constant 0 : i32
    %c0_i32_1 = arith.constant 0 : i32
    return %c0_i32, %c0_i32_0 : i32, i32
  }
  func.func @transform_3(%arg0: i32) -> (i32, i32) {
    %c0_i32 = arith.constant 0 : i32
    %c0_i32_0 = arith.constant 0 : i32
    %c0_i32_1 = arith.constant 0 : i32
    return %c0_i32, %c0_i32_0 : i32, i32
  }
  func.func @transform_4(%arg0: i32) -> (i32, i32) {
    %c0_i32 = arith.constant 0 : i32
    %c0_i32_0 = arith.constant 0 : i32
    %c0_i32_1 = arith.constant 0 : i32
    return %c0_i32, %c0_i32_0 : i32, i32
  }
  func.func @transform_5(%arg0: i32) -> (i32, i32) {
    %c0_i32 = arith.constant 0 : i32
    %c0_i32_0 = arith.constant 0 : i32
    %c0_i32_1 = arith.constant 0 : i32
    return %c0_i32, %c0_i32_0 : i32, i32
  }
  func.func @transform_6(%arg0: i32) -> (i32, i32) {
    %c0_i32 = arith.constant 0 : i32
    %c0_i32_0 = arith.constant 0 : i32
    %c0_i32_1 = arith.constant 0 : i32
    return %c0_i32, %c0_i32_0 : i32, i32
  }
  func.func @transform_7(%arg0: i32) -> (i32, i32) {
    %c0_i32 = arith.constant 0 : i32
    %c0_i32_0 = arith.constant 0 : i32
    %c0_i32_1 = arith.constant 0 : i32
    return %c0_i32, %c0_i32_0 : i32, i32
  }
  func.func @transform_8(%arg0: i32) -> (i32, i32) {
    %c0_i32 = arith.constant 0 : i32
    %c0_i32_0 = arith.constant 0 : i32
    %c0_i32_1 = arith.constant 0 : i32
    return %c0_i32, %c0_i32_0 : i32, i32
  }
  func.func @transform_9(%arg0: i32) -> (i32, i32) {
    %c0_i32 = arith.constant 0 : i32
    %c0_i32_0 = arith.constant 0 : i32
    %c0_i32_1 = arith.constant 0 : i32
    return %c0_i32, %c0_i32_0 : i32, i32
  }
  func.func @transform_10(%arg0: i32) -> (i32, i32) {
    %c0_i32 = arith.constant 0 : i32
    %c0_i32_0 = arith.constant 0 : i32
    %c0_i32_1 = arith.constant 0 : i32
    return %c0_i32, %c0_i32_0 : i32, i32
  }
  func.func @transform_11(%arg0: i32) -> (i32, i32) {
    %c0_i32 = arith.constant 0 : i32
    %c0_i32_0 = arith.constant 0 : i32
    %c0_i32_1 = arith.constant 0 : i32
    return %c0_i32, %c0_i32_0 : i32, i32
  }
  func.func @transform_12(%arg0: i32) -> (i32, i32) {
    %c0_i32 = arith.constant 0 : i32
    %c0_i32_0 = arith.constant 0 : i32
    %c0_i32_1 = arith.constant 0 : i32
    return %c0_i32, %c0_i32_0 : i32, i32
  }
  func.func @transform_13(%arg0: i32) -> (i32, i32) {
    %c0_i32 = arith.constant 0 : i32
    %c0_i32_0 = arith.constant 0 : i32
    %c0_i32_1 = arith.constant 0 : i32
    return %c0_i32, %c0_i32_0 : i32, i32
  }
  func.func @transform_14(%arg0: i32) -> (i32, i32) {
    %c0_i32 = arith.constant 0 : i32
    %c0_i32_0 = arith.constant 0 : i32
    %c0_i32_1 = arith.constant 0 : i32
    return %c0_i32, %c0_i32_0 : i32, i32
  }
  func.func @transform_15(%arg0: i32) -> (i32, i32, i32) {
    %c0_i32 = arith.constant 0 : i32
    %c0_i32_0 = arith.constant 0 : i32
    %c0_i32_1 = arith.constant 0 : i32
    return %arg0, %c0_i32, %c0_i32_0 : i32, i32, i32
  }
  func.func @transform_16(%arg0: i32) -> (i32, i32, i32, i32) {
    %c0_i32 = arith.constant 0 : i32
    %c0_i32_0 = arith.constant 0 : i32
    %c0_i32_1 = arith.constant 0 : i32
    %c0_i32_2 = arith.constant 0 : i32
    return %arg0, %c0_i32, %c0_i32_0, %c0_i32_1 : i32, i32, i32, i32
  }
}

</mosaic_0001>

<llo_original>
// kernel: tpu_custom_call.1
$region0: #{tpu_custom_call.1}
  #allocation0 [shape = 'u32[]', space=smem, size = 0x4, offset = 0x4, fixed_abs, tag = 'smem constant byte address 0x4 - core index']
  #allocation1 [shape = 'u32[144,128]{1,0:T(1,128)}', space=vmem, size = 0x12000, scoped, tag = 'internal scratch']
  %s0 = inlined_call_operand.vmem [shape: f32[2,8,32], index: 0, kind: input, shape index: {}]
  %s1 = inlined_call_operand.vmem [shape: bf16[32,32], index: 1, kind: input, shape index: {}]
  %s2 = inlined_call_operand.vmem [shape: f32[1,32], index: 2, kind: input, shape index: {}]
  %s3 = inlined_call_operand.vmem [shape: bf16[32,32], index: 3, kind: input, shape index: {}]
  %s4 = inlined_call_operand.vmem [shape: f32[1,32], index: 4, kind: input, shape index: {}]
  %s5 = inlined_call_operand.hbm [shape: bf16[32,32], index: 5, kind: input, shape index: {}]
  %s6 = inlined_call_operand.hbm [shape: f32[1,32], index: 6, kind: input, shape index: {}]
  %s7 = inlined_call_operand.hbm [shape: bf16[32,32], index: 7, kind: input, shape index: {}]
  %s8 = inlined_call_operand.hbm [shape: f32[1,32], index: 8, kind: input, shape index: {}]
  %s9 = inlined_call_operand.vmem [shape: bf16[32,64], index: 9, kind: input, shape index: {}]
  %s10 = inlined_call_operand.vmem [shape: f32[1,64], index: 10, kind: input, shape index: {}]
  %s11 = inlined_call_operand.vmem [shape: bf16[64,32], index: 11, kind: input, shape index: {}]
  %s12 = inlined_call_operand.vmem [shape: f32[1,32], index: 12, kind: input, shape index: {}]
  %s13 = inlined_call_operand.vmem [shape: f32[1,32], index: 13, kind: input, shape index: {}]
  %s14 = inlined_call_operand.vmem [shape: f32[1,32], index: 14, kind: input, shape index: {}]
  %s15 = inlined_call_operand.hbm [shape: f32[2,8,32], index: 15, kind: output, shape index: {0}]
  %s16 = inlined_call_operand.hbm [shape: f32[2,4,8,8], index: 16, kind: output, shape index: {1}]
  %17 = xla_tuple %s15, %s16
  %s18 = sld [smem:[#allocation0]]
  $region117: #{tpu_custom_call.1} parent=0
    _
  %s20 = ssub.s32 1, %s18
  %s21 = scalar_select 0, %s20, %s18
  $region1: #{tpu_custom_call.1} parent=0
    #allocation2 [shape = 'u8[8192]{0}', space=vmem, size = 0x2000, scoped, tag = 'input window, operand 5, single buffered']
    #allocation3 [shape = 's32[2]{0}', space=sflag, size = 0x8, scoped, tag = 'scoped memory for tpu_custom_call.1']
    #allocation4 [shape = 's32[2]{0}', space=sflag, size = 0x8, scoped, tag = 'scoped memory for tpu_custom_call.1']
    #allocation5 [shape = 'u8[512]{0}', space=vmem, size = 0x400, scoped, tag = 'input window, operand 6, single buffered']
    #allocation6 [shape = 's32[1]{0}', space=sflag, size = 0x4, scoped, tag = 'scoped memory for tpu_custom_call.1']
    #allocation7 [shape = 'u8[8192]{0}', space=vmem, size = 0x2000, scoped, tag = 'input window, operand 7, single buffered']
    #allocation8 [shape = 'u8[512]{0}', space=vmem, size = 0x400, scoped, tag = 'input window, operand 8, single buffered']
    #allocation9 [shape = 's32[1]{0}', space=sflag, size = 0x4, scoped, tag = 'scoped memory for tpu_custom_call.1']
    #allocation10 [shape = 'u8[8192]{0}', space=vmem, size = 0x2000, scoped, tag = 'output window, operand 0']
    #allocation11 [shape = 'u8[32768]{0}', space=vmem, size = 0x8000, scoped, tag = 'output window, operand 1']
    #allocation12 [shape = 's32[2]{0}', space=sflag, size = 0x8, scoped, tag = 'scoped memory for tpu_custom_call.1']
    %22 = vsyncpa [#allocation3], 0
    %23 = vsyncpa [#allocation6], 0
    %24 = vsyncpa [#allocation9], 0
    %25 = vsyncpa [#allocation4], 0
    %s26 = scalar_lea.sflag [#allocation4], 1
    %27 = vsyncpa %s26, 0
    %28 = vsyncpa [#allocation12], 0
    %s29 = scalar_lea.sflag [#allocation12], 1
    %30 = vsyncpa %s29, 0
    loop: start=0, step=1, limit=4
    $region2: #{tpu_custom_call.1} parent=1 // loop_pre_header
      _
    $region3: #{tpu_custom_call.1} parent=1 // loop_header
      %s32 = sphi 0, %s36
      %p33 = scmp.ge.s32.totalorder %s32, 4
      %s42 = sphi 0, %s44
      %s45 = sphi 0, %s42
      %s46 = sphi 0, %s45
      %s62 = sphi 0, %s46
      %s66 = sphi 0, %s66
      %s68 = sphi 0, %s66
      %s69 = sphi 0, %s68
      %s83 = sphi 0, %s69
      %s87 = sphi 0, %s87
      %s89 = sphi 0, %s87
      %s90 = sphi 0, %s89
      %s104 = sphi 0, %s90
      %s108 = sphi 0, %s108
      %s110 = sphi 0, %s108
      %s111 = sphi 0, %s110
      %s125 = sphi 0, %s111
      %s129 = sphi 0, %s129
      %s131 = sphi 0, %s129
      %s132 = sphi 0, %s131
      %s146 = sphi 0, %s132
      %s150 = sphi 0, %s150
      %s152 = sphi 0, %s150
      %s153 = sphi 0, %s152
      %s167 = sphi 0, %s153
      %s171 = sphi 0, %s171
      %s173 = sphi 0, %s171
      %s174 = sphi 0, %s173
      %s188 = sphi 0, %s174
      %s192 = sphi 0, %s192
      %s194 = sphi 0, %s192
      %s195 = sphi 0, %s194
      %s209 = sphi 0, %s195
      %s213 = sphi 0, %s213
      %s215 = sphi 0, %s213
      %s216 = sphi 0, %s215
      %s230 = sphi 0, %s216
      %s234 = sphi 0, %s234
      %s236 = sphi 0, %s234
      %s237 = sphi 0, %s236
      %s251 = sphi 0, %s237
      %s255 = sphi 0, %s255
      %s257 = sphi 0, %s255
      %s258 = sphi 0, %s257
      %s272 = sphi 0, %s258
      %s276 = sphi 0, %s276
      %s278 = sphi 0, %s276
      %s279 = sphi 0, %s278
      %s293 = sphi 0, %s279
      %s297 = sphi 0, %s297
      %s299 = sphi 0, %s297
      %s300 = sphi 0, %s299
      %s314 = sphi 0, %s300
      %s318 = sphi 0, %s318
      %s320 = sphi 0, %s318
      %s321 = sphi 0, %s320
      %s335 = sphi 0, %s321
      %s339 = sphi 0, %s339
      %s341 = sphi 0, %s339
      %s342 = sphi 0, %s341
      %s356 = sphi 0, %s342
      %s362 = sphi 0, %s364
      %s365 = sphi 0, %s362
      %s366 = sphi 0, %s365
      %s382 = sphi 0, %s366
      %s388 = sphi 0, %s390
      %s391 = sphi 0, %s388
      %s392 = sphi 0, %s391
      %s408 = sphi 0, %s392
    $region4: #{tpu_custom_call.1} parent=1 // loop_header_branch
      %35 = sbr.rel (%p33) target = $region8
    $region5: #{tpu_custom_call.1} parent=1 // loop_body
      %s37 = ssub.s32 %s32, 1
      %s38 = ssub.s32 %s32, 2
      %s39 = sadd.s32 %s32, 1
      %s40 = ssub.s32 %s32, %s39
      %p41 = scmp.eq.s32.totalorder %s40, 0
      %s43 = sadd.s32 %s42, 1
      %s44 = scalar_select %p41, %s42, %s43
      %p47 = pneg %p41
      %p48 = scmp.eq.s32.totalorder %s32, 1
      %p49 = por %p47, %p48
      %p50 = scmp.ne.s32.totalorder %s42, %s45
      %p51 = scmp.eq.s32.totalorder %s32, 0
      %p52 = por %p50, %p51
      %p53 = scmp.ne.s32.totalorder %s42, %s45
      %p54 = scmp.eq.s32.totalorder %s37, 1
      %p55 = por %p53, %p54
      %p56 = scmp.ne.s32.totalorder %s45, %s46
      %p57 = scmp.eq.s32.totalorder %s37, 0
      %p58 = por %p56, %p57
      %p59 = scmp.ne.s32.totalorder %s45, %s46
      %p60 = scmp.eq.s32.totalorder %s38, 1
      %p61 = por %p59, %p60
      %p63 = scmp.ne.s32.totalorder %s46, %s62
      %p64 = scmp.eq.s32.totalorder %s38, 0
      %p65 = por %p63, %p64
      %s67 = sadd.s32 %s66, 1
      %p70 = scmp.eq.s32.totalorder %s32, 1
      %p71 = scmp.ne.s32.totalorder %s66, %s68
      %p72 = scmp.eq.s32.totalorder %s32, 0
      %p73 = por %p71, %p72
      %p74 = scmp.ne.s32.totalorder %s66, %s68
      %p75 = scmp.eq.s32.totalorder %s37, 1
      %p76 = por %p74, %p75
      %p77 = scmp.ne.s32.totalorder %s68, %s69
      %p78 = scmp.eq.s32.totalorder %s37, 0
      %p79 = por %p77, %p78
      %p80 = scmp.ne.s32.totalorder %s68, %s69
      %p81 = scmp.eq.s32.totalorder %s38, 1
      %p82 = por %p80, %p81
      %p84 = scmp.ne.s32.totalorder %s69, %s83
      %p85 = scmp.eq.s32.totalorder %s38, 0
      %p86 = por %p84, %p85
      %s88 = sadd.s32 %s87, 1
      %p91 = scmp.eq.s32.totalorder %s32, 1
      %p92 = scmp.ne.s32.totalorder %s87, %s89
      %p93 = scmp.eq.s32.totalorder %s32, 0
      %p94 = por %p92, %p93
      %p95 = scmp.ne.s32.totalorder %s87, %s89
      %p96 = scmp.eq.s32.totalorder %s37, 1
      %p97 = por %p95, %p96
      %p98 = scmp.ne.s32.totalorder %s89, %s90
      %p99 = scmp.eq.s32.totalorder %s37, 0
      %p100 = por %p98, %p99
      %p101 = scmp.ne.s32.totalorder %s89, %s90
      %p102 = scmp.eq.s32.totalorder %s38, 1
      %p103 = por %p101, %p102
      %p105 = scmp.ne.s32.totalorder %s90, %s104
      %p106 = scmp.eq.s32.totalorder %s38, 0
      %p107 = por %p105, %p106
      %s109 = sadd.s32 %s108, 1
      %p112 = scmp.eq.s32.totalorder %s32, 1
      %p113 = scmp.ne.s32.totalorder %s108, %s110
      %p114 = scmp.eq.s32.totalorder %s32, 0
      %p115 = por %p113, %p114
      %p116 = scmp.ne.s32.totalorder %s108, %s110
      %p117 = scmp.eq.s32.totalorder %s37, 1
      %p118 = por %p116, %p117
      %p119 = scmp.ne.s32.totalorder %s110, %s111
      %p120 = scmp.eq.s32.totalorder %s37, 0
      %p121 = por %p119, %p120
      %p122 = scmp.ne.s32.totalorder %s110, %s111
      %p123 = scmp.eq.s32.totalorder %s38, 1
      %p124 = por %p122, %p123
      %p126 = scmp.ne.s32.totalorder %s111, %s125
      %p127 = scmp.eq.s32.totalorder %s38, 0
      %p128 = por %p126, %p127
      %s130 = sadd.s32 %s129, 1
      %p133 = scmp.eq.s32.totalorder %s32, 1
      %p134 = scmp.ne.s32.totalorder %s129, %s131
      %p135 = scmp.eq.s32.totalorder %s32, 0
      %p136 = por %p134, %p135
      %p137 = scmp.ne.s32.totalorder %s129, %s131
      %p138 = scmp.eq.s32.totalorder %s37, 1
      %p139 = por %p137, %p138
      %p140 = scmp.ne.s32.totalorder %s131, %s132
      %p141 = scmp.eq.s32.totalorder %s37, 0
      %p142 = por %p140, %p141
      %p143 = scmp.ne.s32.totalorder %s131, %s132
      %p144 = scmp.eq.s32.totalorder %s38, 1
      %p145 = por %p143, %p144
      %p147 = scmp.ne.s32.totalorder %s132, %s146
      %p148 = scmp.eq.s32.totalorder %s38, 0
      %p149 = por %p147, %p148
      %s151 = sadd.s32 %s150, 1
      %p154 = scmp.eq.s32.totalorder %s32, 1
      %p155 = scmp.ne.s32.totalorder %s150, %s152
      %p156 = scmp.eq.s32.totalorder %s32, 0
      %p157 = por %p155, %p156
      %p158 = scmp.ne.s32.totalorder %s150, %s152
      %p159 = scmp.eq.s32.totalorder %s37, 1
      %p160 = por %p158, %p159
      %p161 = scmp.ne.s32.totalorder %s152, %s153
      %p162 = scmp.eq.s32.totalorder %s37, 0
      %p163 = por %p161, %p162
      %p164 = scmp.ne.s32.totalorder %s152, %s153
      %p165 = scmp.eq.s32.totalorder %s38, 1
      %p166 = por %p164, %p165
      %p168 = scmp.ne.s32.totalorder %s153, %s167
      %p169 = scmp.eq.s32.totalorder %s38, 0
      %p170 = por %p168, %p169
      %s172 = sadd.s32 %s171, 1
      %p175 = scmp.eq.s32.totalorder %s32, 1
      %p176 = scmp.ne.s32.totalorder %s171, %s173
      %p177 = scmp.eq.s32.totalorder %s32, 0
      %p178 = por %p176, %p177
      %p179 = scmp.ne.s32.totalorder %s171, %s173
      %p180 = scmp.eq.s32.totalorder %s37, 1
      %p181 = por %p179, %p180
      %p182 = scmp.ne.s32.totalorder %s173, %s174
      %p183 = scmp.eq.s32.totalorder %s37, 0
      %p184 = por %p182, %p183
      %p185 = scmp.ne.s32.totalorder %s173, %s174
      %p186 = scmp.eq.s32.totalorder %s38, 1
      %p187 = por %p185, %p186
      %p189 = scmp.ne.s32.totalorder %s174, %s188
      %p190 = scmp.eq.s32.totalorder %s38, 0
      %p191 = por %p189, %p190
      %s193 = sadd.s32 %s192, 1
      %p196 = scmp.eq.s32.totalorder %s32, 1
      %p197 = scmp.ne.s32.totalorder %s192, %s194
      %p198 = scmp.eq.s32.totalorder %s32, 0
      %p199 = por %p197, %p198
      %p200 = scmp.ne.s32.totalorder %s192, %s194
      %p201 = scmp.eq.s32.totalorder %s37, 1
      %p202 = por %p200, %p201
      %p203 = scmp.ne.s32.totalorder %s194, %s195
      %p204 = scmp.eq.s32.totalorder %s37, 0
      %p205 = por %p203, %p204
      %p206 = scmp.ne.s32.totalorder %s194, %s195
      %p207 = scmp.eq.s32.totalorder %s38, 1
      %p208 = por %p206, %p207
      %p210 = scmp.ne.s32.totalorder %s195, %s209
      %p211 = scmp.eq.s32.totalorder %s38, 0
      %p212 = por %p210, %p211
      %s214 = sadd.s32 %s213, 1
      %p217 = scmp.eq.s32.totalorder %s32, 1
      %p218 = scmp.ne.s32.totalorder %s213, %s215
      %p219 = scmp.eq.s32.totalorder %s32, 0
      %p220 = por %p218, %p219
      %p221 = scmp.ne.s32.totalorder %s213, %s215
      %p222 = scmp.eq.s32.totalorder %s37, 1
      %p223 = por %p221, %p222
      %p224 = scmp.ne.s32.totalorder %s215, %s216
      %p225 = scmp.eq.s32.totalorder %s37, 0
      %p226 = por %p224, %p225
      %p227 = scmp.ne.s32.totalorder %s215, %s216
      %p228 = scmp.eq.s32.totalorder %s38, 1
      %p229 = por %p227, %p228
      %p231 = scmp.ne.s32.totalorder %s216, %s230
      %p232 = scmp.eq.s32.totalorder %s38, 0
      %p233 = por %p231, %p232
      %s235 = sadd.s32 %s234, 1
      %p238 = scmp.eq.s32.totalorder %s32, 1
      %p239 = scmp.ne.s32.totalorder %s234, %s236
      %p240 = scmp.eq.s32.totalorder %s32, 0
      %p241 = por %p239, %p240
      %p242 = scmp.ne.s32.totalorder %s234, %s236
      %p243 = scmp.eq.s32.totalorder %s37, 1
      %p244 = por %p242, %p243
      %p245 = scmp.ne.s32.totalorder %s236, %s237
      %p246 = scmp.eq.s32.totalorder %s37, 0
      %p247 = por %p245, %p246
      %p248 = scmp.ne.s32.totalorder %s236, %s237
      %p249 = scmp.eq.s32.totalorder %s38, 1
      %p250 = por %p248, %p249
      %p252 = scmp.ne.s32.totalorder %s237, %s251
      %p253 = scmp.eq.s32.totalorder %s38, 0
      %p254 = por %p252, %p253
      %s256 = sadd.s32 %s255, 1
      %p259 = scmp.eq.s32.totalorder %s32, 1
      %p260 = scmp.ne.s32.totalorder %s255, %s257
      %p261 = scmp.eq.s32.totalorder %s32, 0
      %p262 = por %p260, %p261
      %p263 = scmp.ne.s32.totalorder %s255, %s257
      %p264 = scmp.eq.s32.totalorder %s37, 1
      %p265 = por %p263, %p264
      %p266 = scmp.ne.s32.totalorder %s257, %s258
      %p267 = scmp.eq.s32.totalorder %s37, 0
      %p268 = por %p266, %p267
      %p269 = scmp.ne.s32.totalorder %s257, %s258
      %p270 = scmp.eq.s32.totalorder %s38, 1
      %p271 = por %p269, %p270
      %p273 = scmp.ne.s32.totalorder %s258, %s272
      %p274 = scmp.eq.s32.totalorder %s38, 0
      %p275 = por %p273, %p274
      %s277 = sadd.s32 %s276, 1
      %p280 = scmp.eq.s32.totalorder %s32, 1
      %p281 = scmp.ne.s32.totalorder %s276, %s278
      %p282 = scmp.eq.s32.totalorder %s32, 0
      %p283 = por %p281, %p282
      %p284 = scmp.ne.s32.totalorder %s276, %s278
      %p285 = scmp.eq.s32.totalorder %s37, 1
      %p286 = por %p284, %p285
      %p287 = scmp.ne.s32.totalorder %s278, %s279
      %p288 = scmp.eq.s32.totalorder %s37, 0
      %p289 = por %p287, %p288
      %p290 = scmp.ne.s32.totalorder %s278, %s279
      %p291 = scmp.eq.s32.totalorder %s38, 1
      %p292 = por %p290, %p291
      %p294 = scmp.ne.s32.totalorder %s279, %s293
      %p295 = scmp.eq.s32.totalorder %s38, 0
      %p296 = por %p294, %p295
      %s298 = sadd.s32 %s297, 1
      %p301 = scmp.eq.s32.totalorder %s32, 1
      %p302 = scmp.ne.s32.totalorder %s297, %s299
      %p303 = scmp.eq.s32.totalorder %s32, 0
      %p304 = por %p302, %p303
      %p305 = scmp.ne.s32.totalorder %s297, %s299
      %p306 = scmp.eq.s32.totalorder %s37, 1
      %p307 = por %p305, %p306
      %p308 = scmp.ne.s32.totalorder %s299, %s300
      %p309 = scmp.eq.s32.totalorder %s37, 0
      %p310 = por %p308, %p309
      %p311 = scmp.ne.s32.totalorder %s299, %s300
      %p312 = scmp.eq.s32.totalorder %s38, 1
      %p313 = por %p311, %p312
      %p315 = scmp.ne.s32.totalorder %s300, %s314
      %p316 = scmp.eq.s32.totalorder %s38, 0
      %p317 = por %p315, %p316
      %s319 = sadd.s32 %s318, 1
      %p322 = scmp.eq.s32.totalorder %s32, 1
      %p323 = scmp.ne.s32.totalorder %s318, %s320
      %p324 = scmp.eq.s32.totalorder %s32, 0
      %p325 = por %p323, %p324
      %p326 = scmp.ne.s32.totalorder %s318, %s320
      %p327 = scmp.eq.s32.totalorder %s37, 1
      %p328 = por %p326, %p327
      %p329 = scmp.ne.s32.totalorder %s320, %s321
      %p330 = scmp.eq.s32.totalorder %s37, 0
      %p331 = por %p329, %p330
      %p332 = scmp.ne.s32.totalorder %s320, %s321
      %p333 = scmp.eq.s32.totalorder %s38, 1
      %p334 = por %p332, %p333
      %p336 = scmp.ne.s32.totalorder %s321, %s335
      %p337 = scmp.eq.s32.totalorder %s38, 0
      %p338 = por %p336, %p337
      %s340 = sadd.s32 %s339, 1
      %p343 = scmp.eq.s32.totalorder %s32, 1
      %p344 = scmp.ne.s32.totalorder %s339, %s341
      %p345 = scmp.eq.s32.totalorder %s32, 0
      %p346 = por %p344, %p345
      %p347 = scmp.ne.s32.totalorder %s339, %s341
      %p348 = scmp.eq.s32.totalorder %s37, 1
      %p349 = por %p347, %p348
      %p350 = scmp.ne.s32.totalorder %s341, %s342
      %p351 = scmp.eq.s32.totalorder %s37, 0
      %p352 = por %p350, %p351
      %p353 = scmp.ne.s32.totalorder %s341, %s342
      %p354 = scmp.eq.s32.totalorder %s38, 1
      %p355 = por %p353, %p354
      %p357 = scmp.ne.s32.totalorder %s342, %s356
      %p358 = scmp.eq.s32.totalorder %s38, 0
      %p359 = por %p357, %p358
      %s360 = ssub.s32 %s32, %s39
      %p361 = scmp.eq.s32.totalorder %s360, 0
      %s363 = sadd.s32 %s362, 1
      %s364 = scalar_select %p361, %s362, %s363
      %p367 = pneg %p361
      %p368 = scmp.eq.s32.totalorder %s32, 1
      %p369 = por %p367, %p368
      %p370 = scmp.ne.s32.totalorder %s362, %s365
      %p371 = scmp.eq.s32.totalorder %s32, 0
      %p372 = por %p370, %p371
      %p373 = scmp.ne.s32.totalorder %s362, %s365
      %p374 = scmp.eq.s32.totalorder %s37, 1
      %p375 = por %p373, %p374
      %p376 = scmp.ne.s32.totalorder %s365, %s366
      %p377 = scmp.eq.s32.totalorder %s37, 0
      %p378 = por %p376, %p377
      %p379 = scmp.ne.s32.totalorder %s365, %s366
      %p380 = scmp.eq.s32.totalorder %s38, 1
      %p381 = por %p379, %p380
      %p383 = scmp.ne.s32.totalorder %s366, %s382
      %p384 = scmp.eq.s32.totalorder %s38, 0
      %p385 = por %p383, %p384
      %s386 = ssub.s32 %s32, %s39
      %p387 = scmp.eq.s32.totalorder %s386, 0
      %s389 = sadd.s32 %s388, 1
      %s390 = scalar_select %p387, %s388, %s389
      %p393 = pneg %p387
      %p394 = scmp.eq.s32.totalorder %s32, 1
      %p395 = por %p393, %p394
      %p396 = scmp.ne.s32.totalorder %s388, %s391
      %p397 = scmp.eq.s32.totalorder %s32, 0
      %p398 = por %p396, %p397
      %p399 = scmp.ne.s32.totalorder %s388, %s391
      %p400 = scmp.eq.s32.totalorder %s37, 1
      %p401 = por %p399, %p400
      %p402 = scmp.ne.s32.totalorder %s391, %s392
      %p403 = scmp.eq.s32.totalorder %s37, 0
      %p404 = por %p402, %p403
      %p405 = scmp.ne.s32.totalorder %s391, %s392
      %p406 = scmp.eq.s32.totalorder %s38, 1
      %p407 = por %p405, %p406
      %p409 = scmp.ne.s32.totalorder %s392, %s408
      %p410 = scmp.eq.s32.totalorder %s38, 0
      %p411 = por %p409, %p410
      %p412 = scmp.le.s32.totalorder 1, %s32
      %p413 = scmp.lt.s32.totalorder %s32, 3
      %p414 = pnand %p412, %p413
      %p415 = pneg %p414
      // Predicated region
      $region9: #{tpu_custom_call.1} parent=5 // pred_check
        _
      $region10: #{tpu_custom_call.1} parent=5 // pred_check_branch
        %417 = sbr.rel (%p414) target = $region12
      $region11: #{tpu_custom_call.1} parent=5 // pred_region
        %s418 = ssub.s32 %s32, 1
        // Predicated region
        $region13: #{tpu_custom_call.1} parent=11 // pred_check
          %p419 = pneg %p79
        $region14: #{tpu_custom_call.1} parent=11 // pred_check_branch
          %421 = sbr.rel (%p419) target = $region16
        $region15: #{tpu_custom_call.1} parent=11 // pred_region
          _
        $region16: #{tpu_custom_call.1} parent=11 // pred_fallthru
          _
        // Predicated region
        $region17: #{tpu_custom_call.1} parent=11 // pred_check
          %p422 = pneg %p100
        $region18: #{tpu_custom_call.1} parent=11 // pred_check_branch
          %424 = sbr.rel (%p422) target = $region20
        $region19: #{tpu_custom_call.1} parent=11 // pred_region
          _
        $region20: #{tpu_custom_call.1} parent=11 // pred_fallthru
          _
        // Predicated region
        $region21: #{tpu_custom_call.1} parent=11 // pred_check
          %p425 = pneg %p121
        $region22: #{tpu_custom_call.1} parent=11 // pred_check_branch
          %427 = sbr.rel (%p425) target = $region24
        $region23: #{tpu_custom_call.1} parent=11 // pred_region
          _
        $region24: #{tpu_custom_call.1} parent=11 // pred_fallthru
          _
        // Predicated region
        $region25: #{tpu_custom_call.1} parent=11 // pred_check
          %p428 = pneg %p142
        $region26: #{tpu_custom_call.1} parent=11 // pred_check_branch
          %430 = sbr.rel (%p428) target = $region28
        $region27: #{tpu_custom_call.1} parent=11 // pred_region
          _
        $region28: #{tpu_custom_call.1} parent=11 // pred_fallthru
          _
        // Predicated region
        $region29: #{tpu_custom_call.1} parent=11 // pred_check
          %p431 = pneg %p163
        $region30: #{tpu_custom_call.1} parent=11 // pred_check_branch
          %433 = sbr.rel (%p431) target = $region32
        $region31: #{tpu_custom_call.1} parent=11 // pred_region
          %s435 = ssub.s32 256, 256
          %436 = vsyncadd [#allocation3], %s435
          %s437 = sshll.u32 [#allocation2], 4
          %s438 = int_to_ptr.vmem [resolvable:$true] %s437
          %443 = dma.hbm_to_vmem [thread:$0]  %s5, 256, %s438, [#allocation3], 64, 64, 4
        $region32: #{tpu_custom_call.1} parent=11 // pred_fallthru
          _
        // Predicated region
        $region33: #{tpu_custom_call.1} parent=11 // pred_check
          %p444 = pneg %p184
        $region34: #{tpu_custom_call.1} parent=11 // pred_check_branch
          %446 = sbr.rel (%p444) target = $region36
        $region35: #{tpu_custom_call.1} parent=11 // pred_region
          %s448 = ssub.s32 16, 16
          %449 = vsyncadd [#allocation6], %s448
          %s451 = sshll.u32 [#allocation5], 4
          %s452 = int_to_ptr.vmem [resolvable:$true] %s451
          %454 = dma.hbm_to_vmem [thread:$0]  %s6, 16, %s452, [#allocation6]
        $region36: #{tpu_custom_call.1} parent=11 // pred_fallthru
          _
        // Predicated region
        $region37: #{tpu_custom_call.1} parent=11 // pred_check
          %p455 = pneg %p205
        $region38: #{tpu_custom_call.1} parent=11 // pred_check_branch
          %457 = sbr.rel (%p455) target = $region40
        $region39: #{tpu_custom_call.1} parent=11 // pred_region
          %s459 = ssub.s32 256, 256
          %460 = vsyncadd [#allocation6], %s459
          %s461 = sshll.u32 [#allocation7], 4
          %s462 = int_to_ptr.vmem [resolvable:$true] %s461
          %467 = dma.hbm_to_vmem [thread:$0]  %s7, 256, %s462, [#allocation6], 64, 64, 4
        $region40: #{tpu_custom_call.1} parent=11 // pred_fallthru
          _
        // Predicated region
        $region41: #{tpu_custom_call.1} parent=11 // pred_check
          %p468 = pneg %p226
        $region42: #{tpu_custom_call.1} parent=11 // pred_check_branch
          %470 = sbr.rel (%p468) target = $region44
        $region43: #{tpu_custom_call.1} parent=11 // pred_region
          %s472 = ssub.s32 16, 16
          %473 = vsyncadd [#allocation9], %s472
          %s475 = sshll.u32 [#allocation8], 4
          %s476 = int_to_ptr.vmem [resolvable:$true] %s475
          %478 = dma.hbm_to_vmem [thread:$0]  %s8, 16, %s476, [#allocation9]
        $region44: #{tpu_custom_call.1} parent=11 // pred_fallthru
          _
        // Predicated region
        $region45: #{tpu_custom_call.1} parent=11 // pred_check
          %p479 = pneg %p247
        $region46: #{tpu_custom_call.1} parent=11 // pred_check_branch
          %481 = sbr.rel (%p479) target = $region48
        $region47: #{tpu_custom_call.1} parent=11 // pred_region
          _
        $region48: #{tpu_custom_call.1} parent=11 // pred_fallthru
          _
        // Predicated region
        $region49: #{tpu_custom_call.1} parent=11 // pred_check
          %p482 = pneg %p268
        $region50: #{tpu_custom_call.1} parent=11 // pred_check_branch
          %484 = sbr.rel (%p482) target = $region52
        $region51: #{tpu_custom_call.1} parent=11 // pred_region
          _
        $region52: #{tpu_custom_call.1} parent=11 // pred_fallthru
          _
        // Predicated region
        $region53: #{tpu_custom_call.1} parent=11 // pred_check
          %p485 = pneg %p289
        $region54: #{tpu_custom_call.1} parent=11 // pred_check_branch
          %487 = sbr.rel (%p485) target = $region56
        $region55: #{tpu_custom_call.1} parent=11 // pred_region
          _
        $region56: #{tpu_custom_call.1} parent=11 // pred_fallthru
          _
        // Predicated region
        $region57: #{tpu_custom_call.1} parent=11 // pred_check
          %p488 = pneg %p310
        $region58: #{tpu_custom_call.1} parent=11 // pred_check_branch
          %490 = sbr.rel (%p488) target = $region60
        $region59: #{tpu_custom_call.1} parent=11 // pred_region
          _
        $region60: #{tpu_custom_call.1} parent=11 // pred_fallthru
          _
        // Predicated region
        $region61: #{tpu_custom_call.1} parent=11 // pred_check
          %p491 = pneg %p331
        $region62: #{tpu_custom_call.1} parent=11 // pred_check_branch
          %493 = sbr.rel (%p491) target = $region64
        $region63: #{tpu_custom_call.1} parent=11 // pred_region
          _
        $region64: #{tpu_custom_call.1} parent=11 // pred_fallthru
          _
        // Predicated region
        $region65: #{tpu_custom_call.1} parent=11 // pred_check
          %p494 = pneg %p352
        $region66: #{tpu_custom_call.1} parent=11 // pred_check_branch
          %496 = sbr.rel (%p494) target = $region68
        $region67: #{tpu_custom_call.1} parent=11 // pred_region
          _
        $region68: #{tpu_custom_call.1} parent=11 // pred_fallthru
          _
      $region12: #{tpu_custom_call.1} parent=5 // pred_fallthru
        _
      %p497 = scmp.lt.s32.totalorder %s32, 2
      // Predicated region
      $region69: #{tpu_custom_call.1} parent=5 // pred_check
        %p498 = pneg %p497
      $region70: #{tpu_custom_call.1} parent=5 // pred_check_branch
        %500 = sbr.rel (%p498) target = $region72
      $region71: #{tpu_custom_call.1} parent=5 // pred_region
        // Predicated region
        $region73: #{tpu_custom_call.1} parent=71 // pred_check
          %p501 = pneg %p52
        $region74: #{tpu_custom_call.1} parent=71 // pred_check_branch
          %503 = sbr.rel (%p501) target = $region76
        $region75: #{tpu_custom_call.1} parent=71 // pred_region
          %p504 = scmp.lt.s32.totalorder %s32, 1
          %s505 = scalar_select %p504, %s32, 1
          %s506 = smul.addr %s505, 8
          %s507 = scalar_lea.vmem %s0, %s506
        $region76: #{tpu_custom_call.1} parent=71 // pred_fallthru
          _
      $region72: #{tpu_custom_call.1} parent=5 // pred_fallthru
        _
      %p508 = scmp.le.s32.totalorder 1, %s32
      %p509 = scmp.lt.s32.totalorder %s32, 3
      %p510 = pnand %p508, %p509
      %p511 = pneg %p510
      // Predicated region
      $region77: #{tpu_custom_call.1} parent=5 // pred_check
        _
      $region78: #{tpu_custom_call.1} parent=5 // pred_check_branch
        %513 = sbr.rel (%p510) target = $region80
      $region79: #{tpu_custom_call.1} parent=5 // pred_region
        %s514 = ssub.s32 %s32, 1
        // Predicated region
        $region81: #{tpu_custom_call.1} parent=79 // pred_check
          %p515 = pneg %p163
        $region82: #{tpu_custom_call.1} parent=79 // pred_check_branch
          %517 = sbr.rel (%p515) target = $region84
        $region83: #{tpu_custom_call.1} parent=79 // pred_region
          %518 = dma.done [#allocation3], 256
        $region84: #{tpu_custom_call.1} parent=79 // pred_fallthru
          _
        // Predicated region
        $region85: #{tpu_custom_call.1} parent=79 // pred_check
          %p519 = pneg %p184
        $region86: #{tpu_custom_call.1} parent=79 // pred_check_branch
          %521 = sbr.rel (%p519) target = $region88
        $region87: #{tpu_custom_call.1} parent=79 // pred_region
          %522 = dma.done [#allocation6], 16
        $region88: #{tpu_custom_call.1} parent=79 // pred_fallthru
          _
        // Predicated region
        $region89: #{tpu_custom_call.1} parent=79 // pred_check
          %p523 = pneg %p205
        $region90: #{tpu_custom_call.1} parent=79 // pred_check_branch
          %525 = sbr.rel (%p523) target = $region92
        $region91: #{tpu_custom_call.1} parent=79 // pred_region
          %526 = dma.done [#allocation6], 256
        $region92: #{tpu_custom_call.1} parent=79 // pred_fallthru
          _
        // Predicated region
        $region93: #{tpu_custom_call.1} parent=79 // pred_check
          %p527 = pneg %p226
        $region94: #{tpu_custom_call.1} parent=79 // pred_check_branch
          %529 = sbr.rel (%p527) target = $region96
        $region95: #{tpu_custom_call.1} parent=79 // pred_region
          %530 = dma.done [#allocation9], 16
        $region96: #{tpu_custom_call.1} parent=79 // pred_fallthru
          _
        %p531 = scmp.lt.s32.totalorder %s37, 1
        %s532 = scalar_select %p531, %s37, 1
        %s533 = smul.addr %s532, 8
        %s534 = scalar_lea.vmem %s0, %s533
        %p535 = pneg %p58
        %p536 = pneg %p55
        %p537 = pneg %p79
        %p538 = pneg %p76
        %p539 = pneg %p100
        %p540 = pneg %p97
        %p541 = pneg %p121
        %p542 = pneg %p118
        %p543 = pneg %p142
        %p544 = pneg %p139
        %p545 = pneg %p163
        %p546 = pneg %p160
        %p547 = pneg %p184
        %p548 = pneg %p181
        %p549 = pneg %p205
        %p550 = pneg %p202
        %p551 = pneg %p226
        %p552 = pneg %p223
        %p553 = pneg %p247
        %p554 = pneg %p244
        %p555 = pneg %p268
        %p556 = pneg %p265
        %p557 = pneg %p289
        %p558 = pneg %p286
        %p559 = pneg %p310
        %p560 = pneg %p307
        %p561 = pneg %p331
        %p562 = pneg %p328
        %p563 = pneg %p352
        %p564 = pneg %p349
        %p565 = pneg %p378
        %p566 = pneg %p375
        %s567 = sand.u32 %s365, 1
        %s568 = scalar_lea.sflag [#allocation4], %s567
        %s569 = sand.u32 %s365, 1
        %s570 = smul.addr %s569, 8
        %s571 = scalar_lea.vmem [#allocation10], %s570
        %p572 = pneg %p404
        %p573 = pneg %p401
        %s574 = sand.u32 %s391, 1
        %s575 = scalar_lea.sflag [#allocation12], %s574
        %s576 = sand.u32 %s391, 1
        %s577 = smul.addr %s576, 32
        %s578 = scalar_lea.vmem [#allocation11], %s577
        %p579 = scmp.lt.s32.totalorder %s37, 1
        %s580 = scalar_select %p579, %s37, 1
        %s581 = smul.addr %s580, 8
        %s582 = scalar_lea.vmem %s0, %s581
        %v584 = vld [vmem:[%s582] sm:$0xff]
        %v585 = vld [vmem:[%s13] sm:$0x1]
        %v586 = vld [vmem:[%s14] sm:$0x1]
        %v587 = vpack.c.bf16 %v584, %v584
        %v588 = vld [vmem:[%s1] sm:$0xf]
        %v589 = vld [vmem:[%s1 + $0x4] sm:$0xf]
        %v590 = vld [vmem:[%s1 + $0x8] sm:$0xf]
        %v591 = vld [vmem:[%s1 + $0xc] sm:$0xf]
        %v592 = vld [vmem:[%s2] sm:$0x1]
        %v594 = vlaneseq
        %v595 = vshrl.u32 %v594, 7
        %v596 = vsub.s32 0, %v595
        %v597 = vrot.slane %v592, %v596
        %v603 = vunpack.c.l.b16 %v588
        %v604 = vunpack.c.l.b16 %v589
        %v605 = vunpack.c.l.b16 %v590
        %v606 = vunpack.c.l.b16 %v591
        %v607 = vpack.c.b16 %v604, %v603
        %v608 = vpack.c.b16 %v606, %v605
        %vm611 = vcmask 261120
        %v613 = vsel %vm611, %v587, 0
        %615 = vmatprep.subr.bf16.mxu0 0
        %616 = vmatpush1.bf16.msra.mxu0 %v607
        %617 = vmatprep.subr.bf16.mxu0 0
        %618 = vmatpush1.bf16.msra.mxu0 %v608
        %619 = vmatprep.subr.bf16.mxu0 0
        %620 = vmatpush1.bf16.msra.mxu0 0
        %621 = vmatprep.subr.bf16.mxu0 0
        %622 = vmatpush1.bf16.msra.mxu0 0
        %623 = vmatprep.subr.bf16.mxu0 0
        %624 = vmatpush1.bf16.msra.mxu0 0
        %625 = vmatprep.subr.bf16.mxu0 0
        %626 = vmatpush1.bf16.msra.mxu0 0
        %627 = vmatprep.subr.bf16.mxu0 0
        %628 = vmatpush1.bf16.msra.mxu0 0
        %629 = vmatprep.subr.bf16.mxu0 0
        %630 = vmatpush1.bf16.msra.mxu0 0
        %631 = vmatprep.subr.bf16.mxu0 0
        %632 = vmatpush1.bf16.msra.mxu0 0
        %633 = vmatprep.subr.bf16.mxu0 0
        %634 = vmatpush1.bf16.msra.mxu0 0
        %635 = vmatprep.subr.bf16.mxu0 0
        %636 = vmatpush1.bf16.msra.mxu0 0
        %637 = vmatprep.subr.bf16.mxu0 0
        %638 = vmatpush1.bf16.msra.mxu0 0
        %639 = vmatprep.subr.bf16.mxu0 0
        %640 = vmatpush1.bf16.msra.mxu0 0
        %641 = vmatprep.subr.bf16.mxu0 0
        %642 = vmatpush1.bf16.msra.mxu0 0
        %643 = vmatprep.subr.bf16.mxu0 0
        %644 = vmatpush1.bf16.msra.mxu0 0
        %645 = vmatprep.subr.bf16.mxu0 0
        %646 = vmatpush1.bf16.msra.mxu0 0
        %647 = vmatprep.mubr.bf16.mxu0 0
        %648 = vmatmul.mubr.bf16.gmra.mrb[0].mxu0 %v613
        %v649 = vpop.f32.mrb[0].mxu0
        %v650 = vadd.f32 %v597, %v649
        %v651 = vpop.f32.mrb[0].mxu0
        %v652 = vpop.f32.mrb[0].mxu0
        %v653 = vpop.f32.mrb[0].mxu0
        %654 = vdwg.mxu0
        %v655 = vld [vmem:[%s3] sm:$0xf]
        %v656 = vld [vmem:[%s3 + $0x4] sm:$0xf]
        %v657 = vld [vmem:[%s3 + $0x8] sm:$0xf]
        %v658 = vld [vmem:[%s3 + $0xc] sm:$0xf]
        %v659 = vld [vmem:[%s4] sm:$0x1]
        %v661 = vlaneseq
        %v662 = vshrl.u32 %v661, 7
        %v663 = vsub.s32 0, %v662
        %v664 = vrot.slane %v659, %v663
        %v670 = vunpack.c.l.b16 %v655
        %v671 = vunpack.c.l.b16 %v656
        %v672 = vunpack.c.l.b16 %v657
        %v673 = vunpack.c.l.b16 %v658
        %v674 = vpack.c.b16 %v671, %v670
        %v675 = vpack.c.b16 %v673, %v672
        %678 = vmatprep.subr.bf16.mxu0 0
        %679 = vmatpush1.bf16.msra.mxu0 %v674
        %680 = vmatprep.subr.bf16.mxu0 0
        %681 = vmatpush1.bf16.msra.mxu0 %v675
        %682 = vmatprep.subr.bf16.mxu0 0
        %683 = vmatpush1.bf16.msra.mxu0 0
        %684 = vmatprep.subr.bf16.mxu0 0
        %685 = vmatpush1.bf16.msra.mxu0 0
        %686 = vmatprep.subr.bf16.mxu0 0
        %687 = vmatpush1.bf16.msra.mxu0 0
        %688 = vmatprep.subr.bf16.mxu0 0
        %689 = vmatpush1.bf16.msra.mxu0 0
        %690 = vmatprep.subr.bf16.mxu0 0
        %691 = vmatpush1.bf16.msra.mxu0 0
        %692 = vmatprep.subr.bf16.mxu0 0
        %693 = vmatpush1.bf16.msra.mxu0 0
        %694 = vmatprep.subr.bf16.mxu0 0
        %695 = vmatpush1.bf16.msra.mxu0 0
        %696 = vmatprep.subr.bf16.mxu0 0
        %697 = vmatpush1.bf16.msra.mxu0 0
        %698 = vmatprep.subr.bf16.mxu0 0
        %699 = vmatpush1.bf16.msra.mxu0 0
        %700 = vmatprep.subr.bf16.mxu0 0
        %701 = vmatpush1.bf16.msra.mxu0 0
        %702 = vmatprep.subr.bf16.mxu0 0
        %703 = vmatpush1.bf16.msra.mxu0 0
        %704 = vmatprep.subr.bf16.mxu0 0
        %705 = vmatpush1.bf16.msra.mxu0 0
        %706 = vmatprep.subr.bf16.mxu0 0
        %707 = vmatpush1.bf16.msra.mxu0 0
        %708 = vmatprep.subr.bf16.mxu0 0
        %709 = vmatpush1.bf16.msra.mxu0 0
        %710 = vmatprep.mubr.bf16.mxu0 0
        %711 = vmatmul.mubr.bf16.gmra.mrb[0].mxu0 %v613
        %v712 = vpop.f32.mrb[0].mxu0
        %v713 = vadd.f32 %v664, %v712
        %v714 = vpop.f32.mrb[0].mxu0
        %v715 = vpop.f32.mrb[0].mxu0
        %v716 = vpop.f32.mrb[0].mxu0
        %717 = vdwg.mxu0
        %v718 = vld [vmem:[#allocation2] sm:$0xf]
        %v719 = vld [vmem:[#allocation2 + $0x4] sm:$0xf]
        %v720 = vld [vmem:[#allocation2 + $0x8] sm:$0xf]
        %v721 = vld [vmem:[#allocation2 + $0xc] sm:$0xf]
        %v722 = vld [vmem:[#allocation5] sm:$0x1]
        %v724 = vlaneseq
        %v725 = vshrl.u32 %v724, 7
        %v726 = vsub.s32 0, %v725
        %v727 = vrot.slane %v722, %v726
        %v733 = vunpack.c.l.b16 %v718
        %v734 = vunpack.c.l.b16 %v719
        %v735 = vunpack.c.l.b16 %v720
        %v736 = vunpack.c.l.b16 %v721
        %v737 = vpack.c.b16 %v734, %v733
        %v738 = vpack.c.b16 %v736, %v735
        %741 = vmatprep.subr.bf16.mxu0 0
        %742 = vmatpush1.bf16.msra.mxu0 %v737
        %743 = vmatprep.subr.bf16.mxu0 0
        %744 = vmatpush1.bf16.msra.mxu0 %v738
        %745 = vmatprep.subr.bf16.mxu0 0
        %746 = vmatpush1.bf16.msra.mxu0 0
        %747 = vmatprep.subr.bf16.mxu0 0
        %748 = vmatpush1.bf16.msra.mxu0 0
        %749 = vmatprep.subr.bf16.mxu0 0
        %750 = vmatpush1.bf16.msra.mxu0 0
        %751 = vmatprep.subr.bf16.mxu0 0
        %752 = vmatpush1.bf16.msra.mxu0 0
        %753 = vmatprep.subr.bf16.mxu0 0
        %754 = vmatpush1.bf16.msra.mxu0 0
        %755 = vmatprep.subr.bf16.mxu0 0
        %756 = vmatpush1.bf16.msra.mxu0 0
        %757 = vmatprep.subr.bf16.mxu0 0
        %758 = vmatpush1.bf16.msra.mxu0 0
        %759 = vmatprep.subr.bf16.mxu0 0
        %760 = vmatpush1.bf16.msra.mxu0 0
        %761 = vmatprep.subr.bf16.mxu0 0
        %762 = vmatpush1.bf16.msra.mxu0 0
        %763 = vmatprep.subr.bf16.mxu0 0
        %764 = vmatpush1.bf16.msra.mxu0 0
        %765 = vmatprep.subr.bf16.mxu0 0
        %766 = vmatpush1.bf16.msra.mxu0 0
        %767 = vmatprep.subr.bf16.mxu0 0
        %768 = vmatpush1.bf16.msra.mxu0 0
        %769 = vmatprep.subr.bf16.mxu0 0
        %770 = vmatpush1.bf16.msra.mxu0 0
        %771 = vmatprep.subr.bf16.mxu0 0
        %772 = vmatpush1.bf16.msra.mxu0 0
        %773 = vmatprep.mubr.bf16.mxu0 0
        %774 = vmatmul.mubr.bf16.gmra.mrb[0].mxu0 %v613
        %v775 = vpop.f32.mrb[0].mxu0
        %v776 = vadd.f32 %v727, %v775
        %v777 = vpop.f32.mrb[0].mxu0
        %v778 = vpop.f32.mrb[0].mxu0
        %v779 = vpop.f32.mrb[0].mxu0
        %780 = vdwg.mxu0
        %v781 = vmul.f32 %v650, 0.35355338
        %v782 = vpack.c.bf16 %v781, %v781
        %784 = vrot.lane.b32.xlu0 %v782, 120
        %v785 = vpop.permute.xlu0 %784
        %786 = vrot.lane.b32.xlu0 %v782, 112
        %v787 = vpop.permute.xlu0 %786
        %788 = vrot.lane.b32.xlu0 %v782, 104
        %v789 = vpop.permute.xlu0 %788
        %v791 = vunpack.c.l.s4 1983009808
        %v792 = vunpack.c.0.s8 %v791
        %v793 = vlaneseq
        %v794 = vshrl.u32 %v793, 7
        %v795 = vsub.s32 %v792, %v794
        %v796 = vrot.slane %v782, %v795
        %v799 = vunpack.c.l.s4 1983009808
        %v800 = vunpack.c.0.s8 %v799
        %v801 = vlaneseq
        %v802 = vshrl.u32 %v801, 7
        %v803 = vsub.s32 %v800, %v802
        %v804 = vrot.slane %v787, %v803
        %v805 = vcombine.low %v796, %v804
        %v806 = vcombine.high %v796, %v804
        %v808 = vunpack.c.l.s4 1934713408
        %v809 = vunpack.c.0.s8 %v808
        %v810 = vlaneseq
        %v811 = vshrl.u32 %v810, 7
        %v812 = vsub.s32 %v809, %v811
        %v813 = vrot.slane %v805, %v812
        %v815 = vunpack.c.l.s4 1934713408
        %v816 = vunpack.c.0.s8 %v815
        %v817 = vlaneseq
        %v818 = vshrl.u32 %v817, 7
        %v819 = vsub.s32 %v816, %v818
        %v820 = vrot.slane %v806, %v819
        %v821 = vcombine.high %v813, 0
        %v822 = vcombine.high %v820, 0
        %v825 = vunpack.c.l.s4 1983009808
        %v826 = vunpack.c.0.s8 %v825
        %v827 = vlaneseq
        %v828 = vshrl.u32 %v827, 7
        %v829 = vsub.s32 %v826, %v828
        %v830 = vrot.slane %v785, %v829
        %v833 = vunpack.c.l.s4 1983009808
        %v834 = vunpack.c.0.s8 %v833
        %v835 = vlaneseq
        %v836 = vshrl.u32 %v835, 7
        %v837 = vsub.s32 %v834, %v836
        %v838 = vrot.slane %v789, %v837
        %v839 = vcombine.low %v830, %v838
        %v840 = vcombine.high %v830, %v838
        %v842 = vunpack.c.l.s4 1934713408
        %v843 = vunpack.c.0.s8 %v842
        %v844 = vlaneseq
        %v845 = vshrl.u32 %v844, 7
        %v846 = vsub.s32 %v843, %v845
        %v847 = vrot.slane %v839, %v846
        %v849 = vunpack.c.l.s4 1934713408
        %v850 = vunpack.c.0.s8 %v849
        %v851 = vlaneseq
        %v852 = vshrl.u32 %v851, 7
        %v853 = vsub.s32 %v850, %v852
        %v854 = vrot.slane %v840, %v853
        %v855 = vcombine.high %v847, 0
        %v856 = vcombine.high %v854, 0
        %v859 = vpack.i.b16 %v847, %v813
        %v861 = vshrl.u32 %v813, 16
        %v862 = vshrl.u32 %v847, 16
        %v863 = vpack.i.b16 %v862, %v861
        %v867 = vpack.i.b16 %v855, %v821
        %v869 = vshrl.u32 %v821, 16
        %v870 = vshrl.u32 %v855, 16
        %v871 = vpack.i.b16 %v870, %v869
        %v875 = vpack.i.b16 %v854, %v820
        %v877 = vshrl.u32 %v820, 16
        %v878 = vshrl.u32 %v854, 16
        %v879 = vpack.i.b16 %v878, %v877
        %v883 = vpack.i.b16 %v856, %v822
        %v885 = vshrl.u32 %v822, 16
        %v886 = vshrl.u32 %v856, 16
        %v887 = vpack.i.b16 %v886, %v885
        %v889 = vcombine.low %v859, %v875
        %v891 = vunpack.c.l.s4 1983009808
        %v892 = vunpack.c.0.s8 %v891
        %v893 = vlaneseq
        %v894 = vshrl.u32 %v893, 7
        %v895 = vsub.s32 %v892, %v894
        %v896 = vrot.slane %v889, %v895
        %v897 = vcombine.low %v867, %v883
        %v899 = vunpack.c.l.s4 1983009808
        %v900 = vunpack.c.0.s8 %v899
        %v901 = vlaneseq
        %v902 = vshrl.u32 %v901, 7
        %v903 = vsub.s32 %v900, %v902
        %v904 = vrot.slane %v897, %v903
        %v905 = vcombine.low %v896, %v904
        %v907 = vunpack.c.l.s4 1934713408
        %v908 = vunpack.c.0.s8 %v907
        %v909 = vlaneseq
        %v910 = vshrl.u32 %v909, 7
        %v911 = vsub.s32 %v908, %v910
        %v912 = vrot.slane %v905, %v911
        %v913 = vcombine.high %v912, 0
        %v914 = vcombine.low %v863, %v879
        %v916 = vunpack.c.l.s4 1983009808
        %v917 = vunpack.c.0.s8 %v916
        %v918 = vlaneseq
        %v919 = vshrl.u32 %v918, 7
        %v920 = vsub.s32 %v917, %v919
        %v921 = vrot.slane %v914, %v920
        %v922 = vcombine.low %v871, %v887
        %v924 = vunpack.c.l.s4 1983009808
        %v925 = vunpack.c.0.s8 %v924
        %v926 = vlaneseq
        %v927 = vshrl.u32 %v926, 7
        %v928 = vsub.s32 %v925, %v927
        %v929 = vrot.slane %v922, %v928
        %v930 = vcombine.low %v921, %v929
        %v932 = vunpack.c.l.s4 1934713408
        %v933 = vunpack.c.0.s8 %v932
        %v934 = vlaneseq
        %v935 = vshrl.u32 %v934, 7
        %v936 = vsub.s32 %v933, %v935
        %v937 = vrot.slane %v930, %v936
        %v938 = vcombine.high %v937, 0
        %v941 = vpack.i.b16 %v937, %v912
        %v942 = vshrl.u32 %v912, 16
        %v943 = vshrl.u32 %v937, 16
        %v944 = vpack.i.b16 %v943, %v942
        %v947 = vpack.i.b16 %v938, %v913
        %v948 = vshrl.u32 %v913, 16
        %v949 = vshrl.u32 %v938, 16
        %v950 = vpack.i.b16 %v949, %v948
        %v951 = vpack.c.bf16 %v713, %v713
        %953 = vrot.lane.b32.xlu0 %v951, 120
        %v954 = vpop.permute.xlu0 %953
        %955 = vrot.lane.b32.xlu0 %v951, 112
        %v956 = vpop.permute.xlu0 %955
        %957 = vrot.lane.b32.xlu0 %v951, 104
        %v958 = vpop.permute.xlu0 %957
        %v960 = vunpack.c.l.s4 1983009808
        %v961 = vunpack.c.0.s8 %v960
        %v962 = vlaneseq
        %v963 = vshrl.u32 %v962, 7
        %v964 = vsub.s32 %v961, %v963
        %v965 = vrot.slane %v951, %v964
        %v968 = vunpack.c.l.s4 1983009808
        %v969 = vunpack.c.0.s8 %v968
        %v970 = vlaneseq
        %v971 = vshrl.u32 %v970, 7
        %v972 = vsub.s32 %v969, %v971
        %v973 = vrot.slane %v956, %v972
        %v974 = vcombine.low %v965, %v973
        %v975 = vcombine.high %v965, %v973
        %v977 = vunpack.c.l.s4 1934713408
        %v978 = vunpack.c.0.s8 %v977
        %v979 = vlaneseq
        %v980 = vshrl.u32 %v979, 7
        %v981 = vsub.s32 %v978, %v980
        %v982 = vrot.slane %v974, %v981
        %v984 = vunpack.c.l.s4 1934713408
        %v985 = vunpack.c.0.s8 %v984
        %v986 = vlaneseq
        %v987 = vshrl.u32 %v986, 7
        %v988 = vsub.s32 %v985, %v987
        %v989 = vrot.slane %v975, %v988
        %v990 = vcombine.high %v982, 0
        %v991 = vcombine.high %v989, 0
        %v994 = vunpack.c.l.s4 1983009808
        %v995 = vunpack.c.0.s8 %v994
        %v996 = vlaneseq
        %v997 = vshrl.u32 %v996, 7
        %v998 = vsub.s32 %v995, %v997
        %v999 = vrot.slane %v954, %v998
        %v1002 = vunpack.c.l.s4 1983009808
        %v1003 = vunpack.c.0.s8 %v1002
        %v1004 = vlaneseq
        %v1005 = vshrl.u32 %v1004, 7
        %v1006 = vsub.s32 %v1003, %v1005
        %v1007 = vrot.slane %v958, %v1006
        %v1008 = vcombine.low %v999, %v1007
        %v1009 = vcombine.high %v999, %v1007
        %v1011 = vunpack.c.l.s4 1934713408
        %v1012 = vunpack.c.0.s8 %v1011
        %v1013 = vlaneseq
        %v1014 = vshrl.u32 %v1013, 7
        %v1015 = vsub.s32 %v1012, %v1014
        %v1016 = vrot.slane %v1008, %v1015
        %v1018 = vunpack.c.l.s4 1934713408
        %v1019 = vunpack.c.0.s8 %v1018
        %v1020 = vlaneseq
        %v1021 = vshrl.u32 %v1020, 7
        %v1022 = vsub.s32 %v1019, %v1021
        %v1023 = vrot.slane %v1009, %v1022
        %v1024 = vcombine.high %v1016, 0
        %v1025 = vcombine.high %v1023, 0
        %v1028 = vpack.i.b16 %v1016, %v982
        %v1030 = vshrl.u32 %v982, 16
        %v1031 = vshrl.u32 %v1016, 16
        %v1032 = vpack.i.b16 %v1031, %v1030
        %v1036 = vpack.i.b16 %v1024, %v990
        %v1038 = vshrl.u32 %v990, 16
        %v1039 = vshrl.u32 %v1024, 16
        %v1040 = vpack.i.b16 %v1039, %v1038
        %v1044 = vpack.i.b16 %v1023, %v989
        %v1046 = vshrl.u32 %v989, 16
        %v1047 = vshrl.u32 %v1023, 16
        %v1048 = vpack.i.b16 %v1047, %v1046
        %v1052 = vpack.i.b16 %v1025, %v991
        %v1054 = vshrl.u32 %v991, 16
        %v1055 = vshrl.u32 %v1025, 16
        %v1056 = vpack.i.b16 %v1055, %v1054
        %v1058 = vcombine.low %v1028, %v1044
        %v1060 = vunpack.c.l.s4 1983009808
        %v1061 = vunpack.c.0.s8 %v1060
        %v1062 = vlaneseq
        %v1063 = vshrl.u32 %v1062, 7
        %v1064 = vsub.s32 %v1061, %v1063
        %v1065 = vrot.slane %v1058, %v1064
        %v1066 = vcombine.low %v1036, %v1052
        %v1068 = vunpack.c.l.s4 1983009808
        %v1069 = vunpack.c.0.s8 %v1068
        %v1070 = vlaneseq
        %v1071 = vshrl.u32 %v1070, 7
        %v1072 = vsub.s32 %v1069, %v1071
        %v1073 = vrot.slane %v1066, %v1072
        %v1074 = vcombine.low %v1065, %v1073
        %v1076 = vunpack.c.l.s4 1934713408
        %v1077 = vunpack.c.0.s8 %v1076
        %v1078 = vlaneseq
        %v1079 = vshrl.u32 %v1078, 7
        %v1080 = vsub.s32 %v1077, %v1079
        %v1081 = vrot.slane %v1074, %v1080
        %v1082 = vcombine.high %v1081, 0
        %v1083 = vcombine.low %v1032, %v1048
        %v1085 = vunpack.c.l.s4 1983009808
        %v1086 = vunpack.c.0.s8 %v1085
        %v1087 = vlaneseq
        %v1088 = vshrl.u32 %v1087, 7
        %v1089 = vsub.s32 %v1086, %v1088
        %v1090 = vrot.slane %v1083, %v1089
        %v1091 = vcombine.low %v1040, %v1056
        %v1093 = vunpack.c.l.s4 1983009808
        %v1094 = vunpack.c.0.s8 %v1093
        %v1095 = vlaneseq
        %v1096 = vshrl.u32 %v1095, 7
        %v1097 = vsub.s32 %v1094, %v1096
        %v1098 = vrot.slane %v1091, %v1097
        %v1099 = vcombine.low %v1090, %v1098
        %v1101 = vunpack.c.l.s4 1934713408
        %v1102 = vunpack.c.0.s8 %v1101
        %v1103 = vlaneseq
        %v1104 = vshrl.u32 %v1103, 7
        %v1105 = vsub.s32 %v1102, %v1104
        %v1106 = vrot.slane %v1099, %v1105
        %v1107 = vcombine.high %v1106, 0
        %v1110 = vpack.i.b16 %v1106, %v1081
        %v1111 = vshrl.u32 %v1081, 16
        %v1112 = vshrl.u32 %v1106, 16
        %v1113 = vpack.i.b16 %v1112, %v1111
        %v1116 = vpack.i.b16 %v1107, %v1082
        %v1117 = vshrl.u32 %v1082, 16
        %v1118 = vshrl.u32 %v1107, 16
        %v1119 = vpack.i.b16 %v1118, %v1117
        %v1120 = vpack.c.bf16 %v776, %v776
        %1122 = vrot.lane.b32.xlu0 %v1120, 120
        %v1123 = vpop.permute.xlu0 %1122
        %1124 = vrot.lane.b32.xlu0 %v1120, 112
        %v1125 = vpop.permute.xlu0 %1124
        %1126 = vrot.lane.b32.xlu0 %v1120, 104
        %v1127 = vpop.permute.xlu0 %1126
        %v1129 = vunpack.c.l.s4 1983009808
        %v1130 = vunpack.c.0.s8 %v1129
        %v1131 = vlaneseq
        %v1132 = vshrl.u32 %v1131, 7
        %v1133 = vsub.s32 %v1130, %v1132
        %v1134 = vrot.slane %v1120, %v1133
        %v1137 = vunpack.c.l.s4 1983009808
        %v1138 = vunpack.c.0.s8 %v1137
        %v1139 = vlaneseq
        %v1140 = vshrl.u32 %v1139, 7
        %v1141 = vsub.s32 %v1138, %v1140
        %v1142 = vrot.slane %v1125, %v1141
        %v1143 = vcombine.low %v1134, %v1142
        %v1144 = vcombine.high %v1134, %v1142
        %v1146 = vunpack.c.l.s4 1934713408
        %v1147 = vunpack.c.0.s8 %v1146
        %v1148 = vlaneseq
        %v1149 = vshrl.u32 %v1148, 7
        %v1150 = vsub.s32 %v1147, %v1149
        %v1151 = vrot.slane %v1143, %v1150
        %v1153 = vunpack.c.l.s4 1934713408
        %v1154 = vunpack.c.0.s8 %v1153
        %v1155 = vlaneseq
        %v1156 = vshrl.u32 %v1155, 7
        %v1157 = vsub.s32 %v1154, %v1156
        %v1158 = vrot.slane %v1144, %v1157
        %v1159 = vcombine.high %v1151, 0
        %v1160 = vcombine.high %v1158, 0
        %v1163 = vunpack.c.l.s4 1983009808
        %v1164 = vunpack.c.0.s8 %v1163
        %v1165 = vlaneseq
        %v1166 = vshrl.u32 %v1165, 7
        %v1167 = vsub.s32 %v1164, %v1166
        %v1168 = vrot.slane %v1123, %v1167
        %v1171 = vunpack.c.l.s4 1983009808
        %v1172 = vunpack.c.0.s8 %v1171
        %v1173 = vlaneseq
        %v1174 = vshrl.u32 %v1173, 7
        %v1175 = vsub.s32 %v1172, %v1174
        %v1176 = vrot.slane %v1127, %v1175
        %v1177 = vcombine.low %v1168, %v1176
        %v1178 = vcombine.high %v1168, %v1176
        %v1180 = vunpack.c.l.s4 1934713408
        %v1181 = vunpack.c.0.s8 %v1180
        %v1182 = vlaneseq
        %v1183 = vshrl.u32 %v1182, 7
        %v1184 = vsub.s32 %v1181, %v1183
        %v1185 = vrot.slane %v1177, %v1184
        %v1187 = vunpack.c.l.s4 1934713408
        %v1188 = vunpack.c.0.s8 %v1187
        %v1189 = vlaneseq
        %v1190 = vshrl.u32 %v1189, 7
        %v1191 = vsub.s32 %v1188, %v1190
        %v1192 = vrot.slane %v1178, %v1191
        %v1193 = vcombine.high %v1185, 0
        %v1194 = vcombine.high %v1192, 0
        %v1197 = vpack.i.b16 %v1185, %v1151
        %v1199 = vshrl.u32 %v1151, 16
        %v1200 = vshrl.u32 %v1185, 16
        %v1201 = vpack.i.b16 %v1200, %v1199
        %v1205 = vpack.i.b16 %v1193, %v1159
        %v1207 = vshrl.u32 %v1159, 16
        %v1208 = vshrl.u32 %v1193, 16
        %v1209 = vpack.i.b16 %v1208, %v1207
        %v1213 = vpack.i.b16 %v1192, %v1158
        %v1215 = vshrl.u32 %v1158, 16
        %v1216 = vshrl.u32 %v1192, 16
        %v1217 = vpack.i.b16 %v1216, %v1215
        %v1221 = vpack.i.b16 %v1194, %v1160
        %v1223 = vshrl.u32 %v1160, 16
        %v1224 = vshrl.u32 %v1194, 16
        %v1225 = vpack.i.b16 %v1224, %v1223
        %v1227 = vcombine.low %v1197, %v1213
        %v1229 = vunpack.c.l.s4 1983009808
        %v1230 = vunpack.c.0.s8 %v1229
        %v1231 = vlaneseq
        %v1232 = vshrl.u32 %v1231, 7
        %v1233 = vsub.s32 %v1230, %v1232
        %v1234 = vrot.slane %v1227, %v1233
        %v1235 = vcombine.low %v1205, %v1221
        %v1237 = vunpack.c.l.s4 1983009808
        %v1238 = vunpack.c.0.s8 %v1237
        %v1239 = vlaneseq
        %v1240 = vshrl.u32 %v1239, 7
        %v1241 = vsub.s32 %v1238, %v1240
        %v1242 = vrot.slane %v1235, %v1241
        %v1243 = vcombine.low %v1234, %v1242
        %v1245 = vunpack.c.l.s4 1934713408
        %v1246 = vunpack.c.0.s8 %v1245
        %v1247 = vlaneseq
        %v1248 = vshrl.u32 %v1247, 7
        %v1249 = vsub.s32 %v1246, %v1248
        %v1250 = vrot.slane %v1243, %v1249
        %v1251 = vcombine.high %v1250, 0
        %v1252 = vcombine.low %v1201, %v1217
        %v1254 = vunpack.c.l.s4 1983009808
        %v1255 = vunpack.c.0.s8 %v1254
        %v1256 = vlaneseq
        %v1257 = vshrl.u32 %v1256, 7
        %v1258 = vsub.s32 %v1255, %v1257
        %v1259 = vrot.slane %v1252, %v1258
        %v1260 = vcombine.low %v1209, %v1225
        %v1262 = vunpack.c.l.s4 1983009808
        %v1263 = vunpack.c.0.s8 %v1262
        %v1264 = vlaneseq
        %v1265 = vshrl.u32 %v1264, 7
        %v1266 = vsub.s32 %v1263, %v1265
        %v1267 = vrot.slane %v1260, %v1266
        %v1268 = vcombine.low %v1259, %v1267
        %v1270 = vunpack.c.l.s4 1934713408
        %v1271 = vunpack.c.0.s8 %v1270
        %v1272 = vlaneseq
        %v1273 = vshrl.u32 %v1272, 7
        %v1274 = vsub.s32 %v1271, %v1273
        %v1275 = vrot.slane %v1268, %v1274
        %v1276 = vcombine.high %v1275, 0
        %v1279 = vpack.i.b16 %v1275, %v1250
        %v1280 = vshrl.u32 %v1250, 16
        %v1281 = vshrl.u32 %v1275, 16
        %v1282 = vpack.i.b16 %v1281, %v1280
        %v1285 = vpack.i.b16 %v1276, %v1251
        %v1286 = vshrl.u32 %v1251, 16
        %v1287 = vshrl.u32 %v1276, 16
        %v1288 = vpack.i.b16 %v1287, %v1286
        %vm1289 = vcmask 64512
        %v1291 = vsel %vm1289, %v941, 0
        %v1294 = vsel %vm1289, %v1110, 0
        %1296 = vmatprep.subr.bf16.mxu0 0
        %1297 = vmatpush1.bf16.xpose.msra.mxu0 %v1294
        %1298 = vmatprep.subr.bf16.mxu0 0
        %1299 = vmatpush1.bf16.xpose.msra.mxu0 0
        %1300 = vmatprep.subr.bf16.mxu0 0
        %1301 = vmatpush1.bf16.xpose.msra.mxu0 0
        %1302 = vmatprep.subr.bf16.mxu0 0
        %1303 = vmatpush1.bf16.xpose.msra.mxu0 0
        %1304 = vmatprep.subr.bf16.mxu0 0
        %1305 = vmatpush1.bf16.xpose.msra.mxu0 0
        %1306 = vmatprep.subr.bf16.mxu0 0
        %1307 = vmatpush1.bf16.xpose.msra.mxu0 0
        %1308 = vmatprep.subr.bf16.mxu0 0
        %1309 = vmatpush1.bf16.xpose.msra.mxu0 0
        %1310 = vmatprep.subr.bf16.mxu0 0
        %1311 = vmatpush1.bf16.xpose.msra.mxu0 0
        %1312 = vmatprep.subr.bf16.mxu0 0
        %1313 = vmatpush1.bf16.xpose.msra.mxu0 0
        %1314 = vmatprep.subr.bf16.mxu0 0
        %1315 = vmatpush1.bf16.xpose.msra.mxu0 0
        %1316 = vmatprep.subr.bf16.mxu0 0
        %1317 = vmatpush1.bf16.xpose.msra.mxu0 0
        %1318 = vmatprep.subr.bf16.mxu0 0
        %1319 = vmatpush1.bf16.xpose.msra.mxu0 0
        %1320 = vmatprep.subr.bf16.mxu0 0
        %1321 = vmatpush1.bf16.xpose.msra.mxu0 0
        %1322 = vmatprep.subr.bf16.mxu0 0
        %1323 = vmatpush1.bf16.xpose.msra.mxu0 0
        %1324 = vmatprep.subr.bf16.mxu0 0
        %1325 = vmatpush1.bf16.xpose.msra.mxu0 0
        %1326 = vmatprep.subr.bf16.mxu0 0
        %1327 = vmatpush1.bf16.xpose.msra.mxu0 0
        %1328 = vmatprep.mubr.bf16.mxu0 0
        %1329 = vmatmul.mubr.bf16.gmra.mrb[0].mxu0 %v1291
        %v1330 = vpop.f32.mrb[0].mxu0
        %v1331 = vadd.f32 0.0, %v1330
        %v1332 = vpop.f32.mrb[0].mxu0
        %v1333 = vpop.f32.mrb[0].mxu0
        %v1334 = vpop.f32.mrb[0].mxu0
        %1335 = vdwg.mxu0
        %v1337 = vsel %vm1289, %v944, 0
        %v1340 = vsel %vm1289, %v1113, 0
        %1342 = vmatprep.subr.bf16.mxu0 0
        %1343 = vmatpush1.bf16.xpose.msra.mxu0 %v1340
        %1344 = vmatprep.subr.bf16.mxu0 0
        %1345 = vmatpush1.bf16.xpose.msra.mxu0 0
        %1346 = vmatprep.subr.bf16.mxu0 0
        %1347 = vmatpush1.bf16.xpose.msra.mxu0 0
        %1348 = vmatprep.subr.bf16.mxu0 0
        %1349 = vmatpush1.bf16.xpose.msra.mxu0 0
        %1350 = vmatprep.subr.bf16.mxu0 0
        %1351 = vmatpush1.bf16.xpose.msra.mxu0 0
        %1352 = vmatprep.subr.bf16.mxu0 0
        %1353 = vmatpush1.bf16.xpose.msra.mxu0 0
        %1354 = vmatprep.subr.bf16.mxu0 0
        %1355 = vmatpush1.bf16.xpose.msra.mxu0 0
        %1356 = vmatprep.subr.bf16.mxu0 0
        %1357 = vmatpush1.bf16.xpose.msra.mxu0 0
        %1358 = vmatprep.subr.bf16.mxu0 0
        %1359 = vmatpush1.bf16.xpose.msra.mxu0 0
        %1360 = vmatprep.subr.bf16.mxu0 0
        %1361 = vmatpush1.bf16.xpose.msra.mxu0 0
        %1362 = vmatprep.subr.bf16.mxu0 0
        %1363 = vmatpush1.bf16.xpose.msra.mxu0 0
        %1364 = vmatprep.subr.bf16.mxu0 0
        %1365 = vmatpush1.bf16.xpose.msra.mxu0 0
        %1366 = vmatprep.subr.bf16.mxu0 0
        %1367 = vmatpush1.bf16.xpose.msra.mxu0 0
        %1368 = vmatprep.subr.bf16.mxu0 0
        %1369 = vmatpush1.bf16.xpose.msra.mxu0 0
        %1370 = vmatprep.subr.bf16.mxu0 0
        %1371 = vmatpush1.bf16.xpose.msra.mxu0 0
        %1372 = vmatprep.subr.bf16.mxu0 0
        %1373 = vmatpush1.bf16.xpose.msra.mxu0 0
        %1374 = vmatprep.mubr.bf16.mxu0 0
        %1375 = vmatmul.mubr.bf16.gmra.mrb[0].mxu0 %v1337
        %v1376 = vpop.f32.mrb[0].mxu0
        %v1377 = vadd.f32 0.0, %v1376
        %v1378 = vpop.f32.mrb[0].mxu0
        %v1379 = vpop.f32.mrb[0].mxu0
        %v1380 = vpop.f32.mrb[0].mxu0
        %1381 = vdwg.mxu0
        %v1383 = vsel %vm1289, %v947, 0
        %v1386 = vsel %vm1289, %v1116, 0
        %1388 = vmatprep.subr.bf16.mxu0 0
        %1389 = vmatpush1.bf16.xpose.msra.mxu0 %v1386
        %1390 = vmatprep.subr.bf16.mxu0 0
        %1391 = vmatpush1.bf16.xpose.msra.mxu0 0
        %1392 = vmatprep.subr.bf16.mxu0 0
        %1393 = vmatpush1.bf16.xpose.msra.mxu0 0
        %1394 = vmatprep.subr.bf16.mxu0 0
        %1395 = vmatpush1.bf16.xpose.msra.mxu0 0
        %1396 = vmatprep.subr.bf16.mxu0 0
        %1397 = vmatpush1.bf16.xpose.msra.mxu0 0
        %1398 = vmatprep.subr.bf16.mxu0 0
        %1399 = vmatpush1.bf16.xpose.msra.mxu0 0
        %1400 = vmatprep.subr.bf16.mxu0 0
        %1401 = vmatpush1.bf16.xpose.msra.mxu0 0
        %1402 = vmatprep.subr.bf16.mxu0 0
        %1403 = vmatpush1.bf16.xpose.msra.mxu0 0
        %1404 = vmatprep.subr.bf16.mxu0 0
        %1405 = vmatpush1.bf16.xpose.msra.mxu0 0
        %1406 = vmatprep.subr.bf16.mxu0 0
        %1407 = vmatpush1.bf16.xpose.msra.mxu0 0
        %1408 = vmatprep.subr.bf16.mxu0 0
        %1409 = vmatpush1.bf16.xpose.msra.mxu0 0
        %1410 = vmatprep.subr.bf16.mxu0 0
        %1411 = vmatpush1.bf16.xpose.msra.mxu0 0
        %1412 = vmatprep.subr.bf16.mxu0 0
        %1413 = vmatpush1.bf16.xpose.msra.mxu0 0
        %1414 = vmatprep.subr.bf16.mxu0 0
        %1415 = vmatpush1.bf16.xpose.msra.mxu0 0
        %1416 = vmatprep.subr.bf16.mxu0 0
        %1417 = vmatpush1.bf16.xpose.msra.mxu0 0
        %1418 = vmatprep.subr.bf16.mxu0 0
        %1419 = vmatpush1.bf16.xpose.msra.mxu0 0
        %1420 = vmatprep.mubr.bf16.mxu0 0
        %1421 = vmatmul.mubr.bf16.gmra.mrb[0].mxu0 %v1383
        %v1422 = vpop.f32.mrb[0].mxu0
        %v1423 = vadd.f32 0.0, %v1422
        %v1424 = vpop.f32.mrb[0].mxu0
        %v1425 = vpop.f32.mrb[0].mxu0
        %v1426 = vpop.f32.mrb[0].mxu0
        %1427 = vdwg.mxu0
        %v1429 = vsel %vm1289, %v950, 0
        %v1432 = vsel %vm1289, %v1119, 0
        %1434 = vmatprep.subr.bf16.mxu0 0
        %1435 = vmatpush1.bf16.xpose.msra.mxu0 %v1432
        %1436 = vmatprep.subr.bf16.mxu0 0
        %1437 = vmatpush1.bf16.xpose.msra.mxu0 0
        %1438 = vmatprep.subr.bf16.mxu0 0
        %1439 = vmatpush1.bf16.xpose.msra.mxu0 0
        %1440 = vmatprep.subr.bf16.mxu0 0
        %1441 = vmatpush1.bf16.xpose.msra.mxu0 0
        %1442 = vmatprep.subr.bf16.mxu0 0
        %1443 = vmatpush1.bf16.xpose.msra.mxu0 0
        %1444 = vmatprep.subr.bf16.mxu0 0
        %1445 = vmatpush1.bf16.xpose.msra.mxu0 0
        %1446 = vmatprep.subr.bf16.mxu0 0
        %1447 = vmatpush1.bf16.xpose.msra.mxu0 0
        %1448 = vmatprep.subr.bf16.mxu0 0
        %1449 = vmatpush1.bf16.xpose.msra.mxu0 0
        %1450 = vmatprep.subr.bf16.mxu0 0
        %1451 = vmatpush1.bf16.xpose.msra.mxu0 0
        %1452 = vmatprep.subr.bf16.mxu0 0
        %1453 = vmatpush1.bf16.xpose.msra.mxu0 0
        %1454 = vmatprep.subr.bf16.mxu0 0
        %1455 = vmatpush1.bf16.xpose.msra.mxu0 0
        %1456 = vmatprep.subr.bf16.mxu0 0
        %1457 = vmatpush1.bf16.xpose.msra.mxu0 0
        %1458 = vmatprep.subr.bf16.mxu0 0
        %1459 = vmatpush1.bf16.xpose.msra.mxu0 0
        %1460 = vmatprep.subr.bf16.mxu0 0
        %1461 = vmatpush1.bf16.xpose.msra.mxu0 0
        %1462 = vmatprep.subr.bf16.mxu0 0
        %1463 = vmatpush1.bf16.xpose.msra.mxu0 0
        %1464 = vmatprep.subr.bf16.mxu0 0
        %1465 = vmatpush1.bf16.xpose.msra.mxu0 0
        %1466 = vmatprep.mubr.bf16.mxu0 0
        %1467 = vmatmul.mubr.bf16.gmra.mrb[0].mxu0 %v1429
        %v1468 = vpop.f32.mrb[0].mxu0
        %v1469 = vadd.f32 0.0, %v1468
        %v1470 = vpop.f32.mrb[0].mxu0
        %v1471 = vpop.f32.mrb[0].mxu0
        %v1472 = vpop.f32.mrb[0].mxu0
        %1473 = vdwg.mxu0
        %v1474 = vsel %vm1289, %v1331, -inf
        %1475 = vmax.xlane.f32.xlu0 %v1474
        %v1476 = vpop.xlane.xlu0 %1475
        %v1477 = vsel %vm1289, %v1377, -inf
        %1478 = vmax.xlane.f32.xlu0 %v1477
        %v1479 = vpop.xlane.xlu0 %1478
        %v1480 = vsel %vm1289, %v1423, -inf
        %1481 = vmax.xlane.f32.xlu0 %v1480
        %v1482 = vpop.xlane.xlu0 %1481
        %v1483 = vsel %vm1289, %v1469, -inf
        %1484 = vmax.xlane.f32.xlu0 %v1483
        %v1485 = vpop.xlane.xlu0 %1484
        %v1486 = vsub.f32 %v1331, %v1476
        %v1487 = vsub.f32 %v1377, %v1479
        %v1488 = vsub.f32 %v1423, %v1482
        %v1489 = vsub.f32 %v1469, %v1485
        %v1490 = vmul.f32 %v1486, 1.442695
        %v1491 = vpow.pop %v1490
        %v1492 = vmul.f32 %v1487, 1.442695
        %v1493 = vpow.pop %v1492
        %v1494 = vmul.f32 %v1488, 1.442695
        %v1495 = vpow.pop %v1494
        %v1496 = vmul.f32 %v1489, 1.442695
        %v1497 = vpow.pop %v1496
        %v1498 = vsel %vm1289, %v1491, 0.0
        %1499 = vadd.xlane.f32.xlu0 %v1498
        %v1500 = vpop.xlane.xlu0 %1499
        %v1501 = vsel %vm1289, %v1493, 0.0
        %1502 = vadd.xlane.f32.xlu0 %v1501
        %v1503 = vpop.xlane.xlu0 %1502
        %v1504 = vsel %vm1289, %v1495, 0.0
        %1505 = vadd.xlane.f32.xlu0 %v1504
        %v1506 = vpop.xlane.xlu0 %1505
        %v1507 = vsel %vm1289, %v1497, 0.0
        %1508 = vadd.xlane.f32.xlu0 %v1507
        %v1509 = vpop.xlane.xlu0 %1508
        %v1510 = vrcp.pop %v1500
        %v1511 = vrcp.pop %v1503
        %v1512 = vrcp.pop %v1506
        %v1513 = vrcp.pop %v1509
        %v1514 = vmul.f32 %v1491, %v1510
        %v1515 = vmul.f32 %v1493, %v1511
        %v1516 = vmul.f32 %v1495, %v1512
        %v1517 = vmul.f32 %v1497, %v1513
        %1518 = vst.msk [vmem:[%s578] sm:$0xff] %vm1289, %v1514
        %1519 = vst.msk [vmem:[%s578 + $0x8] sm:$0xff] %vm1289, %v1515
        %1520 = vst.msk [vmem:[%s578 + $0x10] sm:$0xff] %vm1289, %v1516
        %1521 = vst.msk [vmem:[%s578 + $0x18] sm:$0xff] %vm1289, %v1517
        %v1522 = vpack.c.bf16 %v1514, %v1514
        %v1523 = vpack.c.bf16 %v1515, %v1515
        %v1524 = vpack.c.bf16 %v1516, %v1516
        %v1525 = vpack.c.bf16 %v1517, %v1517
        %v1527 = vsel %vm1289, %v1522, 0
        %vm1529 = vcmask 1043456
        %v1531 = vsel %vm1529, %v1279, 0
        %1533 = vmatprep.subr.bf16.mxu0 0
        %1534 = vmatpush1.bf16.msra.mxu0 %v1531
        %1535 = vmatprep.subr.bf16.mxu0 0
        %1536 = vmatpush1.bf16.msra.mxu0 0
        %1537 = vmatprep.subr.bf16.mxu0 0
        %1538 = vmatpush1.bf16.msra.mxu0 0
        %1539 = vmatprep.subr.bf16.mxu0 0
        %1540 = vmatpush1.bf16.msra.mxu0 0
        %1541 = vmatprep.subr.bf16.mxu0 0
        %1542 = vmatpush1.bf16.msra.mxu0 0
        %1543 = vmatprep.subr.bf16.mxu0 0
        %1544 = vmatpush1.bf16.msra.mxu0 0
        %1545 = vmatprep.subr.bf16.mxu0 0
        %1546 = vmatpush1.bf16.msra.mxu0 0
        %1547 = vmatprep.subr.bf16.mxu0 0
        %1548 = vmatpush1.bf16.msra.mxu0 0
        %1549 = vmatprep.subr.bf16.mxu0 0
        %1550 = vmatpush1.bf16.msra.mxu0 0
        %1551 = vmatprep.subr.bf16.mxu0 0
        %1552 = vmatpush1.bf16.msra.mxu0 0
        %1553 = vmatprep.subr.bf16.mxu0 0
        %1554 = vmatpush1.bf16.msra.mxu0 0
        %1555 = vmatprep.subr.bf16.mxu0 0
        %1556 = vmatpush1.bf16.msra.mxu0 0
        %1557 = vmatprep.subr.bf16.mxu0 0
        %1558 = vmatpush1.bf16.msra.mxu0 0
        %1559 = vmatprep.subr.bf16.mxu0 0
        %1560 = vmatpush1.bf16.msra.mxu0 0
        %1561 = vmatprep.subr.bf16.mxu0 0
        %1562 = vmatpush1.bf16.msra.mxu0 0
        %1563 = vmatprep.subr.bf16.mxu0 0
        %1564 = vmatpush1.bf16.msra.mxu0 0
        %1565 = vmatprep.mubr.bf16.mxu0 0
        %1566 = vmatmul.mubr.bf16.gmra.mrb[0].mxu0 %v1527
        %v1567 = vpop.f32.mrb[0].mxu0
        %v1568 = vadd.f32 0.0, %v1567
        %v1569 = vpop.f32.mrb[0].mxu0
        %v1570 = vpop.f32.mrb[0].mxu0
        %v1571 = vpop.f32.mrb[0].mxu0
        %1572 = vdwg.mxu0
        %v1574 = vsel %vm1289, %v1523, 0
        %v1577 = vsel %vm1529, %v1282, 0
        %1579 = vmatprep.subr.bf16.mxu0 0
        %1580 = vmatpush1.bf16.msra.mxu0 %v1577
        %1581 = vmatprep.subr.bf16.mxu0 0
        %1582 = vmatpush1.bf16.msra.mxu0 0
        %1583 = vmatprep.subr.bf16.mxu0 0
        %1584 = vmatpush1.bf16.msra.mxu0 0
        %1585 = vmatprep.subr.bf16.mxu0 0
        %1586 = vmatpush1.bf16.msra.mxu0 0
        %1587 = vmatprep.subr.bf16.mxu0 0
        %1588 = vmatpush1.bf16.msra.mxu0 0
        %1589 = vmatprep.subr.bf16.mxu0 0
        %1590 = vmatpush1.bf16.msra.mxu0 0
        %1591 = vmatprep.subr.bf16.mxu0 0
        %1592 = vmatpush1.bf16.msra.mxu0 0
        %1593 = vmatprep.subr.bf16.mxu0 0
        %1594 = vmatpush1.bf16.msra.mxu0 0
        %1595 = vmatprep.subr.bf16.mxu0 0
        %1596 = vmatpush1.bf16.msra.mxu0 0
        %1597 = vmatprep.subr.bf16.mxu0 0
        %1598 = vmatpush1.bf16.msra.mxu0 0
        %1599 = vmatprep.subr.bf16.mxu0 0
        %1600 = vmatpush1.bf16.msra.mxu0 0
        %1601 = vmatprep.subr.bf16.mxu0 0
        %1602 = vmatpush1.bf16.msra.mxu0 0
        %1603 = vmatprep.subr.bf16.mxu0 0
        %1604 = vmatpush1.bf16.msra.mxu0 0
        %1605 = vmatprep.subr.bf16.mxu0 0
        %1606 = vmatpush1.bf16.msra.mxu0 0
        %1607 = vmatprep.subr.bf16.mxu0 0
        %1608 = vmatpush1.bf16.msra.mxu0 0
        %1609 = vmatprep.subr.bf16.mxu0 0
        %1610 = vmatpush1.bf16.msra.mxu0 0
        %1611 = vmatprep.mubr.bf16.mxu0 0
        %1612 = vmatmul.mubr.bf16.gmra.mrb[0].mxu0 %v1574
        %v1613 = vpop.f32.mrb[0].mxu0
        %v1614 = vadd.f32 0.0, %v1613
        %v1615 = vpop.f32.mrb[0].mxu0
        %v1616 = vpop.f32.mrb[0].mxu0
        %v1617 = vpop.f32.mrb[0].mxu0
        %1618 = vdwg.mxu0
        %v1620 = vsel %vm1289, %v1524, 0
        %v1623 = vsel %vm1529, %v1285, 0
        %1625 = vmatprep.subr.bf16.mxu0 0
        %1626 = vmatpush1.bf16.msra.mxu0 %v1623
        %1627 = vmatprep.subr.bf16.mxu0 0
        %1628 = vmatpush1.bf16.msra.mxu0 0
        %1629 = vmatprep.subr.bf16.mxu0 0
        %1630 = vmatpush1.bf16.msra.mxu0 0
        %1631 = vmatprep.subr.bf16.mxu0 0
        %1632 = vmatpush1.bf16.msra.mxu0 0
        %1633 = vmatprep.subr.bf16.mxu0 0
        %1634 = vmatpush1.bf16.msra.mxu0 0
        %1635 = vmatprep.subr.bf16.mxu0 0
        %1636 = vmatpush1.bf16.msra.mxu0 0
        %1637 = vmatprep.subr.bf16.mxu0 0
        %1638 = vmatpush1.bf16.msra.mxu0 0
        %1639 = vmatprep.subr.bf16.mxu0 0
        %1640 = vmatpush1.bf16.msra.mxu0 0
        %1641 = vmatprep.subr.bf16.mxu0 0
        %1642 = vmatpush1.bf16.msra.mxu0 0
        %1643 = vmatprep.subr.bf16.mxu0 0
        %1644 = vmatpush1.bf16.msra.mxu0 0
        %1645 = vmatprep.subr.bf16.mxu0 0
        %1646 = vmatpush1.bf16.msra.mxu0 0
        %1647 = vmatprep.subr.bf16.mxu0 0
        %1648 = vmatpush1.bf16.msra.mxu0 0
        %1649 = vmatprep.subr.bf16.mxu0 0
        %1650 = vmatpush1.bf16.msra.mxu0 0
        %1651 = vmatprep.subr.bf16.mxu0 0
        %1652 = vmatpush1.bf16.msra.mxu0 0
        %1653 = vmatprep.subr.bf16.mxu0 0
        %1654 = vmatpush1.bf16.msra.mxu0 0
        %1655 = vmatprep.subr.bf16.mxu0 0
        %1656 = vmatpush1.bf16.msra.mxu0 0
        %1657 = vmatprep.mubr.bf16.mxu0 0
        %1658 = vmatmul.mubr.bf16.gmra.mrb[0].mxu0 %v1620
        %v1659 = vpop.f32.mrb[0].mxu0
        %v1660 = vadd.f32 0.0, %v1659
        %v1661 = vpop.f32.mrb[0].mxu0
        %v1662 = vpop.f32.mrb[0].mxu0
        %v1663 = vpop.f32.mrb[0].mxu0
        %1664 = vdwg.mxu0
        %v1666 = vsel %vm1289, %v1525, 0
        %v1669 = vsel %vm1529, %v1288, 0
        %1671 = vmatprep.subr.bf16.mxu0 0
        %1672 = vmatpush1.bf16.msra.mxu0 %v1669
        %1673 = vmatprep.subr.bf16.mxu0 0
        %1674 = vmatpush1.bf16.msra.mxu0 0
        %1675 = vmatprep.subr.bf16.mxu0 0
        %1676 = vmatpush1.bf16.msra.mxu0 0
        %1677 = vmatprep.subr.bf16.mxu0 0
        %1678 = vmatpush1.bf16.msra.mxu0 0
        %1679 = vmatprep.subr.bf16.mxu0 0
        %1680 = vmatpush1.bf16.msra.mxu0 0
        %1681 = vmatprep.subr.bf16.mxu0 0
        %1682 = vmatpush1.bf16.msra.mxu0 0
        %1683 = vmatprep.subr.bf16.mxu0 0
        %1684 = vmatpush1.bf16.msra.mxu0 0
        %1685 = vmatprep.subr.bf16.mxu0 0
        %1686 = vmatpush1.bf16.msra.mxu0 0
        %1687 = vmatprep.subr.bf16.mxu0 0
        %1688 = vmatpush1.bf16.msra.mxu0 0
        %1689 = vmatprep.subr.bf16.mxu0 0
        %1690 = vmatpush1.bf16.msra.mxu0 0
        %1691 = vmatprep.subr.bf16.mxu0 0
        %1692 = vmatpush1.bf16.msra.mxu0 0
        %1693 = vmatprep.subr.bf16.mxu0 0
        %1694 = vmatpush1.bf16.msra.mxu0 0
        %1695 = vmatprep.subr.bf16.mxu0 0
        %1696 = vmatpush1.bf16.msra.mxu0 0
        %1697 = vmatprep.subr.bf16.mxu0 0
        %1698 = vmatpush1.bf16.msra.mxu0 0
        %1699 = vmatprep.subr.bf16.mxu0 0
        %1700 = vmatpush1.bf16.msra.mxu0 0
        %1701 = vmatprep.subr.bf16.mxu0 0
        %1702 = vmatpush1.bf16.msra.mxu0 0
        %1703 = vmatprep.mubr.bf16.mxu0 0
        %1704 = vmatmul.mubr.bf16.gmra.mrb[0].mxu0 %v1666
        %v1705 = vpop.f32.mrb[0].mxu0
        %v1706 = vadd.f32 0.0, %v1705
        %v1707 = vpop.f32.mrb[0].mxu0
        %v1708 = vpop.f32.mrb[0].mxu0
        %v1709 = vpop.f32.mrb[0].mxu0
        %1710 = vdwg.mxu0
        %v1711 = vcombine.low %v1568, %v1660
        %v1712 = vcombine.high %v1568, %v1660
        %v1714 = vunpack.c.l.s4 1983009808
        %v1715 = vunpack.c.0.s8 %v1714
        %v1716 = vlaneseq
        %v1717 = vshrl.u32 %v1716, 7
        %v1718 = vsub.s32 %v1715, %v1717
        %v1719 = vrot.slane %v1711, %v1718
        %v1721 = vunpack.c.l.s4 1983009808
        %v1722 = vunpack.c.0.s8 %v1721
        %v1723 = vlaneseq
        %v1724 = vshrl.u32 %v1723, 7
        %v1725 = vsub.s32 %v1722, %v1724
        %v1726 = vrot.slane %v1712, %v1725
        %v1727 = vcombine.low %v1614, %v1706
        %v1728 = vcombine.high %v1614, %v1706
        %v1730 = vunpack.c.l.s4 1983009808
        %v1731 = vunpack.c.0.s8 %v1730
        %v1732 = vlaneseq
        %v1733 = vshrl.u32 %v1732, 7
        %v1734 = vsub.s32 %v1731, %v1733
        %v1735 = vrot.slane %v1727, %v1734
        %v1737 = vunpack.c.l.s4 1983009808
        %v1738 = vunpack.c.0.s8 %v1737
        %v1739 = vlaneseq
        %v1740 = vshrl.u32 %v1739, 7
        %v1741 = vsub.s32 %v1738, %v1740
        %v1742 = vrot.slane %v1728, %v1741
        %v1743 = vcombine.low %v1719, %v1735
        %v1744 = vcombine.high %v1719, %v1735
        %v1746 = vunpack.c.l.s4 1934713408
        %v1747 = vunpack.c.0.s8 %v1746
        %v1748 = vlaneseq
        %v1749 = vshrl.u32 %v1748, 7
        %v1750 = vsub.s32 %v1747, %v1749
        %v1751 = vrot.slane %v1743, %v1750
        %v1753 = vunpack.c.l.s4 1934713408
        %v1754 = vunpack.c.0.s8 %v1753
        %v1755 = vlaneseq
        %v1756 = vshrl.u32 %v1755, 7
        %v1757 = vsub.s32 %v1754, %v1756
        %v1758 = vrot.slane %v1744, %v1757
        %v1759 = vcombine.low %v1726, %v1742
        %v1760 = vcombine.high %v1726, %v1742
        %v1762 = vunpack.c.l.s4 1934713408
        %v1763 = vunpack.c.0.s8 %v1762
        %v1764 = vlaneseq
        %v1765 = vshrl.u32 %v1764, 7
        %v1766 = vsub.s32 %v1763, %v1765
        %v1767 = vrot.slane %v1759, %v1766
        %v1769 = vunpack.c.l.s4 1934713408
        %v1770 = vunpack.c.0.s8 %v1769
        %v1771 = vlaneseq
        %v1772 = vshrl.u32 %v1771, 7
        %v1773 = vsub.s32 %v1770, %v1772
        %v1774 = vrot.slane %v1760, %v1773
        %v1775 = vcombine.high %v1751, 0.0
        %v1776 = vcombine.high %v1758, 0.0
        %v1777 = vcombine.high %v1767, 0.0
        %v1778 = vcombine.high %v1774, 0.0
        %v1779 = vcombine.low %v1751, %v1758
        %v1781 = vunpack.c.l.s4 1983009808
        %v1782 = vunpack.c.0.s8 %v1781
        %v1783 = vlaneseq
        %v1784 = vshrl.u32 %v1783, 7
        %v1785 = vsub.s32 %v1782, %v1784
        %v1786 = vrot.slane %v1779, %v1785
        %v1787 = vcombine.low %v1775, %v1776
        %v1789 = vunpack.c.l.s4 1983009808
        %v1790 = vunpack.c.0.s8 %v1789
        %v1791 = vlaneseq
        %v1792 = vshrl.u32 %v1791, 7
        %v1793 = vsub.s32 %v1790, %v1792
        %v1794 = vrot.slane %v1787, %v1793
        %v1795 = vcombine.low %v1767, %v1774
        %v1797 = vunpack.c.l.s4 1983009808
        %v1798 = vunpack.c.0.s8 %v1797
        %v1799 = vlaneseq
        %v1800 = vshrl.u32 %v1799, 7
        %v1801 = vsub.s32 %v1798, %v1800
        %v1802 = vrot.slane %v1795, %v1801
        %v1803 = vcombine.low %v1777, %v1778
        %v1805 = vunpack.c.l.s4 1983009808
        %v1806 = vunpack.c.0.s8 %v1805
        %v1807 = vlaneseq
        %v1808 = vshrl.u32 %v1807, 7
        %v1809 = vsub.s32 %v1806, %v1808
        %v1810 = vrot.slane %v1803, %v1809
        %v1811 = vcombine.low %v1786, %v1794
        %v1812 = vcombine.high %v1786, %v1794
        %v1814 = vunpack.c.l.s4 1934713408
        %v1815 = vunpack.c.0.s8 %v1814
        %v1816 = vlaneseq
        %v1817 = vshrl.u32 %v1816, 7
        %v1818 = vsub.s32 %v1815, %v1817
        %v1819 = vrot.slane %v1811, %v1818
        %v1821 = vunpack.c.l.s4 1934713408
        %v1822 = vunpack.c.0.s8 %v1821
        %v1823 = vlaneseq
        %v1824 = vshrl.u32 %v1823, 7
        %v1825 = vsub.s32 %v1822, %v1824
        %v1826 = vrot.slane %v1812, %v1825
        %v1827 = vcombine.low %v1802, %v1810
        %v1828 = vcombine.high %v1802, %v1810
        %v1830 = vunpack.c.l.s4 1934713408
        %v1831 = vunpack.c.0.s8 %v1830
        %v1832 = vlaneseq
        %v1833 = vshrl.u32 %v1832, 7
        %v1834 = vsub.s32 %v1831, %v1833
        %v1835 = vrot.slane %v1827, %v1834
        %v1837 = vunpack.c.l.s4 1934713408
        %v1838 = vunpack.c.0.s8 %v1837
        %v1839 = vlaneseq
        %v1840 = vshrl.u32 %v1839, 7
        %v1841 = vsub.s32 %v1838, %v1840
        %v1842 = vrot.slane %v1828, %v1841
        %v1843 = vcombine.low %v1819, %v1835
        %v1844 = vcombine.high %v1819, %v1835
        %v1845 = vcombine.low %v1826, %v1842
        %v1846 = vcombine.high %v1826, %v1842
        %1848 = vrot.lane.b32.xlu0 %v1844, 8
        %v1849 = vpop.permute.xlu0 %1848
        %1852 = vrot.lane.b32.xlu0 %v1845, 16
        %v1853 = vpop.permute.xlu0 %1852
        %1856 = vrot.lane.b32.xlu0 %v1846, 24
        %v1857 = vpop.permute.xlu0 %1856
        %v1859 = vsel %vm1289, %v1843, %v1849
        %vm1860 = vcmask 130048
        %v1861 = vsel %vm1860, %v1859, %v1853
        %vm1862 = vcmask 195584
        %v1863 = vsel %vm1862, %v1861, %v1857
        %v1864 = vpack.c.bf16 %v1863, %v1863
        %v1865 = vld [vmem:[#allocation7] sm:$0xf]
        %v1866 = vld [vmem:[#allocation7 + $0x4] sm:$0xf]
        %v1867 = vld [vmem:[#allocation7 + $0x8] sm:$0xf]
        %v1868 = vld [vmem:[#allocation7 + $0xc] sm:$0xf]
        %v1869 = vld [vmem:[#allocation8] sm:$0x1]
        %v1871 = vlaneseq
        %v1872 = vshrl.u32 %v1871, 7
        %v1873 = vsub.s32 0, %v1872
        %v1874 = vrot.slane %v1869, %v1873
        %v1880 = vunpack.c.l.b16 %v1865
        %v1881 = vunpack.c.l.b16 %v1866
        %v1882 = vunpack.c.l.b16 %v1867
        %v1883 = vunpack.c.l.b16 %v1868
        %v1884 = vpack.c.b16 %v1881, %v1880
        %v1885 = vpack.c.b16 %v1883, %v1882
        %v1889 = vsel %vm611, %v1864, 0
        %1891 = vmatprep.subr.bf16.mxu0 0
        %1892 = vmatpush1.bf16.msra.mxu0 %v1884
        %1893 = vmatprep.subr.bf16.mxu0 0
        %1894 = vmatpush1.bf16.msra.mxu0 %v1885
        %1895 = vmatprep.subr.bf16.mxu0 0
        %1896 = vmatpush1.bf16.msra.mxu0 0
        %1897 = vmatprep.subr.bf16.mxu0 0
        %1898 = vmatpush1.bf16.msra.mxu0 0
        %1899 = vmatprep.subr.bf16.mxu0 0
        %1900 = vmatpush1.bf16.msra.mxu0 0
        %1901 = vmatprep.subr.bf16.mxu0 0
        %1902 = vmatpush1.bf16.msra.mxu0 0
        %1903 = vmatprep.subr.bf16.mxu0 0
        %1904 = vmatpush1.bf16.msra.mxu0 0
        %1905 = vmatprep.subr.bf16.mxu0 0
        %1906 = vmatpush1.bf16.msra.mxu0 0
        %1907 = vmatprep.subr.bf16.mxu0 0
        %1908 = vmatpush1.bf16.msra.mxu0 0
        %1909 = vmatprep.subr.bf16.mxu0 0
        %1910 = vmatpush1.bf16.msra.mxu0 0
        %1911 = vmatprep.subr.bf16.mxu0 0
        %1912 = vmatpush1.bf16.msra.mxu0 0
        %1913 = vmatprep.subr.bf16.mxu0 0
        %1914 = vmatpush1.bf16.msra.mxu0 0
        %1915 = vmatprep.subr.bf16.mxu0 0
        %1916 = vmatpush1.bf16.msra.mxu0 0
        %1917 = vmatprep.subr.bf16.mxu0 0
        %1918 = vmatpush1.bf16.msra.mxu0 0
        %1919 = vmatprep.subr.bf16.mxu0 0
        %1920 = vmatpush1.bf16.msra.mxu0 0
        %1921 = vmatprep.subr.bf16.mxu0 0
        %1922 = vmatpush1.bf16.msra.mxu0 0
        %1923 = vmatprep.mubr.bf16.mxu0 0
        %1924 = vmatmul.mubr.bf16.gmra.mrb[0].mxu0 %v1889
        %v1925 = vpop.f32.mrb[0].mxu0
        %v1926 = vadd.f32 %v1874, %v1925
        %v1927 = vpop.f32.mrb[0].mxu0
        %v1928 = vpop.f32.mrb[0].mxu0
        %v1929 = vpop.f32.mrb[0].mxu0
        %1930 = vdwg.mxu0
        %v1931 = vadd.f32 %v584, %v1926
        %v1932 = vsel %vm611, %v1931, 0.0
        %1933 = vadd.xlane.f32.xlu0 %v1932
        %v1934 = vpop.xlane.xlu0 %1933
        %v1935 = vrcp.pop 32.0
        %v1936 = vmul.f32 %v1934, %v1935
        %v1937 = vmul.f32 %v1931, %v1931
        %v1938 = vsel %vm611, %v1937, 0.0
        %1939 = vadd.xlane.f32.xlu0 %v1938
        %v1940 = vpop.xlane.xlu0 %1939
        %v1941 = vmul.f32 %v1940, %v1935
        %v1942 = vmul.f32 %v1936, %v1936
        %v1943 = vsub.f32 %v1941, %v1942
        %v1944 = vsub.f32 %v1931, %v1936
        %v1945 = vadd.f32 %v1943, 1e-05
        %v1946 = vrsqrt.pop %v1945
        %v1947 = vmul.f32 %v1944, %v1946
        %v1949 = vlaneseq
        %v1950 = vshrl.u32 %v1949, 7
        %v1951 = vsub.s32 0, %v1950
        %v1952 = vrot.slane %v585, %v1951
        %v1954 = vmul.f32 %v1947, %v1952
        %v1956 = vlaneseq
        %v1957 = vshrl.u32 %v1956, 7
        %v1958 = vsub.s32 0, %v1957
        %v1959 = vrot.slane %v586, %v1958
        %v1961 = vadd.f32 %v1954, %v1959
        %v1962 = vpack.c.bf16 %v1961, %v1961
        %v1963 = vld [vmem:[%s9] sm:$0xf]
        %v1964 = vld [vmem:[%s9 + $0x4] sm:$0xf]
        %v1965 = vld [vmem:[%s9 + $0x8] sm:$0xf]
        %v1966 = vld [vmem:[%s9 + $0xc] sm:$0xf]
        %v1967 = vld [vmem:[%s10] sm:$0x1]
        %v1969 = vlaneseq
        %v1970 = vshrl.u32 %v1969, 7
        %v1971 = vsub.s32 0, %v1970
        %v1972 = vrot.slane %v1967, %v1971
        %v1978 = vunpack.c.l.b16 %v1963
        %v1979 = vunpack.c.l.b16 %v1964
        %v1980 = vunpack.c.l.b16 %v1965
        %v1981 = vunpack.c.l.b16 %v1966
        %v1982 = vpack.c.b16 %v1979, %v1978
        %v1983 = vpack.c.b16 %v1981, %v1980
        %v1987 = vsel %vm611, %v1962, 0
        %1989 = vmatprep.subr.bf16.mxu0 0
        %1990 = vmatpush1.bf16.msra.mxu0 %v1982
        %1991 = vmatprep.subr.bf16.mxu0 0
        %1992 = vmatpush1.bf16.msra.mxu0 %v1983
        %1993 = vmatprep.subr.bf16.mxu0 0
        %1994 = vmatpush1.bf16.msra.mxu0 0
        %1995 = vmatprep.subr.bf16.mxu0 0
        %1996 = vmatpush1.bf16.msra.mxu0 0
        %1997 = vmatprep.subr.bf16.mxu0 0
        %1998 = vmatpush1.bf16.msra.mxu0 0
        %1999 = vmatprep.subr.bf16.mxu0 0
        %2000 = vmatpush1.bf16.msra.mxu0 0
        %2001 = vmatprep.subr.bf16.mxu0 0
        %2002 = vmatpush1.bf16.msra.mxu0 0
        %2003 = vmatprep.subr.bf16.mxu0 0
        %2004 = vmatpush1.bf16.msra.mxu0 0
        %2005 = vmatprep.subr.bf16.mxu0 0
        %2006 = vmatpush1.bf16.msra.mxu0 0
        %2007 = vmatprep.subr.bf16.mxu0 0
        %2008 = vmatpush1.bf16.msra.mxu0 0
        %2009 = vmatprep.subr.bf16.mxu0 0
        %2010 = vmatpush1.bf16.msra.mxu0 0
        %2011 = vmatprep.subr.bf16.mxu0 0
        %2012 = vmatpush1.bf16.msra.mxu0 0
        %2013 = vmatprep.subr.bf16.mxu0 0
        %2014 = vmatpush1.bf16.msra.mxu0 0
        %2015 = vmatprep.subr.bf16.mxu0 0
        %2016 = vmatpush1.bf16.msra.mxu0 0
        %2017 = vmatprep.subr.bf16.mxu0 0
        %2018 = vmatpush1.bf16.msra.mxu0 0
        %2019 = vmatprep.subr.bf16.mxu0 0
        %2020 = vmatpush1.bf16.msra.mxu0 0
        %2021 = vmatprep.mubr.bf16.mxu0 0
        %2022 = vmatmul.mubr.bf16.gmra.mrb[0].mxu0 %v1987
        %v2023 = vpop.f32.mrb[0].mxu0
        %v2024 = vadd.f32 %v1972, %v2023
        %v2025 = vpop.f32.mrb[0].mxu0
        %v2026 = vpop.f32.mrb[0].mxu0
        %v2027 = vpop.f32.mrb[0].mxu0
        %2028 = vdwg.mxu0
        %v2029 = vmul.f32 %v2024, 0.5
        %v2030 = vmul.f32 %v2024, 0.70710677
        %v2031 = verf.f32.pop %v2030
        %v2032 = vadd.f32 %v2031, 1.0
        %v2033 = vmul.f32 %v2029, %v2032
        %v2034 = vpack.c.bf16 %v2033, %v2033
        %v2035 = vld [vmem:[%s11] sm:$0xf]
        %v2036 = vld [vmem:[%s11 + $0x4] sm:$0xf]
        %v2037 = vld [vmem:[%s11 + $0x8] sm:$0xf]
        %v2038 = vld [vmem:[%s11 + $0xc] sm:$0xf]
        %v2039 = vld [vmem:[%s11 + $0x10] sm:$0xf]
        %v2040 = vld [vmem:[%s11 + $0x14] sm:$0xf]
        %v2041 = vld [vmem:[%s11 + $0x18] sm:$0xf]
        %v2042 = vld [vmem:[%s11 + $0x1c] sm:$0xf]
        %v2043 = vld [vmem:[%s12] sm:$0x1]
        %v2045 = vlaneseq
        %v2046 = vshrl.u32 %v2045, 7
        %v2047 = vsub.s32 0, %v2046
        %v2048 = vrot.slane %v2043, %v2047
        %v2058 = vunpack.c.l.b16 %v2035
        %v2059 = vunpack.c.l.b16 %v2036
        %v2060 = vunpack.c.l.b16 %v2037
        %v2061 = vunpack.c.l.b16 %v2038
        %v2062 = vunpack.c.l.b16 %v2039
        %v2063 = vunpack.c.l.b16 %v2040
        %v2064 = vunpack.c.l.b16 %v2041
        %v2065 = vunpack.c.l.b16 %v2042
        %v2066 = vpack.c.b16 %v2059, %v2058
        %v2067 = vpack.c.b16 %v2061, %v2060
        %v2068 = vpack.c.b16 %v2063, %v2062
        %v2069 = vpack.c.b16 %v2065, %v2064
        %vm2074 = vcmask 523264
        %v2076 = vsel %vm2074, %v2034, 0
        %2078 = vmatprep.subr.bf16.mxu0 0
        %2079 = vmatpush1.bf16.msra.mxu0 %v2066
        %2080 = vmatprep.subr.bf16.mxu0 0
        %2081 = vmatpush1.bf16.msra.mxu0 %v2067
        %2082 = vmatprep.subr.bf16.mxu0 0
        %2083 = vmatpush1.bf16.msra.mxu0 %v2068
        %2084 = vmatprep.subr.bf16.mxu0 0
        %2085 = vmatpush1.bf16.msra.mxu0 %v2069
        %2086 = vmatprep.subr.bf16.mxu0 0
        %2087 = vmatpush1.bf16.msra.mxu0 0
        %2088 = vmatprep.subr.bf16.mxu0 0
        %2089 = vmatpush1.bf16.msra.mxu0 0
        %2090 = vmatprep.subr.bf16.mxu0 0
        %2091 = vmatpush1.bf16.msra.mxu0 0
        %2092 = vmatprep.subr.bf16.mxu0 0
        %2093 = vmatpush1.bf16.msra.mxu0 0
        %2094 = vmatprep.subr.bf16.mxu0 0
        %2095 = vmatpush1.bf16.msra.mxu0 0
        %2096 = vmatprep.subr.bf16.mxu0 0
        %2097 = vmatpush1.bf16.msra.mxu0 0
        %2098 = vmatprep.subr.bf16.mxu0 0
        %2099 = vmatpush1.bf16.msra.mxu0 0
        %2100 = vmatprep.subr.bf16.mxu0 0
        %2101 = vmatpush1.bf16.msra.mxu0 0
        %2102 = vmatprep.subr.bf16.mxu0 0
        %2103 = vmatpush1.bf16.msra.mxu0 0
        %2104 = vmatprep.subr.bf16.mxu0 0
        %2105 = vmatpush1.bf16.msra.mxu0 0
        %2106 = vmatprep.subr.bf16.mxu0 0
        %2107 = vmatpush1.bf16.msra.mxu0 0
        %2108 = vmatprep.subr.bf16.mxu0 0
        %2109 = vmatpush1.bf16.msra.mxu0 0
        %2110 = vmatprep.mubr.bf16.mxu0 0
        %2111 = vmatmul.mubr.bf16.gmra.mrb[0].mxu0 %v2076
        %v2112 = vpop.f32.mrb[0].mxu0
        %v2113 = vadd.f32 %v2048, %v2112
        %v2114 = vpop.f32.mrb[0].mxu0
        %v2115 = vpop.f32.mrb[0].mxu0
        %v2116 = vpop.f32.mrb[0].mxu0
        %2117 = vdwg.mxu0
        %v2118 = vadd.f32 %v2113, %v1961
        %v2119 = vsel %vm611, %v2118, 0.0
        %2120 = vadd.xlane.f32.xlu0 %v2119
        %v2121 = vpop.xlane.xlu0 %2120
        %v2122 = vmul.f32 %v2121, %v1935
        %v2123 = vmul.f32 %v2118, %v2118
        %v2124 = vsel %vm611, %v2123, 0.0
        %2125 = vadd.xlane.f32.xlu0 %v2124
        %v2126 = vpop.xlane.xlu0 %2125
        %v2127 = vmul.f32 %v2126, %v1935
        %v2128 = vmul.f32 %v2122, %v2122
        %v2129 = vsub.f32 %v2127, %v2128
        %v2130 = vsub.f32 %v2118, %v2122
        %v2131 = vadd.f32 %v2129, 1e-05
        %v2132 = vrsqrt.pop %v2131
        %v2133 = vmul.f32 %v2130, %v2132
        %v2134 = vmul.f32 %v2133, %v1952
        %v2135 = vadd.f32 %v2134, %v1959
        %2136 = vst.msk [vmem:[%s571] sm:$0xff] %vm611, %v2135
        %s2137 = sand.u32 %s365, 1
        %s2138 = scalar_lea.sflag [#allocation4], %s2137
        %s2139 = sand.u32 %s365, 1
        %s2140 = smul.addr %s2139, 8
        %s2141 = scalar_lea.vmem [#allocation10], %s2140
        %s2142 = sand.u32 %s391, 1
        %s2143 = scalar_lea.sflag [#allocation12], %s2142
        %s2144 = sand.u32 %s391, 1
        %s2145 = smul.addr %s2144, 32
        %s2146 = scalar_lea.vmem [#allocation11], %s2145
        // Predicated region
        $region97: #{tpu_custom_call.1} parent=79 // pred_check
          %p2147 = pneg %p375
        $region98: #{tpu_custom_call.1} parent=79 // pred_check_branch
          %2149 = sbr.rel (%p2147) target = $region100
        $region99: #{tpu_custom_call.1} parent=79 // pred_region
          %s2151 = ssub.s32 128, 128
          %2152 = vsyncadd %s2138, %s2151
          %s2153 = smul.addr %s37, 128
          %s2154 = scalar_lea.hbm %s15, %s2153
          %s2156 = sshll.u32 %s2141, 4
          %s2157 = int_to_ptr.vmem [resolvable:$true] %s2156
          %2159 = dma.vmem_to_hbm [thread:$0]  %s2157, 128, %s2154, %s2138
        $region100: #{tpu_custom_call.1} parent=79 // pred_fallthru
          _
        // Predicated region
        $region101: #{tpu_custom_call.1} parent=79 // pred_check
          %p2160 = pneg %p401
        $region102: #{tpu_custom_call.1} parent=79 // pred_check_branch
          %2162 = sbr.rel (%p2160) target = $region104
        $region103: #{tpu_custom_call.1} parent=79 // pred_region
          %s2164 = ssub.s32 512, 512
          %2165 = vsyncadd %s2143, %s2164
          %s2166 = smul.addr %s37, 4
          %s2167 = smul.addr %s2166, 128
          %s2168 = scalar_lea.hbm %s16, %s2167
          %s2169 = sshll.u32 %s2146, 4
          %s2170 = int_to_ptr.vmem [resolvable:$true] %s2169
          %2175 = dma.vmem_to_hbm [thread:$0]  %s2170, 512, %s2168, %s2143, 128, 128, 8
        $region104: #{tpu_custom_call.1} parent=79 // pred_fallthru
          _
      $region80: #{tpu_custom_call.1} parent=5 // pred_fallthru
        _
      %p2176 = scmp.le.s32.totalorder 2, %s32
      // Predicated region
      $region105: #{tpu_custom_call.1} parent=5 // pred_check
        %p2177 = pneg %p2176
      $region106: #{tpu_custom_call.1} parent=5 // pred_check_branch
        %2179 = sbr.rel (%p2177) target = $region108
      $region107: #{tpu_custom_call.1} parent=5 // pred_region
        %s2180 = ssub.s32 %s32, 2
        // Predicated region
        $region109: #{tpu_custom_call.1} parent=107 // pred_check
          %p2181 = pneg %p381
        $region110: #{tpu_custom_call.1} parent=107 // pred_check_branch
          %2183 = sbr.rel (%p2181) target = $region112
        $region111: #{tpu_custom_call.1} parent=107 // pred_region
          %s2184 = sand.u32 %s366, 1
          %s2185 = scalar_lea.sflag [#allocation4], %s2184
          %s2186 = sand.u32 %s366, 1
          %s2187 = smul.addr %s2186, 8
          %s2188 = scalar_lea.vmem [#allocation10], %s2187
          %2189 = dma.done %s2185, 128
        $region112: #{tpu_custom_call.1} parent=107 // pred_fallthru
          _
        // Predicated region
        $region113: #{tpu_custom_call.1} parent=107 // pred_check
          %p2190 = pneg %p407
        $region114: #{tpu_custom_call.1} parent=107 // pred_check_branch
          %2192 = sbr.rel (%p2190) target = $region116
        $region115: #{tpu_custom_call.1} parent=107 // pred_region
          %s2193 = sand.u32 %s392, 1
          %s2194 = scalar_lea.sflag [#allocation12], %s2193
          %s2195 = sand.u32 %s392, 1
          %s2196 = smul.addr %s2195, 32
          %s2197 = scalar_lea.vmem [#allocation11], %s2196
          %2198 = dma.done %s2194, 512
        $region116: #{tpu_custom_call.1} parent=107 // pred_fallthru
          _
      $region108: #{tpu_custom_call.1} parent=5 // pred_fallthru
        _
    $region6: #{tpu_custom_call.1} parent=1 // loop_footer
      %s36 = sadd.s32 1, %s32
    $region7: #{tpu_custom_call.1} parent=1 // loop_footer_branch
      %31 = sbr.rel target = $region3
    $region8: #{tpu_custom_call.1} parent=1 // loop_exit
      _
    %2199 = vsyncpa [#allocation3], 1
    %s2200 = scalar_lea.sflag [#allocation3], 1
    %2201 = vsyncpa %s2200, 1
    %2202 = vsyncpa [#allocation6], 1
    %2203 = vsyncpa [#allocation9], 1
    %2204 = vsyncpa [#allocation4], 1
    %s2205 = scalar_lea.sflag [#allocation4], 1
    %2206 = vsyncpa %s2205, 1
    %2207 = vsyncpa [#allocation12], 1
    %s2208 = scalar_lea.sflag [#allocation12], 1
    %2209 = vsyncpa %s2208, 1

// kernel: tpu_custom_call.1
$region0: #{tpu_custom_call.1}
  #allocation0 [shape = 'u32[]', space=smem, size = 0x4, offset = 0x4, fixed_abs, tag = 'smem constant byte address 0x4 - core index']
  #allocation1 [shape = 'u32[144,128]{1,0:T(1,128)}', space=vmem, size = 0x12000, scoped, tag = 'internal scratch']
  %s0 = inlined_call_operand.vmem [shape: f32[2,8,32], index: 0, kind: input, shape index: {}]
  %s1 = inlined_call_operand.vmem [shape: bf16[32,32], index: 1, kind: input, shape index: {}]
  %s2 = inlined_call_operand.vmem [shape: f32[1,32], index: 2, kind: input, shape index: {}]
  %s3 = inlined_call_operand.vmem [shape: bf16[32,32], index: 3, kind: input, shape index: {}]
  %s4 = inlined_call_operand.vmem [shape: f32[1,32], index: 4, kind: input, shape index: {}]
  %s5 = inlined_call_operand.hbm [shape: bf16[32,32], index: 5, kind: input, shape index: {}]
  %s6 = inlined_call_operand.hbm [shape: f32[1,32], index: 6, kind: input, shape index: {}]
  %s7 = inlined_call_operand.hbm [shape: bf16[32,32], index: 7, kind: input, shape index: {}]
  %s8 = inlined_call_operand.hbm [shape: f32[1,32], index: 8, kind: input, shape index: {}]
  %s9 = inlined_call_operand.vmem [shape: bf16[32,64], index: 9, kind: input, shape index: {}]
  %s10 = inlined_call_operand.vmem [shape: f32[1,64], index: 10, kind: input, shape index: {}]
  %s11 = inlined_call_operand.vmem [shape: bf16[64,32], index: 11, kind: input, shape index: {}]
  %s12 = inlined_call_operand.vmem [shape: f32[1,32], index: 12, kind: input, shape index: {}]
  %s13 = inlined_call_operand.vmem [shape: f32[1,32], index: 13, kind: input, shape index: {}]
  %s14 = inlined_call_operand.vmem [shape: f32[1,32], index: 14, kind: input, shape index: {}]
  %s15 = inlined_call_operand.hbm [shape: f32[2,8,32], index: 15, kind: output, shape index: {0}]
  %s16 = inlined_call_operand.hbm [shape: f32[2,4,8,8], index: 16, kind: output, shape index: {1}]
  %17 = xla_tuple %s15, %s16
  %s18 = sld [smem:[#allocation0]]
  $region117: #{tpu_custom_call.1} parent=0
    _
  %s20 = ssub.s32 1, %s18
  %s21 = scalar_select 0, %s20, %s18
  $region1: #{tpu_custom_call.1} parent=0
    #allocation2 [shape = 'u8[8192]{0}', space=vmem, size = 0x2000, scoped, tag = 'input window, operand 5, single buffered']
    #allocation3 [shape = 's32[2]{0}', space=sflag, size = 0x8, scoped, tag = 'scoped memory for tpu_custom_call.1']
    #allocation4 [shape = 's32[2]{0}', space=sflag, size = 0x8, scoped, tag = 'scoped memory for tpu_custom_call.1']
    #allocation5 [shape = 'u8[512]{0}', space=vmem, size = 0x400, scoped, tag = 'input window, operand 6, single buffered']
    #allocation6 [shape = 's32[1]{0}', space=sflag, size = 0x4, scoped, tag = 'scoped memory for tpu_custom_call.1']
    #allocation7 [shape = 'u8[8192]{0}', space=vmem, size = 0x2000, scoped, tag = 'input window, operand 7, single buffered']
    #allocation8 [shape = 'u8[512]{0}', space=vmem, size = 0x400, scoped, tag = 'input window, operand 8, single buffered']
    #allocation9 [shape = 's32[1]{0}', space=sflag, size = 0x4, scoped, tag = 'scoped memory for tpu_custom_call.1']
    #allocation10 [shape = 'u8[8192]{0}', space=vmem, size = 0x2000, scoped, tag = 'output window, operand 0']
    #allocation11 [shape = 'u8[32768]{0}', space=vmem, size = 0x8000, scoped, tag = 'output window, operand 1']
    #allocation12 [shape = 's32[2]{0}', space=sflag, size = 0x8, scoped, tag = 'scoped memory for tpu_custom_call.1']
    %22 = vsyncpa [#allocation3], 0
    %23 = vsyncpa [#allocation6], 0
    %24 = vsyncpa [#allocation9], 0
    %25 = vsyncpa [#allocation4], 0
    %s26 = scalar_lea.sflag [#allocation4], 1
    %27 = vsyncpa %s26, 0
    %28 = vsyncpa [#allocation12], 0
    %s29 = scalar_lea.sflag [#allocation12], 1
    %30 = vsyncpa %s29, 0
    loop: start=0, step=1, limit=4
    $region2: #{tpu_custom_call.1} parent=1 // loop_pre_header
      _
    $region3: #{tpu_custom_call.1} parent=1 // loop_header
      %s32 = sphi 0, %s36
      %p33 = scmp.ge.s32.totalorder %s32, 4
      %s42 = sphi 0, %s44
      %s45 = sphi 0, %s42
      %s46 = sphi 0, %s45
      %s62 = sphi 0, %s46
      %s66 = sphi 0, %s66
      %s68 = sphi 0, %s66
      %s69 = sphi 0, %s68
      %s83 = sphi 0, %s69
      %s87 = sphi 0, %s87
      %s89 = sphi 0, %s87
      %s90 = sphi 0, %s89
      %s104 = sphi 0, %s90
      %s108 = sphi 0, %s108
      %s110 = sphi 0, %s108
      %s111 = sphi 0, %s110
      %s125 = sphi 0, %s111
      %s129 = sphi 0, %s129
      %s131 = sphi 0, %s129
      %s132 = sphi 0, %s131
      %s146 = sphi 0, %s132
      %s150 = sphi 0, %s150
      %s152 = sphi 0, %s150
      %s153 = sphi 0, %s152
      %s167 = sphi 0, %s153
      %s171 = sphi 0, %s171
      %s173 = sphi 0, %s171
      %s174 = sphi 0, %s173
      %s188 = sphi 0, %s174
      %s192 = sphi 0, %s192
      %s194 = sphi 0, %s192
      %s195 = sphi 0, %s194
      %s209 = sphi 0, %s195
      %s213 = sphi 0, %s213
      %s215 = sphi 0, %s213
      %s216 = sphi 0, %s215
      %s230 = sphi 0, %s216
      %s234 = sphi 0, %s234
      %s236 = sphi 0, %s234
      %s237 = sphi 0, %s236
      %s251 = sphi 0, %s237
      %s255 = sphi 0, %s255
      %s257 = sphi 0, %s255
      %s258 = sphi 0, %s257
      %s272 = sphi 0, %s258
      %s276 = sphi 0, %s276
      %s278 = sphi 0, %s276
      %s279 = sphi 0, %s278
      %s293 = sphi 0, %s279
      %s297 = sphi 0, %s297
      %s299 = sphi 0, %s297
      %s300 = sphi 0, %s299
      %s314 = sphi 0, %s300
      %s318 = sphi 0, %s318
      %s320 = sphi 0, %s318
      %s321 = sphi 0, %s320
      %s335 = sphi 0, %s321
      %s339 = sphi 0, %s339
      %s341 = sphi 0, %s339
      %s342 = sphi 0, %s341
      %s356 = sphi 0, %s342
      %s362 = sphi 0, %s364
      %s365 = sphi 0, %s362
      %s366 = sphi 0, %s365
      %s382 = sphi 0, %s366
      %s388 = sphi 0, %s390
      %s391 = sphi 0, %s388
      %s392 = sphi 0, %s391
      %s408 = sphi 0, %s392
    $region4: #{tpu_custom_call.1} parent=1 // loop_header_branch
      %35 = sbr.rel (%p33) target = $region8
    $region5: #{tpu_custom_call.1} parent=1 // loop_body
      %s37 = ssub.s32 %s32, 1
      %s38 = ssub.s32 %s32, 2
      %s39 = sadd.s32 %s32, 1
      %s40 = ssub.s32 %s32, %s39
      %p41 = scmp.eq.s32.totalorder %s40, 0
      %s43 = sadd.s32 %s42, 1
      %s44 = scalar_select %p41, %s42, %s43
      %p47 = pneg %p41
      %p48 = scmp.eq.s32.totalorder %s32, 1
      %p49 = por %p47, %p48
      %p50 = scmp.ne.s32.totalorder %s42, %s45
      %p51 = scmp.eq.s32.totalorder %s32, 0
      %p52 = por %p50, %p51
      %p53 = scmp.ne.s32.totalorder %s42, %s45
      %p54 = scmp.eq.s32.totalorder %s37, 1
      %p55 = por %p53, %p54
      %p56 = scmp.ne.s32.totalorder %s45, %s46
      %p57 = scmp.eq.s32.totalorder %s37, 0
      %p58 = por %p56, %p57
      %p59 = scmp.ne.s32.totalorder %s45, %s46
      %p60 = scmp.eq.s32.totalorder %s38, 1
      %p61 = por %p59, %p60
      %p63 = scmp.ne.s32.totalorder %s46, %s62
      %p64 = scmp.eq.s32.totalorder %s38, 0
      %p65 = por %p63, %p64
      %s67 = sadd.s32 %s66, 1
      %p70 = scmp.eq.s32.totalorder %s32, 1
      %p71 = scmp.ne.s32.totalorder %s66, %s68
      %p72 = scmp.eq.s32.totalorder %s32, 0
      %p73 = por %p71, %p72
      %p74 = scmp.ne.s32.totalorder %s66, %s68
      %p75 = scmp.eq.s32.totalorder %s37, 1
      %p76 = por %p74, %p75
      %p77 = scmp.ne.s32.totalorder %s68, %s69
      %p78 = scmp.eq.s32.totalorder %s37, 0
      %p79 = por %p77, %p78
      %p80 = scmp.ne.s32.totalorder %s68, %s69
      %p81 = scmp.eq.s32.totalorder %s38, 1
      %p82 = por %p80, %p81
      %p84 = scmp.ne.s32.totalorder %s69, %s83
      %p85 = scmp.eq.s32.totalorder %s38, 0
      %p86 = por %p84, %p85
      %s88 = sadd.s32 %s87, 1
      %p91 = scmp.eq.s32.totalorder %s32, 1
      %p92 = scmp.ne.s32.totalorder %s87, %s89
      %p93 = scmp.eq.s32.totalorder %s32, 0
      %p94 = por %p92, %p93
      %p95 = scmp.ne.s32.totalorder %s87, %s89
      %p96 = scmp.eq.s32.totalorder %s37, 1
      %p97 = por %p95, %p96
      %p98 = scmp.ne.s32.totalorder %s89, %s90
      %p99 = scmp.eq.s32.totalorder %s37, 0
      %p100 = por %p98, %p99
      %p101 = scmp.ne.s32.totalorder %s89, %s90
      %p102 = scmp.eq.s32.totalorder %s38, 1
      %p103 = por %p101, %p102
      %p105 = scmp.ne.s32.totalorder %s90, %s104
      %p106 = scmp.eq.s32.totalorder %s38, 0
      %p107 = por %p105, %p106
      %s109 = sadd.s32 %s108, 1
      %p112 = scmp.eq.s32.totalorder %s32, 1
      %p113 = scmp.ne.s32.totalorder %s108, %s110
      %p114 = scmp.eq.s32.totalorder %s32, 0
      %p115 = por %p113, %p114
      %p116 = scmp.ne.s32.totalorder %s108, %s110
      %p117 = scmp.eq.s32.totalorder %s37, 1
      %p118 = por %p116, %p117
      %p119 = scmp.ne.s32.totalorder %s110, %s111
      %p120 = scmp.eq.s32.totalorder %s37, 0
      %p121 = por %p119, %p120
      %p122 = scmp.ne.s32.totalorder %s110, %s111
      %p123 = scmp.eq.s32.totalorder %s38, 1
      %p124 = por %p122, %p123
      %p126 = scmp.ne.s32.totalorder %s111, %s125
      %p127 = scmp.eq.s32.totalorder %s38, 0
      %p128 = por %p126, %p127
      %s130 = sadd.s32 %s129, 1
      %p133 = scmp.eq.s32.totalorder %s32, 1
      %p134 = scmp.ne.s32.totalorder %s129, %s131
      %p135 = scmp.eq.s32.totalorder %s32, 0
      %p136 = por %p134, %p135
      %p137 = scmp.ne.s32.totalorder %s129, %s131
      %p138 = scmp.eq.s32.totalorder %s37, 1
      %p139 = por %p137, %p138
      %p140 = scmp.ne.s32.totalorder %s131, %s132
      %p141 = scmp.eq.s32.totalorder %s37, 0
      %p142 = por %p140, %p141
      %p143 = scmp.ne.s32.totalorder %s131, %s132
      %p144 = scmp.eq.s32.totalorder %s38, 1
      %p145 = por %p143, %p144
      %p147 = scmp.ne.s32.totalorder %s132, %s146
      %p148 = scmp.eq.s32.totalorder %s38, 0
      %p149 = por %p147, %p148
      %s151 = sadd.s32 %s150, 1
      %p154 = scmp.eq.s32.totalorder %s32, 1
      %p155 = scmp.ne.s32.totalorder %s150, %s152
      %p156 = scmp.eq.s32.totalorder %s32, 0
      %p157 = por %p155, %p156
      %p158 = scmp.ne.s32.totalorder %s150, %s152
      %p159 = scmp.eq.s32.totalorder %s37, 1
      %p160 = por %p158, %p159
      %p161 = scmp.ne.s32.totalorder %s152, %s153
      %p162 = scmp.eq.s32.totalorder %s37, 0
      %p163 = por %p161, %p162
      %p164 = scmp.ne.s32.totalorder %s152, %s153
      %p165 = scmp.eq.s32.totalorder %s38, 1
      %p166 = por %p164, %p165
      %p168 = scmp.ne.s32.totalorder %s153, %s167
      %p169 = scmp.eq.s32.totalorder %s38, 0
      %p170 = por %p168, %p169
      %s172 = sadd.s32 %s171, 1
      %p175 = scmp.eq.s32.totalorder %s32, 1
      %p176 = scmp.ne.s32.totalorder %s171, %s173
      %p177 = scmp.eq.s32.totalorder %s32, 0
      %p178 = por %p176, %p177
      %p179 = scmp.ne.s32.totalorder %s171, %s173
      %p180 = scmp.eq.s32.totalorder %s37, 1
      %p181 = por %p179, %p180
      %p182 = scmp.ne.s32.totalorder %s173, %s174
      %p183 = scmp.eq.s32.totalorder %s37, 0
      %p184 = por %p182, %p183
      %p185 = scmp.ne.s32.totalorder %s173, %s174
      %p186 = scmp.eq.s32.totalorder %s38, 1
      %p187 = por %p185, %p186
      %p189 = scmp.ne.s32.totalorder %s174, %s188
      %p190 = scmp.eq.s32.totalorder %s38, 0
      %p191 = por %p189, %p190
      %s193 = sadd.s32 %s192, 1
      %p196 = scmp.eq.s32.totalorder %s32, 1
      %p197 = scmp.ne.s32.totalorder %s192, %s194
      %p198 = scmp.eq.s32.totalorder %s32, 0
      %p199 = por %p197, %p198
      %p200 = scmp.ne.s32.totalorder %s192, %s194
      %p201 = scmp.eq.s32.totalorder %s37, 1
      %p202 = por %p200, %p201
      %p203 = scmp.ne.s32.totalorder %s194, %s195
      %p204 = scmp.eq.s32.totalorder %s37, 0
      %p205 = por %p203, %p204
      %p206 = scmp.ne.s32.totalorder %s194, %s195
      %p207 = scmp.eq.s32.totalorder %s38, 1
      %p208 = por %p206, %p207
      %p210 = scmp.ne.s32.totalorder %s195, %s209
      %p211 = scmp.eq.s32.totalorder %s38, 0
      %p212 = por %p210, %p211
      %s214 = sadd.s32 %s213, 1
      %p217 = scmp.eq.s32.totalorder %s32, 1
      %p218 = scmp.ne.s32.totalorder %s213, %s215
      %p219 = scmp.eq.s32.totalorder %s32, 0
      %p220 = por %p218, %p219
      %p221 = scmp.ne.s32.totalorder %s213, %s215
      %p222 = scmp.eq.s32.totalorder %s37, 1
      %p223 = por %p221, %p222
      %p224 = scmp.ne.s32.totalorder %s215, %s216
      %p225 = scmp.eq.s32.totalorder %s37, 0
      %p226 = por %p224, %p225
      %p227 = scmp.ne.s32.totalorder %s215, %s216
      %p228 = scmp.eq.s32.totalorder %s38, 1
      %p229 = por %p227, %p228
      %p231 = scmp.ne.s32.totalorder %s216, %s230
      %p232 = scmp.eq.s32.totalorder %s38, 0
      %p233 = por %p231, %p232
      %s235 = sadd.s32 %s234, 1
      %p238 = scmp.eq.s32.totalorder %s32, 1
      %p239 = scmp.ne.s32.totalorder %s234, %s236
      %p240 = scmp.eq.s32.totalorder %s32, 0
      %p241 = por %p239, %p240
      %p242 = scmp.ne.s32.totalorder %s234, %s236
      %p243 = scmp.eq.s32.totalorder %s37, 1
      %p244 = por %p242, %p243
      %p245 = scmp.ne.s32.totalorder %s236, %s237
      %p246 = scmp.eq.s32.totalorder %s37, 0
      %p247 = por %p245, %p246
      %p248 = scmp.ne.s32.totalorder %s236, %s237
      %p249 = scmp.eq.s32.totalorder %s38, 1
      %p250 = por %p248, %p249
      %p252 = scmp.ne.s32.totalorder %s237, %s251
      %p253 = scmp.eq.s32.totalorder %s38, 0
      %p254 = por %p252, %p253
      %s256 = sadd.s32 %s255, 1
      %p259 = scmp.eq.s32.totalorder %s32, 1
      %p260 = scmp.ne.s32.totalorder %s255, %s257
      %p261 = scmp.eq.s32.totalorder %s32, 0
      %p262 = por %p260, %p261
      %p263 = scmp.ne.s32.totalorder %s255, %s257
      %p264 = scmp.eq.s32.totalorder %s37, 1
      %p265 = por %p263, %p264
      %p266 = scmp.ne.s32.totalorder %s257, %s258
      %p267 = scmp.eq.s32.totalorder %s37, 0
      %p268 = por %p266, %p267
      %p269 = scmp.ne.s32.totalorder %s257, %s258
      %p270 = scmp.eq.s32.totalorder %s38, 1
      %p271 = por %p269, %p270
      %p273 = scmp.ne.s32.totalorder %s258, %s272
      %p274 = scmp.eq.s32.totalorder %s38, 0
      %p275 = por %p273, %p274
      %s277 = sadd.s32 %s276, 1
      %p280 = scmp.eq.s32.totalorder %s32, 1
      %p281 = scmp.ne.s32.totalorder %s276, %s278
      %p282 = scmp.eq.s32.totalorder %s32, 0
      %p283 = por %p281, %p282
      %p284 = scmp.ne.s32.totalorder %s276, %s278
      %p285 = scmp.eq.s32.totalorder %s37, 1
      %p286 = por %p284, %p285
      %p287 = scmp.ne.s32.totalorder %s278, %s279
      %p288 = scmp.eq.s32.totalorder %s37, 0
      %p289 = por %p287, %p288
      %p290 = scmp.ne.s32.totalorder %s278, %s279
      %p291 = scmp.eq.s32.totalorder %s38, 1
      %p292 = por %p290, %p291
      %p294 = scmp.ne.s32.totalorder %s279, %s293
      %p295 = scmp.eq.s32.totalorder %s38, 0
      %p296 = por %p294, %p295
      %s298 = sadd.s32 %s297, 1
      %p301 = scmp.eq.s32.totalorder %s32, 1
      %p302 = scmp.ne.s32.totalorder %s297, %s299
      %p303 = scmp.eq.s32.totalorder %s32, 0
      %p304 = por %p302, %p303
      %p305 = scmp.ne.s32.totalorder %s297, %s299
      %p306 = scmp.eq.s32.totalorder %s37, 1
      %p307 = por %p305, %p306
      %p308 = scmp.ne.s32.totalorder %s299, %s300
      %p309 = scmp.eq.s32.totalorder %s37, 0
      %p310 = por %p308, %p309
      %p311 = scmp.ne.s32.totalorder %s299, %s300
      %p312 = scmp.eq.s32.totalorder %s38, 1
      %p313 = por %p311, %p312
      %p315 = scmp.ne.s32.totalorder %s300, %s314
      %p316 = scmp.eq.s32.totalorder %s38, 0
      %p317 = por %p315, %p316
      %s319 = sadd.s32 %s318, 1
      %p322 = scmp.eq.s32.totalorder %s32, 1
      %p323 = scmp.ne.s32.totalorder %s318, %s320
      %p324 = scmp.eq.s32.totalorder %s32, 0
      %p325 = por %p323, %p324
      %p326 = scmp.ne.s32.totalorder %s318, %s320
      %p327 = scmp.eq.s32.totalorder %s37, 1
      %p328 = por %p326, %p327
      %p329 = scmp.ne.s32.totalorder %s320, %s321
      %p330 = scmp.eq.s32.totalorder %s37, 0
      %p331 = por %p329, %p330
      %p332 = scmp.ne.s32.totalorder %s320, %s321
      %p333 = scmp.eq.s32.totalorder %s38, 1
      %p334 = por %p332, %p333
      %p336 = scmp.ne.s32.totalorder %s321, %s335
      %p337 = scmp.eq.s32.totalorder %s38, 0
      %p338 = por %p336, %p337
      %s340 = sadd.s32 %s339, 1
      %p343 = scmp.eq.s32.totalorder %s32, 1
      %p344 = scmp.ne.s32.totalorder %s339, %s341
      %p345 = scmp.eq.s32.totalorder %s32, 0
      %p346 = por %p344, %p345
      %p347 = scmp.ne.s32.totalorder %s339, %s341
      %p348 = scmp.eq.s32.totalorder %s37, 1
      %p349 = por %p347, %p348
      %p350 = scmp.ne.s32.totalorder %s341, %s342
      %p351 = scmp.eq.s32.totalorder %s37, 0
      %p352 = por %p350, %p351
      %p353 = scmp.ne.s32.totalorder %s341, %s342
      %p354 = scmp.eq.s32.totalorder %s38, 1
      %p355 = por %p353, %p354
      %p357 = scmp.ne.s32.totalorder %s342, %s356
      %p358 = scmp.eq.s32.totalorder %s38, 0
      %p359 = por %p357, %p358
      %s360 = ssub.s32 %s32, %s39
      %p361 = scmp.eq.s32.totalorder %s360, 0
      %s363 = sadd.s32 %s362, 1
      %s364 = scalar_select %p361, %s362, %s363
      %p367 = pneg %p361
      %p368 = scmp.eq.s32.totalorder %s32, 1
      %p369 = por %p367, %p368
      %p370 = scmp.ne.s32.totalorder %s362, %s365
      %p371 = scmp.eq.s32.totalorder %s32, 0
      %p372 = por %p370, %p371
      %p373 = scmp.ne.s32.totalorder %s362, %s365
      %p374 = scmp.eq.s32.totalorder %s37, 1
      %p375 = por %p373, %p374
      %p376 = scmp.ne.s32.totalorder %s365, %s366
      %p377 = scmp.eq.s32.totalorder %s37, 0
      %p378 = por %p376, %p377
      %p379 = scmp.ne.s32.totalorder %s365, %s366
      %p380 = scmp.eq.s32.totalorder %s38, 1
      %p381 = por %p379, %p380
      %p383 = scmp.ne.s32.totalorder %s366, %s382
      %p384 = scmp.eq.s32.totalorder %s38, 0
      %p385 = por %p383, %p384
      %s386 = ssub.s32 %s32, %s39
      %p387 = scmp.eq.s32.totalorder %s386, 0
      %s389 = sadd.s32 %s388, 1
      %s390 = scalar_select %p387, %s388, %s389
      %p393 = pneg %p387
      %p394 = scmp.eq.s32.totalorder %s32, 1
      %p395 = por %p393, %p394
      %p396 = scmp.ne.s32.totalorder %s388, %s391
      %p397 = scmp.eq.s32.totalorder %s32, 0
      %p398 = por %p396, %p397
      %p399 = scmp.ne.s32.totalorder %s388, %s391
      %p400 = scmp.eq.s32.totalorder %s37, 1
      %p401 = por %p399, %p400
      %p402 = scmp.ne.s32.totalorder %s391, %s392
      %p403 = scmp.eq.s32.totalorder %s37, 0
      %p404 = por %p402, %p403
      %p405 = scmp.ne.s32.totalorder %s391, %s392
      %p406 = scmp.eq.s32.totalorder %s38, 1
      %p407 = por %p405, %p406
      %p409 = scmp.ne.s32.totalorder %s392, %s408
      %p410 = scmp.eq.s32.totalorder %s38, 0
      %p411 = por %p409, %p410
      %p412 = scmp.le.s32.totalorder 1, %s32
      %p413 = scmp.lt.s32.totalorder %s32, 3
      %p414 = pnand %p412, %p413
      %p415 = pneg %p414
      // Predicated region
      $region9: #{tpu_custom_call.1} parent=5 // pred_check
        _
      $region10: #{tpu_custom_call.1} parent=5 // pred_check_branch
        %417 = sbr.rel (%p414) target = $region12
      $region11: #{tpu_custom_call.1} parent=5 // pred_region
        %s418 = ssub.s32 %s32, 1
        // Predicated region
        $region13: #{tpu_custom_call.1} parent=11 // pred_check
          %p419 = pneg %p79
        $region14: #{tpu_custom_call.1} parent=11 // pred_check_branch
          %421 = sbr.rel (%p419) target = $region16
        $region15: #{tpu_custom_call.1} parent=11 // pred_region
          _
        $region16: #{tpu_custom_call.1} parent=11 // pred_fallthru
          _
        // Predicated region
        $region17: #{tpu_custom_call.1} parent=11 // pred_check
          %p422 = pneg %p100
        $region18: #{tpu_custom_call.1} parent=11 // pred_check_branch
          %424 = sbr.rel (%p422) target = $region20
        $region19: #{tpu_custom_call.1} parent=11 // pred_region
          _
        $region20: #{tpu_custom_call.1} parent=11 // pred_fallthru
          _
        // Predicated region
        $region21: #{tpu_custom_call.1} parent=11 // pred_check
          %p425 = pneg %p121
        $region22: #{tpu_custom_call.1} parent=11 // pred_check_branch
          %427 = sbr.rel (%p425) target = $region24
        $region23: #{tpu_custom_call.1} parent=11 // pred_region
          _
        $region24: #{tpu_custom_call.1} parent=11 // pred_fallthru
          _
        // Predicated region
        $region25: #{tpu_custom_call.1} parent=11 // pred_check
          %p428 = pneg %p142
        $region26: #{tpu_custom_call.1} parent=11 // pred_check_branch
          %430 = sbr.rel (%p428) target = $region28
        $region27: #{tpu_custom_call.1} parent=11 // pred_region
          _
        $region28: #{tpu_custom_call.1} parent=11 // pred_fallthru
          _
        // Predicated region
        $region29: #{tpu_custom_call.1} parent=11 // pred_check
          %p431 = pneg %p163
        $region30: #{tpu_custom_call.1} parent=11 // pred_check_branch
          %433 = sbr.rel (%p431) target = $region32
        $region31: #{tpu_custom_call.1} parent=11 // pred_region
          %s435 = ssub.s32 256, 256
          %436 = vsyncadd [#allocation3], %s435
          %s437 = sshll.u32 [#allocation2], 4
          %s438 = int_to_ptr.vmem [resolvable:$true] %s437
          %443 = dma.hbm_to_vmem [thread:$0]  %s5, 256, %s438, [#allocation3], 64, 64, 4
        $region32: #{tpu_custom_call.1} parent=11 // pred_fallthru
          _
        // Predicated region
        $region33: #{tpu_custom_call.1} parent=11 // pred_check
          %p444 = pneg %p184
        $region34: #{tpu_custom_call.1} parent=11 // pred_check_branch
          %446 = sbr.rel (%p444) target = $region36
        $region35: #{tpu_custom_call.1} parent=11 // pred_region
          %s448 = ssub.s32 16, 16
          %449 = vsyncadd [#allocation6], %s448
          %s451 = sshll.u32 [#allocation5], 4
          %s452 = int_to_ptr.vmem [resolvable:$true] %s451
          %454 = dma.hbm_to_vmem [thread:$0]  %s6, 16, %s452, [#allocation6]
        $region36: #{tpu_custom_call.1} parent=11 // pred_fallthru
          _
        // Predicated region
        $region37: #{tpu_custom_call.1} parent=11 // pred_check
          %p455 = pneg %p205
        $region38: #{tpu_custom_call.1} parent=11 // pred_check_branch
          %457 = sbr.rel (%p455) target = $region40
        $region39: #{tpu_custom_call.1} parent=11 // pred_region
          %s459 = ssub.s32 256, 256
          %460 = vsyncadd [#allocation6], %s459
          %s461 = sshll.u32 [#allocation7], 4
          %s462 = int_to_ptr.vmem [resolvable:$true] %s461
          %467 = dma.hbm_to_vmem [thread:$0]  %s7, 256, %s462, [#allocation6], 64, 64, 4
        $region40: #{tpu_custom_call.1} parent=11 // pred_fallthru
          _
        // Predicated region
        $region41: #{tpu_custom_call.1} parent=11 // pred_check
          %p468 = pneg %p226
        $region42: #{tpu_custom_call.1} parent=11 // pred_check_branch
          %470 = sbr.rel (%p468) target = $region44
        $region43: #{tpu_custom_call.1} parent=11 // pred_region
          %s472 = ssub.s32 16, 16
          %473 = vsyncadd [#allocation9], %s472
          %s475 = sshll.u32 [#allocation8], 4
          %s476 = int_to_ptr.vmem [resolvable:$true] %s475
          %478 = dma.hbm_to_vmem [thread:$0]  %s8, 16, %s476, [#allocation9]
        $region44: #{tpu_custom_call.1} parent=11 // pred_fallthru
          _
        // Predicated region
        $region45: #{tpu_custom_call.1} parent=11 // pred_check
          %p479 = pneg %p247
        $region46: #{tpu_custom_call.1} parent=11 // pred_check_branch
          %481 = sbr.rel (%p479) target = $region48
        $region47: #{tpu_custom_call.1} parent=11 // pred_region
          _
        $region48: #{tpu_custom_call.1} parent=11 // pred_fallthru
          _
        // Predicated region
        $region49: #{tpu_custom_call.1} parent=11 // pred_check
          %p482 = pneg %p268
        $region50: #{tpu_custom_call.1} parent=11 // pred_check_branch
          %484 = sbr.rel (%p482) target = $region52
        $region51: #{tpu_custom_call.1} parent=11 // pred_region
          _
        $region52: #{tpu_custom_call.1} parent=11 // pred_fallthru
          _
        // Predicated region
        $region53: #{tpu_custom_call.1} parent=11 // pred_check
          %p485 = pneg %p289
        $region54: #{tpu_custom_call.1} parent=11 // pred_check_branch
          %487 = sbr.rel (%p485) target = $region56
        $region55: #{tpu_custom_call.1} parent=11 // pred_region
          _
        $region56: #{tpu_custom_call.1} parent=11 // pred_fallthru
          _
        // Predicated region
        $region57: #{tpu_custom_call.1} parent=11 // pred_check
          %p488 = pneg %p310
        $region58: #{tpu_custom_call.1} parent=11 // pred_check_branch
          %490 = sbr.rel (%p488) target = $region60
        $region59: #{tpu_custom_call.1} parent=11 // pred_region
          _
        $region60: #{tpu_custom_call.1} parent=11 // pred_fallthru
          _
        // Predicated region
        $region61: #{tpu_custom_call.1} parent=11 // pred_check
          %p491 = pneg %p331
        $region62: #{tpu_custom_call.1} parent=11 // pred_check_branch
          %493 = sbr.rel (%p491) target = $region64
        $region63: #{tpu_custom_call.1} parent=11 // pred_region
          _
        $region64: #{tpu_custom_call.1} parent=11 // pred_fallthru
          _
        // Predicated region
        $region65: #{tpu_custom_call.1} parent=11 // pred_check
          %p494 = pneg %p352
        $region66: #{tpu_custom_call.1} parent=11 // pred_check_branch
          %496 = sbr.rel (%p494) target = $region68
        $region67: #{tpu_custom_call.1} parent=11 // pred_region
          _
        $region68: #{tpu_custom_call.1} parent=11 // pred_fallthru
          _
      $region12: #{tpu_custom_call.1} parent=5 // pred_fallthru
        _
      %p497 = scmp.lt.s32.totalorder %s32, 2
      // Predicated region
      $region69: #{tpu_custom_call.1} parent=5 // pred_check
        %p498 = pneg %p497
      $region70: #{tpu_custom_call.1} parent=5 // pred_check_branch
        %500 = sbr.rel (%p498) target = $region72
      $region71: #{tpu_custom_call.1} parent=5 // pred_region
        // Predicated region
        $region73: #{tpu_custom_call.1} parent=71 // pred_check
          %p501 = pneg %p52
        $region74: #{tpu_custom_call.1} parent=71 // pred_check_branch
          %503 = sbr.rel (%p501) target = $region76
        $region75: #{tpu_custom_call.1} parent=71 // pred_region
          %p504 = scmp.lt.s32.totalorder %s32, 1
          %s505 = scalar_select %p504, %s32, 1
          %s506 = smul.addr %s505, 8
          %s507 = scalar_lea.vmem %s0, %s506
        $region76: #{tpu_custom_call.1} parent=71 // pred_fallthru
          _
      $region72: #{tpu_custom_call.1} parent=5 // pred_fallthru
        _
      %p508 = scmp.le.s32.totalorder 1, %s32
      %p509 = scmp.lt.s32.totalorder %s32, 3
      %p510 = pnand %p508, %p509
      %p511 = pneg %p510
      // Predicated region
      $region77: #{tpu_custom_call.1} parent=5 // pred_check
        _
      $region78: #{tpu_custom_call.1} parent=5 // pred_check_branch
        %513 = sbr.rel (%p510) target = $region80
      $region79: #{tpu_custom_call.1} parent=5 // pred_region
        %s514 = ssub.s32 %s32, 1
        // Predicated region
        $region81: #{tpu_custom_call.1} parent=79 // pred_check
          %p515 = pneg %p163
        $region82: #{tpu_custom_call.1} parent=79 // pred_check_branch
          %517 = sbr.rel (%p515) target = $region84
        $region83: #{tpu_custom_call.1} parent=79 // pred_region
          %518 = dma.done [#allocation3], 256
        $region84: #{tpu_custom_call.1} parent=79 // pred_fallthru
          _
        // Predicated region
        $region85: #{tpu_custom_call.1} parent=79 // pred_check
          %p519 = pneg %p184
        $region86: #{tpu_custom_call.1} parent=79 // pred_check_branch
          %521 = sbr.rel (%p519) target = $region88
        $region87: #{tpu_custom_call.1} parent=79 // pred_region
          %522 = dma.done [#allocation6], 16
        $region88: #{tpu_custom_call.1} parent=79 // pred_fallthru
          _
        // Predicated region
        $region89: #{tpu_custom_call.1} parent=79 // pred_check
          %p523 = pneg %p205
        $region90: #{tpu_custom_call.1} parent=79 // pred_check_branch
          %525 = sbr.rel (%p523) target = $region92
        $region91: #{tpu_custom_call.1} parent=79 // pred_region
          %526 = dma.done [#allocation6], 256
        $region92: #{tpu_custom_call.1} parent=79 // pred_fallthru
          _
        // Predicated region
        $region93: #{tpu_custom_call.1} parent=79 // pred_check
          %p527 = pneg %p226
        $region94: #{tpu_custom_call.1} parent=79 // pred_check_branch
          %529 = sbr.rel (%p527) target = $region96
        $region95: #{tpu_custom_call.1} parent=79 // pred_region
          %530 = dma.done [#allocation9], 16
        $region96: #{tpu_custom_call.1} parent=79 // pred_fallthru
          _
        %p531 = scmp.lt.s32.totalorder %s37, 1
        %s532 = scalar_select %p531, %s37, 1
        %s533 = smul.addr %s532, 8
        %s534 = scalar_lea.vmem %s0, %s533
        %p535 = pneg %p58
        %p536 = pneg %p55
        %p537 = pneg %p79
        %p538 = pneg %p76
        %p539 = pneg %p100
        %p540 = pneg %p97
        %p541 = pneg %p121
        %p542 = pneg %p118
        %p543 = pneg %p142
        %p544 = pneg %p139
        %p545 = pneg %p163
        %p546 = pneg %p160
        %p547 = pneg %p184
        %p548 = pneg %p181
        %p549 = pneg %p205
        %p550 = pneg %p202
        %p551 = pneg %p226
        %p552 = pneg %p223
        %p553 = pneg %p247
        %p554 = pneg %p244
        %p555 = pneg %p268
        %p556 = pneg %p265
        %p557 = pneg %p289
        %p558 = pneg %p286
        %p559 = pneg %p310
        %p560 = pneg %p307
        %p561 = pneg %p331
        %p562 = pneg %p328
        %p563 = pneg %p352
        %p564 = pneg %p349
        %p565 = pneg %p378
        %p566 = pneg %p375
        %s567 = sand.u32 %s365, 1
        %s568 = scalar_lea.sflag [#allocation4], %s567
        %s569 = sand.u32 %s365, 1
        %s570 = smul.addr %s569, 8
        %s571 = scalar_lea.vmem [#allocation10], %s570
        %p572 = pneg %p404
        %p573 = pneg %p401
        %s574 = sand.u32 %s391, 1
        %s575 = scalar_lea.sflag [#allocation12], %s574
        %s576 = sand.u32 %s391, 1
        %s577 = smul.addr %s576, 32
        %s578 = scalar_lea.vmem [#allocation11], %s577
        %p579 = scmp.lt.s32.totalorder %s37, 1
        %s580 = scalar_select %p579, %s37, 1
        %s581 = smul.addr %s580, 8
        %s582 = scalar_lea.vmem %s0, %s581
        %v584 = vld [vmem:[%s582] sm:$0xff]
        %v585 = vld [vmem:[%s13] sm:$0x1]
        %v586 = vld [vmem:[%s14] sm:$0x1]
        %v587 = vpack.c.bf16 %v584, %v584
        %v588 = vld [vmem:[%s1] sm:$0xf]
        %v589 = vld [vmem:[%s1 + $0x4] sm:$0xf]
        %v590 = vld [vmem:[%s1 + $0x8] sm:$0xf]
        %v591 = vld [vmem:[%s1 + $0xc] sm:$0xf]
        %v592 = vld [vmem:[%s2] sm:$0x1]
        %v594 = vlaneseq
        %v595 = vshrl.u32 %v594, 7
        %v596 = vsub.s32 0, %v595
        %v597 = vrot.slane %v592, %v596
        %v603 = vunpack.c.l.b16 %v588
        %v604 = vunpack.c.l.b16 %v589
        %v605 = vunpack.c.l.b16 %v590
        %v606 = vunpack.c.l.b16 %v591
        %v607 = vpack.c.b16 %v604, %v603
        %v608 = vpack.c.b16 %v606, %v605
        %vm611 = vcmask 261120
        %v613 = vsel %vm611, %v587, 0
        %615 = vmatprep.subr.bf16.mxu0 0
        %616 = vmatpush1.bf16.msra.mxu0 %v607
        %617 = vmatprep.subr.bf16.mxu0 0
        %618 = vmatpush1.bf16.msra.mxu0 %v608
        %619 = vmatprep.subr.bf16.mxu0 0
        %620 = vmatpush1.bf16.msra.mxu0 0
        %621 = vmatprep.subr.bf16.mxu0 0
        %622 = vmatpush1.bf16.msra.mxu0 0
        %623 = vmatprep.subr.bf16.mxu0 0
        %624 = vmatpush1.bf16.msra.mxu0 0
        %625 = vmatprep.subr.bf16.mxu0 0
        %626 = vmatpush1.bf16.msra.mxu0 0
        %627 = vmatprep.subr.bf16.mxu0 0
        %628 = vmatpush1.bf16.msra.mxu0 0
        %629 = vmatprep.subr.bf16.mxu0 0
        %630 = vmatpush1.bf16.msra.mxu0 0
        %631 = vmatprep.subr.bf16.mxu0 0
        %632 = vmatpush1.bf16.msra.mxu0 0
        %633 = vmatprep.subr.bf16.mxu0 0
        %634 = vmatpush1.bf16.msra.mxu0 0
        %635 = vmatprep.subr.bf16.mxu0 0
        %636 = vmatpush1.bf16.msra.mxu0 0
        %637 = vmatprep.subr.bf16.mxu0 0
        %638 = vmatpush1.bf16.msra.mxu0 0
        %639 = vmatprep.subr.bf16.mxu0 0
        %640 = vmatpush1.bf16.msra.mxu0 0
        %641 = vmatprep.subr.bf16.mxu0 0
        %642 = vmatpush1.bf16.msra.mxu0 0
        %643 = vmatprep.subr.bf16.mxu0 0
        %644 = vmatpush1.bf16.msra.mxu0 0
        %645 = vmatprep.subr.bf16.mxu0 0
        %646 = vmatpush1.bf16.msra.mxu0 0
        %647 = vmatprep.mubr.bf16.mxu0 0
        %648 = vmatmul.mubr.bf16.gmra.mrb[0].mxu0 %v613
        %v649 = vpop.f32.mrb[0].mxu0
        %v650 = vadd.f32 %v597, %v649
        %v651 = vpop.f32.mrb[0].mxu0
        %v652 = vpop.f32.mrb[0].mxu0
        %v653 = vpop.f32.mrb[0].mxu0
        %654 = vdwg.mxu0
        %v655 = vld [vmem:[%s3] sm:$0xf]
        %v656 = vld [vmem:[%s3 + $0x4] sm:$0xf]
        %v657 = vld [vmem:[%s3 + $0x8] sm:$0xf]
        %v658 = vld [vmem:[%s3 + $0xc] sm:$0xf]
        %v659 = vld [vmem:[%s4] sm:$0x1]
        %v661 = vlaneseq
        %v662 = vshrl.u32 %v661, 7
        %v663 = vsub.s32 0, %v662
        %v664 = vrot.slane %v659, %v663
        %v670 = vunpack.c.l.b16 %v655
        %v671 = vunpack.c.l.b16 %v656
        %v672 = vunpack.c.l.b16 %v657
        %v673 = vunpack.c.l.b16 %v658
        %v674 = vpack.c.b16 %v671, %v670
        %v675 = vpack.c.b16 %v673, %v672
        %678 = vmatprep.subr.bf16.mxu0 0
        %679 = vmatpush1.bf16.msra.mxu0 %v674
        %680 = vmatprep.subr.bf16.mxu0 0
        %681 = vmatpush1.bf16.msra.mxu0 %v675
        %682 = vmatprep.subr.bf16.mxu0 0
        %683 = vmatpush1.bf16.msra.mxu0 0
        %684 = vmatprep.subr.bf16.mxu0 0
        %685 = vmatpush1.bf16.msra.mxu0 0
        %686 = vmatprep.subr.bf16.mxu0 0
        %687 = vmatpush1.bf16.msra.mxu0 0
        %688 = vmatprep.subr.bf16.mxu0 0
        %689 = vmatpush1.bf16.msra.mxu0 0
        %690 = vmatprep.subr.bf16.mxu0 0
        %691 = vmatpush1.bf16.msra.mxu0 0
        %692 = vmatprep.subr.bf16.mxu0 0
        %693 = vmatpush1.bf16.msra.mxu0 0
        %694 = vmatprep.subr.bf16.mxu0 0
        %695 = vmatpush1.bf16.msra.mxu0 0
        %696 = vmatprep.subr.bf16.mxu0 0
        %697 = vmatpush1.bf16.msra.mxu0 0
        %698 = vmatprep.subr.bf16.mxu0 0
        %699 = vmatpush1.bf16.msra.mxu0 0
        %700 = vmatprep.subr.bf16.mxu0 0
        %701 = vmatpush1.bf16.msra.mxu0 0
        %702 = vmatprep.subr.bf16.mxu0 0
        %703 = vmatpush1.bf16.msra.mxu0 0
        %704 = vmatprep.subr.bf16.mxu0 0
        %705 = vmatpush1.bf16.msra.mxu0 0
        %706 = vmatprep.subr.bf16.mxu0 0
        %707 = vmatpush1.bf16.msra.mxu0 0
        %708 = vmatprep.subr.bf16.mxu0 0
        %709 = vmatpush1.bf16.msra.mxu0 0
        %710 = vmatprep.mubr.bf16.mxu0 0
        %711 = vmatmul.mubr.bf16.gmra.mrb[0].mxu0 %v613
        %v712 = vpop.f32.mrb[0].mxu0
        %v713 = vadd.f32 %v664, %v712
        %v714 = vpop.f32.mrb[0].mxu0
        %v715 = vpop.f32.mrb[0].mxu0
        %v716 = vpop.f32.mrb[0].mxu0
        %717 = vdwg.mxu0
        %v718 = vld [vmem:[#allocation2] sm:$0xf]
        %v719 = vld [vmem:[#allocation2 + $0x4] sm:$0xf]
        %v720 = vld [vmem:[#allocation2 + $0x8] sm:$0xf]
        %v721 = vld [vmem:[#allocation2 + $0xc] sm:$0xf]
        %v722 = vld [vmem:[#allocation5] sm:$0x1]
        %v724 = vlaneseq
        %v725 = vshrl.u32 %v724, 7
        %v726 = vsub.s32 0, %v725
        %v727 = vrot.slane %v722, %v726
        %v733 = vunpack.c.l.b16 %v718
        %v734 = vunpack.c.l.b16 %v719
        %v735 = vunpack.c.l.b16 %v720
        %v736 = vunpack.c.l.b16 %v721
        %v737 = vpack.c.b16 %v734, %v733
        %v738 = vpack.c.b16 %v736, %v735
        %741 = vmatprep.subr.bf16.mxu0 0
        %742 = vmatpush1.bf16.msra.mxu0 %v737
        %743 = vmatprep.subr.bf16.mxu0 0
        %744 = vmatpush1.bf16.msra.mxu0 %v738
        %745 = vmatprep.subr.bf16.mxu0 0
        %746 = vmatpush1.bf16.msra.mxu0 0
        %747 = vmatprep.subr.bf16.mxu0 0
        %748 = vmatpush1.bf16.msra.mxu0 0
        %749 = vmatprep.subr.bf16.mxu0 0
        %750 = vmatpush1.bf16.msra.mxu0 0
        %751 = vmatprep.subr.bf16.mxu0 0
        %752 = vmatpush1.bf16.msra.mxu0 0
        %753 = vmatprep.subr.bf16.mxu0 0
        %754 = vmatpush1.bf16.msra.mxu0 0
        %755 = vmatprep.subr.bf16.mxu0 0
        %756 = vmatpush1.bf16.msra.mxu0 0
        %757 = vmatprep.subr.bf16.mxu0 0
        %758 = vmatpush1.bf16.msra.mxu0 0
        %759 = vmatprep.subr.bf16.mxu0 0
        %760 = vmatpush1.bf16.msra.mxu0 0
        %761 = vmatprep.subr.bf16.mxu0 0
        %762 = vmatpush1.bf16.msra.mxu0 0
        %763 = vmatprep.subr.bf16.mxu0 0
        %764 = vmatpush1.bf16.msra.mxu0 0
        %765 = vmatprep.subr.bf16.mxu0 0
        %766 = vmatpush1.bf16.msra.mxu0 0
        %767 = vmatprep.subr.bf16.mxu0 0
        %768 = vmatpush1.bf16.msra.mxu0 0
        %769 = vmatprep.subr.bf16.mxu0 0
        %770 = vmatpush1.bf16.msra.mxu0 0
        %771 = vmatprep.subr.bf16.mxu0 0
        %772 = vmatpush1.bf16.msra.mxu0 0
        %773 = vmatprep.mubr.bf16.mxu0 0
        %774 = vmatmul.mubr.bf16.gmra.mrb[0].mxu0 %v613
        %v775 = vpop.f32.mrb[0].mxu0
        %v776 = vadd.f32 %v727, %v775
        %v777 = vpop.f32.mrb[0].mxu0
        %v778 = vpop.f32.mrb[0].mxu0
        %v779 = vpop.f32.mrb[0].mxu0
        %780 = vdwg.mxu0
        %v781 = vmul.f32 %v650, 0.35355338
        %v782 = vpack.c.bf16 %v781, %v781
        %784 = vrot.lane.b32.xlu0 %v782, 120
        %v785 = vpop.permute.xlu0 %784
        %786 = vrot.lane.b32.xlu0 %v782, 112
        %v787 = vpop.permute.xlu0 %786
        %788 = vrot.lane.b32.xlu0 %v782, 104
        %v789 = vpop.permute.xlu0 %788
        %v791 = vunpack.c.l.s4 1983009808
        %v792 = vunpack.c.0.s8 %v791
        %v793 = vlaneseq
        %v794 = vshrl.u32 %v793, 7
        %v795 = vsub.s32 %v792, %v794
        %v796 = vrot.slane %v782, %v795
        %v799 = vunpack.c.l.s4 1983009808
        %v800 = vunpack.c.0.s8 %v799
        %v801 = vlaneseq
        %v802 = vshrl.u32 %v801, 7
        %v803 = vsub.s32 %v800, %v802
        %v804 = vrot.slane %v787, %v803
        %v805 = vcombine.low %v796, %v804
        %v806 = vcombine.high %v796, %v804
        %v808 = vunpack.c.l.s4 1934713408
        %v809 = vunpack.c.0.s8 %v808
        %v810 = vlaneseq
        %v811 = vshrl.u32 %v810, 7
        %v812 = vsub.s32 %v809, %v811
        %v813 = vrot.slane %v805, %v812
        %v815 = vunpack.c.l.s4 1934713408
        %v816 = vunpack.c.0.s8 %v815
        %v817 = vlaneseq
        %v818 = vshrl.u32 %v817, 7
        %v819 = vsub.s32 %v816, %v818
        %v820 = vrot.slane %v806, %v819
        %v821 = vcombine.high %v813, 0
        %v822 = vcombine.high %v820, 0
        %v825 = vunpack.c.l.s4 1983009808
        %v826 = vunpack.c.0.s8 %v825
        %v827 = vlaneseq
        %v828 = vshrl.u32 %v827, 7
        %v829 = vsub.s32 %v826, %v828
        %v830 = vrot.slane %v785, %v829
        %v833 = vunpack.c.l.s4 1983009808
        %v834 = vunpack.c.0.s8 %v833
        %v835 = vlaneseq
        %v836 = vshrl.u32 %v835, 7
        %v837 = vsub.s32 %v834, %v836
        %v838 = vrot.slane %v789, %v837
        %v839 = vcombine.low %v830, %v838
        %v840 = vcombine.high %v830, %v838
        %v842 = vunpack.c.l.s4 1934713408
        %v843 = vunpack.c.0.s8 %v842
        %v844 = vlaneseq
        %v845 = vshrl.u32 %v844, 7
        %v846 = vsub.s32 %v843, %v845
        %v847 = vrot.slane %v839, %v846
        %v849 = vunpack.c.l.s4 1934713408
        %v850 = vunpack.c.0.s8 %v849
        %v851 = vlaneseq
        %v852 = vshrl.u32 %v851, 7
        %v853 = vsub.s32 %v850, %v852
        %v854 = vrot.slane %v840, %v853
        %v855 = vcombine.high %v847, 0
        %v856 = vcombine.high %v854, 0
        %v859 = vpack.i.b16 %v847, %v813
        %v861 = vshrl.u32 %v813, 16
        %v862 = vshrl.u32 %v847, 16
        %v863 = vpack.i.b16 %v862, %v861
        %v867 = vpack.i.b16 %v855, %v821
        %v869 = vshrl.u32 %v821, 16
        %v870 = vshrl.u32 %v855, 16
        %v871 = vpack.i.b16 %v870, %v869
        %v875 = vpack.i.b16 %v854, %v820
        %v877 = vshrl.u32 %v820, 16
        %v878 = vshrl.u32 %v854, 16
        %v879 = vpack.i.b16 %v878, %v877
        %v883 = vpack.i.b16 %v856, %v822
        %v885 = vshrl.u32 %v822, 16
        %v886 = vshrl.u32 %v856, 16
        %v887 = vpack.i.b16 %v886, %v885
        %v889 = vcombine.low %v859, %v875
        %v891 = vunpack.c.l.s4 1983009808
        %v892 = vunpack.c.0.s8 %v891
        %v893 = vlaneseq
        %v894 = vshrl.u32 %v893, 7
        %v895 = vsub.s32 %v892, %v894
        %v896 = vrot.slane %v889, %v895
        %v897 = vcombine.low %v867, %v883
        %v899 = vunpack.c.l.s4 1983009808
        %v900 = vunpack.c.0.s8 %v899
        %v901 = vlaneseq
        %v902 = vshrl.u32 %v901, 7
        %v903 = vsub.s32 %v900, %v902
        %v904 = vrot.slane %v897, %v903
        %v905 = vcombine.low %v896, %v904
        %v907 = vunpack.c.l.s4 1934713408
        %v908 = vunpack.c.0.s8 %v907
        %v909 = vlaneseq
        %v910 = vshrl.u32 %v909, 7
        %v911 = vsub.s32 %v908, %v910
        %v912 = vrot.slane %v905, %v911
        %v913 = vcombine.high %v912, 0
        %v914 = vcombine.low %v863, %v879
        %v916 = vunpack.c.l.s4 1983009808
        %v917 = vunpack.c.0.s8 %v916
        %v918 = vlaneseq
        %v919 = vshrl.u32 %v918, 7
        %v920 = vsub.s32 %v917, %v919
        %v921 = vrot.slane %v914, %v920
        %v922 = vcombine.low %v871, %v887
        %v924 = vunpack.c.l.s4 1983009808
        %v925 = vunpack.c.0.s8 %v924
        %v926 = vlaneseq
        %v927 = vshrl.u32 %v926, 7
        %v928 = vsub.s32 %v925, %v927
        %v929 = vrot.slane %v922, %v928
        %v930 = vcombine.low %v921, %v929
        %v932 = vunpack.c.l.s4 1934713408
        %v933 = vunpack.c.0.s8 %v932
        %v934 = vlaneseq
        %v935 = vshrl.u32 %v934, 7
        %v936 = vsub.s32 %v933, %v935
        %v937 = vrot.slane %v930, %v936
        %v938 = vcombine.high %v937, 0
        %v941 = vpack.i.b16 %v937, %v912
        %v942 = vshrl.u32 %v912, 16
        %v943 = vshrl.u32 %v937, 16
        %v944 = vpack.i.b16 %v943, %v942
        %v947 = vpack.i.b16 %v938, %v913
        %v948 = vshrl.u32 %v913, 16
        %v949 = vshrl.u32 %v938, 16
        %v950 = vpack.i.b16 %v949, %v948
        %v951 = vpack.c.bf16 %v713, %v713
        %953 = vrot.lane.b32.xlu0 %v951, 120
        %v954 = vpop.permute.xlu0 %953
        %955 = vrot.lane.b32.xlu0 %v951, 112
        %v956 = vpop.permute.xlu0 %955
        %957 = vrot.lane.b32.xlu0 %v951, 104
        %v958 = vpop.permute.xlu0 %957
        %v960 = vunpack.c.l.s4 1983009808
        %v961 = vunpack.c.0.s8 %v960
        %v962 = vlaneseq
        %v963 = vshrl.u32 %v962, 7
        %v964 = vsub.s32 %v961, %v963
        %v965 = vrot.slane %v951, %v964
        %v968 = vunpack.c.l.s4 1983009808
        %v969 = vunpack.c.0.s8 %v968
        %v970 = vlaneseq
        %v971 = vshrl.u32 %v970, 7
        %v972 = vsub.s32 %v969, %v971
        %v973 = vrot.slane %v956, %v972
        %v974 = vcombine.low %v965, %v973
        %v975 = vcombine.high %v965, %v973
        %v977 = vunpack.c.l.s4 1934713408
        %v978 = vunpack.c.0.s8 %v977
        %v979 = vlaneseq
        %v980 = vshrl.u32 %v979, 7
        %v981 = vsub.s32 %v978, %v980
        %v982 = vrot.slane %v974, %v981
        %v984 = vunpack.c.l.s4 1934713408
        %v985 = vunpack.c.0.s8 %v984
        %v986 = vlaneseq
        %v987 = vshrl.u32 %v986, 7
        %v988 = vsub.s32 %v985, %v987
        %v989 = vrot.slane %v975, %v988
        %v990 = vcombine.high %v982, 0
        %v991 = vcombine.high %v989, 0
        %v994 = vunpack.c.l.s4 1983009808
        %v995 = vunpack.c.0.s8 %v994
        %v996 = vlaneseq
        %v997 = vshrl.u32 %v996, 7
        %v998 = vsub.s32 %v995, %v997
        %v999 = vrot.slane %v954, %v998
        %v1002 = vunpack.c.l.s4 1983009808
        %v1003 = vunpack.c.0.s8 %v1002
        %v1004 = vlaneseq
        %v1005 = vshrl.u32 %v1004, 7
        %v1006 = vsub.s32 %v1003, %v1005
        %v1007 = vrot.slane %v958, %v1006
        %v1008 = vcombine.low %v999, %v1007
        %v1009 = vcombine.high %v999, %v1007
        %v1011 = vunpack.c.l.s4 1934713408
        %v1012 = vunpack.c.0.s8 %v1011
        %v1013 = vlaneseq
        %v1014 = vshrl.u32 %v1013, 7
        %v1015 = vsub.s32 %v1012, %v1014
        %v1016 = vrot.slane %v1008, %v1015
        %v1018 = vunpack.c.l.s4 1934713408
        %v1019 = vunpack.c.0.s8 %v1018
        %v1020 = vlaneseq
        %v1021 = vshrl.u32 %v1020, 7
        %v1022 = vsub.s32 %v1019, %v1021
        %v1023 = vrot.slane %v1009, %v1022
        %v1024 = vcombine.high %v1016, 0
        %v1025 = vcombine.high %v1023, 0
        %v1028 = vpack.i.b16 %v1016, %v982
        %v1030 = vshrl.u32 %v982, 16
        %v1031 = vshrl.u32 %v1016, 16
        %v1032 = vpack.i.b16 %v1031, %v1030
        %v1036 = vpack.i.b16 %v1024, %v990
        %v1038 = vshrl.u32 %v990, 16
        %v1039 = vshrl.u32 %v1024, 16
        %v1040 = vpack.i.b16 %v1039, %v1038
        %v1044 = vpack.i.b16 %v1023, %v989
        %v1046 = vshrl.u32 %v989, 16
        %v1047 = vshrl.u32 %v1023, 16
        %v1048 = vpack.i.b16 %v1047, %v1046
        %v1052 = vpack.i.b16 %v1025, %v991
        %v1054 = vshrl.u32 %v991, 16
        %v1055 = vshrl.u32 %v1025, 16
        %v1056 = vpack.i.b16 %v1055, %v1054
        %v1058 = vcombine.low %v1028, %v1044
        %v1060 = vunpack.c.l.s4 1983009808
        %v1061 = vunpack.c.0.s8 %v1060
        %v1062 = vlaneseq
        %v1063 = vshrl.u32 %v1062, 7
        %v1064 = vsub.s32 %v1061, %v1063
        %v1065 = vrot.slane %v1058, %v1064
        %v1066 = vcombine.low %v1036, %v1052
        %v1068 = vunpack.c.l.s4 1983009808
        %v1069 = vunpack.c.0.s8 %v1068
        %v1070 = vlaneseq
        %v1071 = vshrl.u32 %v1070, 7
        %v1072 = vsub.s32 %v1069, %v1071
        %v1073 = vrot.slane %v1066, %v1072
        %v1074 = vcombine.low %v1065, %v1073
        %v1076 = vunpack.c.l.s4 1934713408
        %v1077 = vunpack.c.0.s8 %v1076
        %v1078 = vlaneseq
        %v1079 = vshrl.u32 %v1078, 7
        %v1080 = vsub.s32 %v1077, %v1079
        %v1081 = vrot.slane %v1074, %v1080
        %v1082 = vcombine.high %v1081, 0
        %v1083 = vcombine.low %v1032, %v1048
        %v1085 = vunpack.c.l.s4 1983009808
        %v1086 = vunpack.c.0.s8 %v1085
        %v1087 = vlaneseq
        %v1088 = vshrl.u32 %v1087, 7
        %v1089 = vsub.s32 %v1086, %v1088
        %v1090 = vrot.slane %v1083, %v1089
        %v1091 = vcombine.low %v1040, %v1056
        %v1093 = vunpack.c.l.s4 1983009808
        %v1094 = vunpack.c.0.s8 %v1093
        %v1095 = vlaneseq
        %v1096 = vshrl.u32 %v1095, 7
        %v1097 = vsub.s32 %v1094, %v1096
        %v1098 = vrot.slane %v1091, %v1097
        %v1099 = vcombine.low %v1090, %v1098
        %v1101 = vunpack.c.l.s4 1934713408
        %v1102 = vunpack.c.0.s8 %v1101
        %v1103 = vlaneseq
        %v1104 = vshrl.u32 %v1103, 7
        %v1105 = vsub.s32 %v1102, %v1104
        %v1106 = vrot.slane %v1099, %v1105
        %v1107 = vcombine.high %v1106, 0
        %v1110 = vpack.i.b16 %v1106, %v1081
        %v1111 = vshrl.u32 %v1081, 16
        %v1112 = vshrl.u32 %v1106, 16
        %v1113 = vpack.i.b16 %v1112, %v1111
        %v1116 = vpack.i.b16 %v1107, %v1082
        %v1117 = vshrl.u32 %v1082, 16
        %v1118 = vshrl.u32 %v1107, 16
        %v1119 = vpack.i.b16 %v1118, %v1117
        %v1120 = vpack.c.bf16 %v776, %v776
        %1122 = vrot.lane.b32.xlu0 %v1120, 120
        %v1123 = vpop.permute.xlu0 %1122
        %1124 = vrot.lane.b32.xlu0 %v1120, 112
        %v1125 = vpop.permute.xlu0 %1124
        %1126 = vrot.lane.b32.xlu0 %v1120, 104
        %v1127 = vpop.permute.xlu0 %1126
        %v1129 = vunpack.c.l.s4 1983009808
        %v1130 = vunpack.c.0.s8 %v1129
        %v1131 = vlaneseq
        %v1132 = vshrl.u32 %v1131, 7
        %v1133 = vsub.s32 %v1130, %v1132
        %v1134 = vrot.slane %v1120, %v1133
        %v1137 = vunpack.c.l.s4 1983009808
        %v1138 = vunpack.c.0.s8 %v1137
        %v1139 = vlaneseq
        %v1140 = vshrl.u32 %v1139, 7
        %v1141 = vsub.s32 %v1138, %v1140
        %v1142 = vrot.slane %v1125, %v1141
        %v1143 = vcombine.low %v1134, %v1142
        %v1144 = vcombine.high %v1134, %v1142
        %v1146 = vunpack.c.l.s4 1934713408
        %v1147 = vunpack.c.0.s8 %v1146
        %v1148 = vlaneseq
        %v1149 = vshrl.u32 %v1148, 7
        %v1150 = vsub.s32 %v1147, %v1149
        %v1151 = vrot.slane %v1143, %v1150
        %v1153 = vunpack.c.l.s4 1934713408
        %v1154 = vunpack.c.0.s8 %v1153
        %v1155 = vlaneseq
        %v1156 = vshrl.u32 %v1155, 7
        %v1157 = vsub.s32 %v1154, %v1156
        %v1158 = vrot.slane %v1144, %v1157
        %v1159 = vcombine.high %v1151, 0
        %v1160 = vcombine.high %v1158, 0
        %v1163 = vunpack.c.l.s4 1983009808
        %v1164 = vunpack.c.0.s8 %v1163
        %v1165 = vlaneseq
        %v1166 = vshrl.u32 %v1165, 7
        %v1167 = vsub.s32 %v1164, %v1166
        %v1168 = vrot.slane %v1123, %v1167
        %v1171 = vunpack.c.l.s4 1983009808
        %v1172 = vunpack.c.0.s8 %v1171
        %v1173 = vlaneseq
        %v1174 = vshrl.u32 %v1173, 7
        %v1175 = vsub.s32 %v1172, %v1174
        %v1176 = vrot.slane %v1127, %v1175
        %v1177 = vcombine.low %v1168, %v1176
        %v1178 = vcombine.high %v1168, %v1176
        %v1180 = vunpack.c.l.s4 1934713408
        %v1181 = vunpack.c.0.s8 %v1180
        %v1182 = vlaneseq
        %v1183 = vshrl.u32 %v1182, 7
        %v1184 = vsub.s32 %v1181, %v1183
        %v1185 = vrot.slane %v1177, %v1184
        %v1187 = vunpack.c.l.s4 1934713408
        %v1188 = vunpack.c.0.s8 %v1187
        %v1189 = vlaneseq
        %v1190 = vshrl.u32 %v1189, 7
        %v1191 = vsub.s32 %v1188, %v1190
        %v1192 = vrot.slane %v1178, %v1191
        %v1193 = vcombine.high %v1185, 0
        %v1194 = vcombine.high %v1192, 0
        %v1197 = vpack.i.b16 %v1185, %v1151
        %v1199 = vshrl.u32 %v1151, 16
        %v1200 = vshrl.u32 %v1185, 16
        %v1201 = vpack.i.b16 %v1200, %v1199
        %v1205 = vpack.i.b16 %v1193, %v1159
        %v1207 = vshrl.u32 %v1159, 16
        %v1208 = vshrl.u32 %v1193, 16
        %v1209 = vpack.i.b16 %v1208, %v1207
        %v1213 = vpack.i.b16 %v1192, %v1158
        %v1215 = vshrl.u32 %v1158, 16
        %v1216 = vshrl.u32 %v1192, 16
        %v1217 = vpack.i.b16 %v1216, %v1215
        %v1221 = vpack.i.b16 %v1194, %v1160
        %v1223 = vshrl.u32 %v1160, 16
        %v1224 = vshrl.u32 %v1194, 16
        %v1225 = vpack.i.b16 %v1224, %v1223
        %v1227 = vcombine.low %v1197, %v1213
        %v1229 = vunpack.c.l.s4 1983009808
        %v1230 = vunpack.c.0.s8 %v1229
        %v1231 = vlaneseq
        %v1232 = vshrl.u32 %v1231, 7
        %v1233 = vsub.s32 %v1230, %v1232
        %v1234 = vrot.slane %v1227, %v1233
        %v1235 = vcombine.low %v1205, %v1221
        %v1237 = vunpack.c.l.s4 1983009808
        %v1238 = vunpack.c.0.s8 %v1237
        %v1239 = vlaneseq
        %v1240 = vshrl.u32 %v1239, 7
        %v1241 = vsub.s32 %v1238, %v1240
        %v1242 = vrot.slane %v1235, %v1241
        %v1243 = vcombine.low %v1234, %v1242
        %v1245 = vunpack.c.l.s4 1934713408
        %v1246 = vunpack.c.0.s8 %v1245
        %v1247 = vlaneseq
        %v1248 = vshrl.u32 %v1247, 7
        %v1249 = vsub.s32 %v1246, %v1248
        %v1250 = vrot.slane %v1243, %v1249
        %v1251 = vcombine.high %v1250, 0
        %v1252 = vcombine.low %v1201, %v1217
        %v1254 = vunpack.c.l.s4 1983009808
        %v1255 = vunpack.c.0.s8 %v1254
        %v1256 = vlaneseq
        %v1257 = vshrl.u32 %v1256, 7
        %v1258 = vsub.s32 %v1255, %v1257
        %v1259 = vrot.slane %v1252, %v1258
        %v1260 = vcombine.low %v1209, %v1225
        %v1262 = vunpack.c.l.s4 1983009808
        %v1263 = vunpack.c.0.s8 %v1262
        %v1264 = vlaneseq
        %v1265 = vshrl.u32 %v1264, 7
        %v1266 = vsub.s32 %v1263, %v1265
        %v1267 = vrot.slane %v1260, %v1266
        %v1268 = vcombine.low %v1259, %v1267
        %v1270 = vunpack.c.l.s4 1934713408
        %v1271 = vunpack.c.0.s8 %v1270
        %v1272 = vlaneseq
        %v1273 = vshrl.u32 %v1272, 7
        %v1274 = vsub.s32 %v1271, %v1273
        %v1275 = vrot.slane %v1268, %v1274
        %v1276 = vcombine.high %v1275, 0
        %v1279 = vpack.i.b16 %v1275, %v1250
        %v1280 = vshrl.u32 %v1250, 16
        %v1281 = vshrl.u32 %v1275, 16
        %v1282 = vpack.i.b16 %v1281, %v1280
        %v1285 = vpack.i.b16 %v1276, %v1251
        %v1286 = vshrl.u32 %v1251, 16
        %v1287 = vshrl.u32 %v1276, 16
        %v1288 = vpack.i.b16 %v1287, %v1286
        %vm1289 = vcmask 64512
        %v1291 = vsel %vm1289, %v941, 0
        %v1294 = vsel %vm1289, %v1110, 0
        %1296 = vmatprep.subr.bf16.mxu0 0
        %1297 = vmatpush1.bf16.xpose.msra.mxu0 %v1294
        %1298 = vmatprep.subr.bf16.mxu0 0
        %1299 = vmatpush1.bf16.xpose.msra.mxu0 0
        %1300 = vmatprep.subr.bf16.mxu0 0
        %1301 = vmatpush1.bf16.xpose.msra.mxu0 0
        %1302 = vmatprep.subr.bf16.mxu0 0
        %1303 = vmatpush1.bf16.xpose.msra.mxu0 0
        %1304 = vmatprep.subr.bf16.mxu0 0
        %1305 = vmatpush1.bf16.xpose.msra.mxu0 0
        %1306 = vmatprep.subr.bf16.mxu0 0
        %1307 = vmatpush1.bf16.xpose.msra.mxu0 0
        %1308 = vmatprep.subr.bf16.mxu0 0
        %1309 = vmatpush1.bf16.xpose.msra.mxu0 0
        %1310 = vmatprep.subr.bf16.mxu0 0
        %1311 = vmatpush1.bf16.xpose.msra.mxu0 0
        %1312 = vmatprep.subr.bf16.mxu0 0
        %1313 = vmatpush1.bf16.xpose.msra.mxu0 0
        %1314 = vmatprep.subr.bf16.mxu0 0
        %1315 = vmatpush1.bf16.xpose.msra.mxu0 0
        %1316 = vmatprep.subr.bf16.mxu0 0
        %1317 = vmatpush1.bf16.xpose.msra.mxu0 0
        %1318 = vmatprep.subr.bf16.mxu0 0
        %1319 = vmatpush1.bf16.xpose.msra.mxu0 0
        %1320 = vmatprep.subr.bf16.mxu0 0
        %1321 = vmatpush1.bf16.xpose.msra.mxu0 0
        %1322 = vmatprep.subr.bf16.mxu0 0
        %1323 = vmatpush1.bf16.xpose.msra.mxu0 0
        %1324 = vmatprep.subr.bf16.mxu0 0
        %1325 = vmatpush1.bf16.xpose.msra.mxu0 0
        %1326 = vmatprep.subr.bf16.mxu0 0
        %1327 = vmatpush1.bf16.xpose.msra.mxu0 0
        %1328 = vmatprep.mubr.bf16.mxu0 0
        %1329 = vmatmul.mubr.bf16.gmra.mrb[0].mxu0 %v1291
        %v1330 = vpop.f32.mrb[0].mxu0
        %v1331 = vadd.f32 0.0, %v1330
        %v1332 = vpop.f32.mrb[0].mxu0
        %v1333 = vpop.f32.mrb[0].mxu0
        %v1334 = vpop.f32.mrb[0].mxu0
        %1335 = vdwg.mxu0
        %v1337 = vsel %vm1289, %v944, 0
        %v1340 = vsel %vm1289, %v1113, 0
        %1342 = vmatprep.subr.bf16.mxu0 0
        %1343 = vmatpush1.bf16.xpose.msra.mxu0 %v1340
        %1344 = vmatprep.subr.bf16.mxu0 0
        %1345 = vmatpush1.bf16.xpose.msra.mxu0 0
        %1346 = vmatprep.subr.bf16.mxu0 0
        %1347 = vmatpush1.bf16.xpose.msra.mxu0 0
        %1348 = vmatprep.subr.bf16.mxu0 0
        %1349 = vmatpush1.bf16.xpose.msra.mxu0 0
        %1350 = vmatprep.subr.bf16.mxu0 0
        %1351 = vmatpush1.bf16.xpose.msra.mxu0 0
        %1352 = vmatprep.subr.bf16.mxu0 0
        %1353 = vmatpush1.bf16.xpose.msra.mxu0 0
        %1354 = vmatprep.subr.bf16.mxu0 0
        %1355 = vmatpush1.bf16.xpose.msra.mxu0 0
        %1356 = vmatprep.subr.bf16.mxu0 0
        %1357 = vmatpush1.bf16.xpose.msra.mxu0 0
        %1358 = vmatprep.subr.bf16.mxu0 0
        %1359 = vmatpush1.bf16.xpose.msra.mxu0 0
        %1360 = vmatprep.subr.bf16.mxu0 0
        %1361 = vmatpush1.bf16.xpose.msra.mxu0 0
        %1362 = vmatprep.subr.bf16.mxu0 0
        %1363 = vmatpush1.bf16.xpose.msra.mxu0 0
        %1364 = vmatprep.subr.bf16.mxu0 0
        %1365 = vmatpush1.bf16.xpose.msra.mxu0 0
        %1366 = vmatprep.subr.bf16.mxu0 0
        %1367 = vmatpush1.bf16.xpose.msra.mxu0 0
        %1368 = vmatprep.subr.bf16.mxu0 0
        %1369 = vmatpush1.bf16.xpose.msra.mxu0 0
        %1370 = vmatprep.subr.bf16.mxu0 0
        %1371 = vmatpush1.bf16.xpose.msra.mxu0 0
        %1372 = vmatprep.subr.bf16.mxu0 0
        %1373 = vmatpush1.bf16.xpose.msra.mxu0 0
        %1374 = vmatprep.mubr.bf16.mxu0 0
        %1375 = vmatmul.mubr.bf16.gmra.mrb[0].mxu0 %v1337
        %v1376 = vpop.f32.mrb[0].mxu0
        %v1377 = vadd.f32 0.0, %v1376
        %v1378 = vpop.f32.mrb[0].mxu0
        %v1379 = vpop.f32.mrb[0].mxu0
        %v1380 = vpop.f32.mrb[0].mxu0
        %1381 = vdwg.mxu0
        %v1383 = vsel %vm1289, %v947, 0
        %v1386 = vsel %vm1289, %v1116, 0
        %1388 = vmatprep.subr.bf16.mxu0 0
        %1389 = vmatpush1.bf16.xpose.msra.mxu0 %v1386
        %1390 = vmatprep.subr.bf16.mxu0 0
        %1391 = vmatpush1.bf16.xpose.msra.mxu0 0
        %1392 = vmatprep.subr.bf16.mxu0 0
        %1393 = vmatpush1.bf16.xpose.msra.mxu0 0
        %1394 = vmatprep.subr.bf16.mxu0 0
        %1395 = vmatpush1.bf16.xpose.msra.mxu0 0
        %1396 = vmatprep.subr.bf16.mxu0 0
        %1397 = vmatpush1.bf16.xpose.msra.mxu0 0
        %1398 = vmatprep.subr.bf16.mxu0 0
        %1399 = vmatpush1.bf16.xpose.msra.mxu0 0
        %1400 = vmatprep.subr.bf16.mxu0 0
        %1401 = vmatpush1.bf16.xpose.msra.mxu0 0
        %1402 = vmatprep.subr.bf16.mxu0 0
        %1403 = vmatpush1.bf16.xpose.msra.mxu0 0
        %1404 = vmatprep.subr.bf16.mxu0 0
        %1405 = vmatpush1.bf16.xpose.msra.mxu0 0
        %1406 = vmatprep.subr.bf16.mxu0 0
        %1407 = vmatpush1.bf16.xpose.msra.mxu0 0
        %1408 = vmatprep.subr.bf16.mxu0 0
        %1409 = vmatpush1.bf16.xpose.msra.mxu0 0
        %1410 = vmatprep.subr.bf16.mxu0 0
        %1411 = vmatpush1.bf16.xpose.msra.mxu0 0
        %1412 = vmatprep.subr.bf16.mxu0 0
        %1413 = vmatpush1.bf16.xpose.msra.mxu0 0
        %1414 = vmatprep.subr.bf16.mxu0 0
        %1415 = vmatpush1.bf16.xpose.msra.mxu0 0
        %1416 = vmatprep.subr.bf16.mxu0 0
        %1417 = vmatpush1.bf16.xpose.msra.mxu0 0
        %1418 = vmatprep.subr.bf16.mxu0 0
        %1419 = vmatpush1.bf16.xpose.msra.mxu0 0
        %1420 = vmatprep.mubr.bf16.mxu0 0
        %1421 = vmatmul.mubr.bf16.gmra.mrb[0].mxu0 %v1383
        %v1422 = vpop.f32.mrb[0].mxu0
        %v1423 = vadd.f32 0.0, %v1422
        %v1424 = vpop.f32.mrb[0].mxu0
        %v1425 = vpop.f32.mrb[0].mxu0
        %v1426 = vpop.f32.mrb[0].mxu0
        %1427 = vdwg.mxu0
        %v1429 = vsel %vm1289, %v950, 0
        %v1432 = vsel %vm1289, %v1119, 0
        %1434 = vmatprep.subr.bf16.mxu0 0
        %1435 = vmatpush1.bf16.xpose.msra.mxu0 %v1432
        %1436 = vmatprep.subr.bf16.mxu0 0
        %1437 = vmatpush1.bf16.xpose.msra.mxu0 0
        %1438 = vmatprep.subr.bf16.mxu0 0
        %1439 = vmatpush1.bf16.xpose.msra.mxu0 0
        %1440 = vmatprep.subr.bf16.mxu0 0
        %1441 = vmatpush1.bf16.xpose.msra.mxu0 0
        %1442 = vmatprep.subr.bf16.mxu0 0
        %1443 = vmatpush1.bf16.xpose.msra.mxu0 0
        %1444 = vmatprep.subr.bf16.mxu0 0
        %1445 = vmatpush1.bf16.xpose.msra.mxu0 0
        %1446 = vmatprep.subr.bf16.mxu0 0
        %1447 = vmatpush1.bf16.xpose.msra.mxu0 0
        %1448 = vmatprep.subr.bf16.mxu0 0
        %1449 = vmatpush1.bf16.xpose.msra.mxu0 0
        %1450 = vmatprep.subr.bf16.mxu0 0
        %1451 = vmatpush1.bf16.xpose.msra.mxu0 0
        %1452 = vmatprep.subr.bf16.mxu0 0
        %1453 = vmatpush1.bf16.xpose.msra.mxu0 0
        %1454 = vmatprep.subr.bf16.mxu0 0
        %1455 = vmatpush1.bf16.xpose.msra.mxu0 0
        %1456 = vmatprep.subr.bf16.mxu0 0
        %1457 = vmatpush1.bf16.xpose.msra.mxu0 0
        %1458 = vmatprep.subr.bf16.mxu0 0
        %1459 = vmatpush1.bf16.xpose.msra.mxu0 0
        %1460 = vmatprep.subr.bf16.mxu0 0
        %1461 = vmatpush1.bf16.xpose.msra.mxu0 0
        %1462 = vmatprep.subr.bf16.mxu0 0
        %1463 = vmatpush1.bf16.xpose.msra.mxu0 0
        %1464 = vmatprep.subr.bf16.mxu0 0
        %1465 = vmatpush1.bf16.xpose.msra.mxu0 0
        %1466 = vmatprep.mubr.bf16.mxu0 0
        %1467 = vmatmul.mubr.bf16.gmra.mrb[0].mxu0 %v1429
        %v1468 = vpop.f32.mrb[0].mxu0
        %v1469 = vadd.f32 0.0, %v1468
        %v1470 = vpop.f32.mrb[0].mxu0
        %v1471 = vpop.f32.mrb[0].mxu0
        %v1472 = vpop.f32.mrb[0].mxu0
        %1473 = vdwg.mxu0
        %v1474 = vsel %vm1289, %v1331, -inf
        %1475 = vmax.xlane.f32.xlu0 %v1474
        %v1476 = vpop.xlane.xlu0 %1475
        %v1477 = vsel %vm1289, %v1377, -inf
        %1478 = vmax.xlane.f32.xlu0 %v1477
        %v1479 = vpop.xlane.xlu0 %1478
        %v1480 = vsel %vm1289, %v1423, -inf
        %1481 = vmax.xlane.f32.xlu0 %v1480
        %v1482 = vpop.xlane.xlu0 %1481
        %v1483 = vsel %vm1289, %v1469, -inf
        %1484 = vmax.xlane.f32.xlu0 %v1483
        %v1485 = vpop.xlane.xlu0 %1484
        %v1486 = vsub.f32 %v1331, %v1476
        %v1487 = vsub.f32 %v1377, %v1479
        %v1488 = vsub.f32 %v1423, %v1482
        %v1489 = vsub.f32 %v1469, %v1485
        %v1490 = vmul.f32 %v1486, 1.442695
        %v1491 = vpow.pop %v1490
        %v1492 = vmul.f32 %v1487, 1.442695
        %v1493 = vpow.pop %v1492
        %v1494 = vmul.f32 %v1488, 1.442695
        %v1495 = vpow.pop %v1494
        %v1496 = vmul.f32 %v1489, 1.442695
        %v1497 = vpow.pop %v1496
        %v1498 = vsel %vm1289, %v1491, 0.0
        %1499 = vadd.xlane.f32.xlu0 %v1498
        %v1500 = vpop.xlane.xlu0 %1499
        %v1501 = vsel %vm1289, %v1493, 0.0
        %1502 = vadd.xlane.f32.xlu0 %v1501
        %v1503 = vpop.xlane.xlu0 %1502
        %v1504 = vsel %vm1289, %v1495, 0.0
        %1505 = vadd.xlane.f32.xlu0 %v1504
        %v1506 = vpop.xlane.xlu0 %1505
        %v1507 = vsel %vm1289, %v1497, 0.0
        %1508 = vadd.xlane.f32.xlu0 %v1507
        %v1509 = vpop.xlane.xlu0 %1508
        %v1510 = vrcp.pop %v1500
        %v1511 = vrcp.pop %v1503
        %v1512 = vrcp.pop %v1506
        %v1513 = vrcp.pop %v1509
        %v1514 = vmul.f32 %v1491, %v1510
        %v1515 = vmul.f32 %v1493, %v1511
        %v1516 = vmul.f32 %v1495, %v1512
        %v1517 = vmul.f32 %v1497, %v1513
        %1518 = vst.msk [vmem:[%s578] sm:$0xff] %vm1289, %v1514
        %1519 = vst.msk [vmem:[%s578 + $0x8] sm:$0xff] %vm1289, %v1515
        %1520 = vst.msk [vmem:[%s578 + $0x10] sm:$0xff] %vm1289, %v1516
        %1521 = vst.msk [vmem:[%s578 + $0x18] sm:$0xff] %vm1289, %v1517
        %v1522 = vpack.c.bf16 %v1514, %v1514
        %v1523 = vpack.c.bf16 %v1515, %v1515
        %v1524 = vpack.c.bf16 %v1516, %v1516
        %v1525 = vpack.c.bf16 %v1517, %v1517
        %v1527 = vsel %vm1289, %v1522, 0
        %vm1529 = vcmask 1043456
        %v1531 = vsel %vm1529, %v1279, 0
        %1533 = vmatprep.subr.bf16.mxu0 0
        %1534 = vmatpush1.bf16.msra.mxu0 %v1531
        %1535 = vmatprep.subr.bf16.mxu0 0
        %1536 = vmatpush1.bf16.msra.mxu0 0
        %1537 = vmatprep.subr.bf16.mxu0 0
        %1538 = vmatpush1.bf16.msra.mxu0 0
        %1539 = vmatprep.subr.bf16.mxu0 0
        %1540 = vmatpush1.bf16.msra.mxu0 0
        %1541 = vmatprep.subr.bf16.mxu0 0
        %1542 = vmatpush1.bf16.msra.mxu0 0
        %1543 = vmatprep.subr.bf16.mxu0 0
        %1544 = vmatpush1.bf16.msra.mxu0 0
        %1545 = vmatprep.subr.bf16.mxu0 0
        %1546 = vmatpush1.bf16.msra.mxu0 0
        %1547 = vmatprep.subr.bf16.mxu0 0
        %1548 = vmatpush1.bf16.msra.mxu0 0
        %1549 = vmatprep.subr.bf16.mxu0 0
        %1550 = vmatpush1.bf16.msra.mxu0 0
        %1551 = vmatprep.subr.bf16.mxu0 0
        %1552 = vmatpush1.bf16.msra.mxu0 0
        %1553 = vmatprep.subr.bf16.mxu0 0
        %1554 = vmatpush1.bf16.msra.mxu0 0
        %1555 = vmatprep.subr.bf16.mxu0 0
        %1556 = vmatpush1.bf16.msra.mxu0 0
        %1557 = vmatprep.subr.bf16.mxu0 0
        %1558 = vmatpush1.bf16.msra.mxu0 0
        %1559 = vmatprep.subr.bf16.mxu0 0
        %1560 = vmatpush1.bf16.msra.mxu0 0
        %1561 = vmatprep.subr.bf16.mxu0 0
        %1562 = vmatpush1.bf16.msra.mxu0 0
        %1563 = vmatprep.subr.bf16.mxu0 0
        %1564 = vmatpush1.bf16.msra.mxu0 0
        %1565 = vmatprep.mubr.bf16.mxu0 0
        %1566 = vmatmul.mubr.bf16.gmra.mrb[0].mxu0 %v1527
        %v1567 = vpop.f32.mrb[0].mxu0
        %v1568 = vadd.f32 0.0, %v1567
        %v1569 = vpop.f32.mrb[0].mxu0
        %v1570 = vpop.f32.mrb[0].mxu0
        %v1571 = vpop.f32.mrb[0].mxu0
        %1572 = vdwg.mxu0
        %v1574 = vsel %vm1289, %v1523, 0
        %v1577 = vsel %vm1529, %v1282, 0
        %1579 = vmatprep.subr.bf16.mxu0 0
        %1580 = vmatpush1.bf16.msra.mxu0 %v1577
        %1581 = vmatprep.subr.bf16.mxu0 0
        %1582 = vmatpush1.bf16.msra.mxu0 0
        %1583 = vmatprep.subr.bf16.mxu0 0
        %1584 = vmatpush1.bf16.msra.mxu0 0
        %1585 = vmatprep.subr.bf16.mxu0 0
        %1586 = vmatpush1.bf16.msra.mxu0 0
        %1587 = vmatprep.subr.bf16.mxu0 0
        %1588 = vmatpush1.bf16.msra.mxu0 0
        %1589 = vmatprep.subr.bf16.mxu0 0
        %1590 = vmatpush1.bf16.msra.mxu0 0
        %1591 = vmatprep.subr.bf16.mxu0 0
        %1592 = vmatpush1.bf16.msra.mxu0 0
        %1593 = vmatprep.subr.bf16.mxu0 0
        %1594 = vmatpush1.bf16.msra.mxu0 0
        %1595 = vmatprep.subr.bf16.mxu0 0
        %1596 = vmatpush1.bf16.msra.mxu0 0
        %1597 = vmatprep.subr.bf16.mxu0 0
        %1598 = vmatpush1.bf16.msra.mxu0 0
        %1599 = vmatprep.subr.bf16.mxu0 0
        %1600 = vmatpush1.bf16.msra.mxu0 0
        %1601 = vmatprep.subr.bf16.mxu0 0
        %1602 = vmatpush1.bf16.msra.mxu0 0
        %1603 = vmatprep.subr.bf16.mxu0 0
        %1604 = vmatpush1.bf16.msra.mxu0 0
        %1605 = vmatprep.subr.bf16.mxu0 0
        %1606 = vmatpush1.bf16.msra.mxu0 0
        %1607 = vmatprep.subr.bf16.mxu0 0
        %1608 = vmatpush1.bf16.msra.mxu0 0
        %1609 = vmatprep.subr.bf16.mxu0 0
        %1610 = vmatpush1.bf16.msra.mxu0 0
        %1611 = vmatprep.mubr.bf16.mxu0 0
        %1612 = vmatmul.mubr.bf16.gmra.mrb[0].mxu0 %v1574
        %v1613 = vpop.f32.mrb[0].mxu0
        %v1614 = vadd.f32 0.0, %v1613
        %v1615 = vpop.f32.mrb[0].mxu0
        %v1616 = vpop.f32.mrb[0].mxu0
        %v1617 = vpop.f32.mrb[0].mxu0
        %1618 = vdwg.mxu0
        %v1620 = vsel %vm1289, %v1524, 0
        %v1623 = vsel %vm1529, %v1285, 0
        %1625 = vmatprep.subr.bf16.mxu0 0
        %1626 = vmatpush1.bf16.msra.mxu0 %v1623
        %1627 = vmatprep.subr.bf16.mxu0 0
        %1628 = vmatpush1.bf16.msra.mxu0 0
        %1629 = vmatprep.subr.bf16.mxu0 0
        %1630 = vmatpush1.bf16.msra.mxu0 0
        %1631 = vmatprep.subr.bf16.mxu0 0
        %1632 = vmatpush1.bf16.msra.mxu0 0
        %1633 = vmatprep.subr.bf16.mxu0 0
        %1634 = vmatpush1.bf16.msra.mxu0 0
        %1635 = vmatprep.subr.bf16.mxu0 0
        %1636 = vmatpush1.bf16.msra.mxu0 0
        %1637 = vmatprep.subr.bf16.mxu0 0
        %1638 = vmatpush1.bf16.msra.mxu0 0
        %1639 = vmatprep.subr.bf16.mxu0 0
        %1640 = vmatpush1.bf16.msra.mxu0 0
        %1641 = vmatprep.subr.bf16.mxu0 0
        %1642 = vmatpush1.bf16.msra.mxu0 0
        %1643 = vmatprep.subr.bf16.mxu0 0
        %1644 = vmatpush1.bf16.msra.mxu0 0
        %1645 = vmatprep.subr.bf16.mxu0 0
        %1646 = vmatpush1.bf16.msra.mxu0 0
        %1647 = vmatprep.subr.bf16.mxu0 0
        %1648 = vmatpush1.bf16.msra.mxu0 0
        %1649 = vmatprep.subr.bf16.mxu0 0
        %1650 = vmatpush1.bf16.msra.mxu0 0
        %1651 = vmatprep.subr.bf16.mxu0 0
        %1652 = vmatpush1.bf16.msra.mxu0 0
        %1653 = vmatprep.subr.bf16.mxu0 0
        %1654 = vmatpush1.bf16.msra.mxu0 0
        %1655 = vmatprep.subr.bf16.mxu0 0
        %1656 = vmatpush1.bf16.msra.mxu0 0
        %1657 = vmatprep.mubr.bf16.mxu0 0
        %1658 = vmatmul.mubr.bf16.gmra.mrb[0].mxu0 %v1620
        %v1659 = vpop.f32.mrb[0].mxu0
        %v1660 = vadd.f32 0.0, %v1659
        %v1661 = vpop.f32.mrb[0].mxu0
        %v1662 = vpop.f32.mrb[0].mxu0
        %v1663 = vpop.f32.mrb[0].mxu0
        %1664 = vdwg.mxu0
        %v1666 = vsel %vm1289, %v1525, 0
        %v1669 = vsel %vm1529, %v1288, 0
        %1671 = vmatprep.subr.bf16.mxu0 0
        %1672 = vmatpush1.bf16.msra.mxu0 %v1669
        %1673 = vmatprep.subr.bf16.mxu0 0
        %1674 = vmatpush1.bf16.msra.mxu0 0
        %1675 = vmatprep.subr.bf16.mxu0 0
        %1676 = vmatpush1.bf16.msra.mxu0 0
        %1677 = vmatprep.subr.bf16.mxu0 0
        %1678 = vmatpush1.bf16.msra.mxu0 0
        %1679 = vmatprep.subr.bf16.mxu0 0
        %1680 = vmatpush1.bf16.msra.mxu0 0
        %1681 = vmatprep.subr.bf16.mxu0 0
        %1682 = vmatpush1.bf16.msra.mxu0 0
        %1683 = vmatprep.subr.bf16.mxu0 0
        %1684 = vmatpush1.bf16.msra.mxu0 0
        %1685 = vmatprep.subr.bf16.mxu0 0
        %1686 = vmatpush1.bf16.msra.mxu0 0
        %1687 = vmatprep.subr.bf16.mxu0 0
        %1688 = vmatpush1.bf16.msra.mxu0 0
        %1689 = vmatprep.subr.bf16.mxu0 0
        %1690 = vmatpush1.bf16.msra.mxu0 0
        %1691 = vmatprep.subr.bf16.mxu0 0
        %1692 = vmatpush1.bf16.msra.mxu0 0
        %1693 = vmatprep.subr.bf16.mxu0 0
        %1694 = vmatpush1.bf16.msra.mxu0 0
        %1695 = vmatprep.subr.bf16.mxu0 0
        %1696 = vmatpush1.bf16.msra.mxu0 0
        %1697 = vmatprep.subr.bf16.mxu0 0
        %1698 = vmatpush1.bf16.msra.mxu0 0
        %1699 = vmatprep.subr.bf16.mxu0 0
        %1700 = vmatpush1.bf16.msra.mxu0 0
        %1701 = vmatprep.subr.bf16.mxu0 0
        %1702 = vmatpush1.bf16.msra.mxu0 0
        %1703 = vmatprep.mubr.bf16.mxu0 0
        %1704 = vmatmul.mubr.bf16.gmra.mrb[0].mxu0 %v1666
        %v1705 = vpop.f32.mrb[0].mxu0
        %v1706 = vadd.f32 0.0, %v1705
        %v1707 = vpop.f32.mrb[0].mxu0
        %v1708 = vpop.f32.mrb[0].mxu0
        %v1709 = vpop.f32.mrb[0].mxu0
        %1710 = vdwg.mxu0
        %v1711 = vcombine.low %v1568, %v1660
        %v1712 = vcombine.high %v1568, %v1660
        %v1714 = vunpack.c.l.s4 1983009808
        %v1715 = vunpack.c.0.s8 %v1714
        %v1716 = vlaneseq
        %v1717 = vshrl.u32 %v1716, 7
        %v1718 = vsub.s32 %v1715, %v1717
        %v1719 = vrot.slane %v1711, %v1718
        %v1721 = vunpack.c.l.s4 1983009808
        %v1722 = vunpack.c.0.s8 %v1721
        %v1723 = vlaneseq
        %v1724 = vshrl.u32 %v1723, 7
        %v1725 = vsub.s32 %v1722, %v1724
        %v1726 = vrot.slane %v1712, %v1725
        %v1727 = vcombine.low %v1614, %v1706
        %v1728 = vcombine.high %v1614, %v1706
        %v1730 = vunpack.c.l.s4 1983009808
        %v1731 = vunpack.c.0.s8 %v1730
        %v1732 = vlaneseq
        %v1733 = vshrl.u32 %v1732, 7
        %v1734 = vsub.s32 %v1731, %v1733
        %v1735 = vrot.slane %v1727, %v1734
        %v1737 = vunpack.c.l.s4 1983009808
        %v1738 = vunpack.c.0.s8 %v1737
        %v1739 = vlaneseq
        %v1740 = vshrl.u32 %v1739, 7
        %v1741 = vsub.s32 %v1738, %v1740
        %v1742 = vrot.slane %v1728, %v1741
        %v1743 = vcombine.low %v1719, %v1735
        %v1744 = vcombine.high %v1719, %v1735
        %v1746 = vunpack.c.l.s4 1934713408
        %v1747 = vunpack.c.0.s8 %v1746
        %v1748 = vlaneseq
        %v1749 = vshrl.u32 %v1748, 7
        %v1750 = vsub.s32 %v1747, %v1749
        %v1751 = vrot.slane %v1743, %v1750
        %v1753 = vunpack.c.l.s4 1934713408
        %v1754 = vunpack.c.0.s8 %v1753
        %v1755 = vlaneseq
        %v1756 = vshrl.u32 %v1755, 7
        %v1757 = vsub.s32 %v1754, %v1756
        %v1758 = vrot.slane %v1744, %v1757
        %v1759 = vcombine.low %v1726, %v1742
        %v1760 = vcombine.high %v1726, %v1742
        %v1762 = vunpack.c.l.s4 1934713408
        %v1763 = vunpack.c.0.s8 %v1762
        %v1764 = vlaneseq
        %v1765 = vshrl.u32 %v1764, 7
        %v1766 = vsub.s32 %v1763, %v1765
        %v1767 = vrot.slane %v1759, %v1766
        %v1769 = vunpack.c.l.s4 1934713408
        %v1770 = vunpack.c.0.s8 %v1769
        %v1771 = vlaneseq
        %v1772 = vshrl.u32 %v1771, 7
        %v1773 = vsub.s32 %v1770, %v1772
        %v1774 = vrot.slane %v1760, %v1773
        %v1775 = vcombine.high %v1751, 0.0
        %v1776 = vcombine.high %v1758, 0.0
        %v1777 = vcombine.high %v1767, 0.0
        %v1778 = vcombine.high %v1774, 0.0
        %v1779 = vcombine.low %v1751, %v1758
        %v1781 = vunpack.c.l.s4 1983009808
        %v1782 = vunpack.c.0.s8 %v1781
        %v1783 = vlaneseq
        %v1784 = vshrl.u32 %v1783, 7
        %v1785 = vsub.s32 %v1782, %v1784
        %v1786 = vrot.slane %v1779, %v1785
        %v1787 = vcombine.low %v1775, %v1776
        %v1789 = vunpack.c.l.s4 1983009808
        %v1790 = vunpack.c.0.s8 %v1789
        %v1791 = vlaneseq
        %v1792 = vshrl.u32 %v1791, 7
        %v1793 = vsub.s32 %v1790, %v1792
        %v1794 = vrot.slane %v1787, %v1793
        %v1795 = vcombine.low %v1767, %v1774
        %v1797 = vunpack.c.l.s4 1983009808
        %v1798 = vunpack.c.0.s8 %v1797
        %v1799 = vlaneseq
        %v1800 = vshrl.u32 %v1799, 7
        %v1801 = vsub.s32 %v1798, %v1800
        %v1802 = vrot.slane %v1795, %v1801
        %v1803 = vcombine.low %v1777, %v1778
        %v1805 = vunpack.c.l.s4 1983009808
        %v1806 = vunpack.c.0.s8 %v1805
        %v1807 = vlaneseq
        %v1808 = vshrl.u32 %v1807, 7
        %v1809 = vsub.s32 %v1806, %v1808
        %v1810 = vrot.slane %v1803, %v1809
        %v1811 = vcombine.low %v1786, %v1794
        %v1812 = vcombine.high %v1786, %v1794
        %v1814 = vunpack.c.l.s4 1934713408
        %v1815 = vunpack.c.0.s8 %v1814
        %v1816 = vlaneseq
        %v1817 = vshrl.u32 %v1816, 7
        %v1818 = vsub.s32 %v1815, %v1817
        %v1819 = vrot.slane %v1811, %v1818
        %v1821 = vunpack.c.l.s4 1934713408
        %v1822 = vunpack.c.0.s8 %v1821
        %v1823 = vlaneseq
        %v1824 = vshrl.u32 %v1823, 7
        %v1825 = vsub.s32 %v1822, %v1824
        %v1826 = vrot.slane %v1812, %v1825
        %v1827 = vcombine.low %v1802, %v1810
        %v1828 = vcombine.high %v1802, %v1810
        %v1830 = vunpack.c.l.s4 1934713408
        %v1831 = vunpack.c.0.s8 %v1830
        %v1832 = vlaneseq
        %v1833 = vshrl.u32 %v1832, 7
        %v1834 = vsub.s32 %v1831, %v1833
        %v1835 = vrot.slane %v1827, %v1834
        %v1837 = vunpack.c.l.s4 1934713408
        %v1838 = vunpack.c.0.s8 %v1837
        %v1839 = vlaneseq
        %v1840 = vshrl.u32 %v1839, 7
        %v1841 = vsub.s32 %v1838, %v1840
        %v1842 = vrot.slane %v1828, %v1841
        %v1843 = vcombine.low %v1819, %v1835
        %v1844 = vcombine.high %v1819, %v1835
        %v1845 = vcombine.low %v1826, %v1842
        %v1846 = vcombine.high %v1826, %v1842
        %1848 = vrot.lane.b32.xlu0 %v1844, 8
        %v1849 = vpop.permute.xlu0 %1848
        %1852 = vrot.lane.b32.xlu0 %v1845, 16
        %v1853 = vpop.permute.xlu0 %1852
        %1856 = vrot.lane.b32.xlu0 %v1846, 24
        %v1857 = vpop.permute.xlu0 %1856
        %v1859 = vsel %vm1289, %v1843, %v1849
        %vm1860 = vcmask 130048
        %v1861 = vsel %vm1860, %v1859, %v1853
        %vm1862 = vcmask 195584
        %v1863 = vsel %vm1862, %v1861, %v1857
        %v1864 = vpack.c.bf16 %v1863, %v1863
        %v1865 = vld [vmem:[#allocation7] sm:$0xf]
        %v1866 = vld [vmem:[#allocation7 + $0x4] sm:$0xf]
        %v1867 = vld [vmem:[#allocation7 + $0x8] sm:$0xf]
        %v1868 = vld [vmem:[#allocation7 + $0xc] sm:$0xf]
        %v1869 = vld [vmem:[#allocation8] sm:$0x1]
        %v1871 = vlaneseq
        %v1872 = vshrl.u32 %v1871, 7
        %v1873 = vsub.s32 0, %v1872
        %v1874 = vrot.slane %v1869, %v1873
        %v1880 = vunpack.c.l.b16 %v1865
        %v1881 = vunpack.c.l.b16 %v1866
        %v1882 = vunpack.c.l.b16 %v1867
        %v1883 = vunpack.c.l.b16 %v1868
        %v1884 = vpack.c.b16 %v1881, %v1880
        %v1885 = vpack.c.b16 %v1883, %v1882
        %v1889 = vsel %vm611, %v1864, 0
        %1891 = vmatprep.subr.bf16.mxu0 0
        %1892 = vmatpush1.bf16.msra.mxu0 %v1884
        %1893 = vmatprep.subr.bf16.mxu0 0
        %1894 = vmatpush1.bf16.msra.mxu0 %v1885
        %1895 = vmatprep.subr.bf16.mxu0 0
        %1896 = vmatpush1.bf16.msra.mxu0 0
        %1897 = vmatprep.subr.bf16.mxu0 0
        %1898 = vmatpush1.bf16.msra.mxu0 0
        %1899 = vmatprep.subr.bf16.mxu0 0
        %1900 = vmatpush1.bf16.msra.mxu0 0
        %1901 = vmatprep.subr.bf16.mxu0 0
        %1902 = vmatpush1.bf16.msra.mxu0 0
        %1903 = vmatprep.subr.bf16.mxu0 0
        %1904 = vmatpush1.bf16.msra.mxu0 0
        %1905 = vmatprep.subr.bf16.mxu0 0
        %1906 = vmatpush1.bf16.msra.mxu0 0
        %1907 = vmatprep.subr.bf16.mxu0 0
        %1908 = vmatpush1.bf16.msra.mxu0 0
        %1909 = vmatprep.subr.bf16.mxu0 0
        %1910 = vmatpush1.bf16.msra.mxu0 0
        %1911 = vmatprep.subr.bf16.mxu0 0
        %1912 = vmatpush1.bf16.msra.mxu0 0
        %1913 = vmatprep.subr.bf16.mxu0 0
        %1914 = vmatpush1.bf16.msra.mxu0 0
        %1915 = vmatprep.subr.bf16.mxu0 0
        %1916 = vmatpush1.bf16.msra.mxu0 0
        %1917 = vmatprep.subr.bf16.mxu0 0
        %1918 = vmatpush1.bf16.msra.mxu0 0
        %1919 = vmatprep.subr.bf16.mxu0 0
        %1920 = vmatpush1.bf16.msra.mxu0 0
        %1921 = vmatprep.subr.bf16.mxu0 0
        %1922 = vmatpush1.bf16.msra.mxu0 0
        %1923 = vmatprep.mubr.bf16.mxu0 0
        %1924 = vmatmul.mubr.bf16.gmra.mrb[0].mxu0 %v1889
        %v1925 = vpop.f32.mrb[0].mxu0
        %v1926 = vadd.f32 %v1874, %v1925
        %v1927 = vpop.f32.mrb[0].mxu0
        %v1928 = vpop.f32.mrb[0].mxu0
        %v1929 = vpop.f32.mrb[0].mxu0
        %1930 = vdwg.mxu0
        %v1931 = vadd.f32 %v584, %v1926
        %v1932 = vsel %vm611, %v1931, 0.0
        %1933 = vadd.xlane.f32.xlu0 %v1932
        %v1934 = vpop.xlane.xlu0 %1933
        %v1935 = vrcp.pop 32.0
        %v1936 = vmul.f32 %v1934, %v1935
        %v1937 = vmul.f32 %v1931, %v1931
        %v1938 = vsel %vm611, %v1937, 0.0
        %1939 = vadd.xlane.f32.xlu0 %v1938
        %v1940 = vpop.xlane.xlu0 %1939
        %v1941 = vmul.f32 %v1940, %v1935
        %v1942 = vmul.f32 %v1936, %v1936
        %v1943 = vsub.f32 %v1941, %v1942
        %v1944 = vsub.f32 %v1931, %v1936
        %v1945 = vadd.f32 %v1943, 1e-05
        %v1946 = vrsqrt.pop %v1945
        %v1947 = vmul.f32 %v1944, %v1946
        %v1949 = vlaneseq
        %v1950 = vshrl.u32 %v1949, 7
        %v1951 = vsub.s32 0, %v1950
        %v1952 = vrot.slane %v585, %v1951
        %v1954 = vmul.f32 %v1947, %v1952
        %v1956 = vlaneseq
        %v1957 = vshrl.u32 %v1956, 7
        %v1958 = vsub.s32 0, %v1957
        %v1959 = vrot.slane %v586, %v1958
        %v1961 = vadd.f32 %v1954, %v1959
        %v1962 = vpack.c.bf16 %v1961, %v1961
        %v1963 = vld [vmem:[%s9] sm:$0xf]
        %v1964 = vld [vmem:[%s9 + $0x4] sm:$0xf]
        %v1965 = vld [vmem:[%s9 + $0x8] sm:$0xf]
        %v1966 = vld [vmem:[%s9 + $0xc] sm:$0xf]
        %v1967 = vld [vmem:[%s10] sm:$0x1]
        %v1969 = vlaneseq
        %v1970 = vshrl.u32 %v1969, 7
        %v1971 = vsub.s32 0, %v1970
        %v1972 = vrot.slane %v1967, %v1971
        %v1978 = vunpack.c.l.b16 %v1963
        %v1979 = vunpack.c.l.b16 %v1964
        %v1980 = vunpack.c.l.b16 %v1965
        %v1981 = vunpack.c.l.b16 %v1966
        %v1982 = vpack.c.b16 %v1979, %v1978
        %v1983 = vpack.c.b16 %v1981, %v1980
        %v1987 = vsel %vm611, %v1962, 0
        %1989 = vmatprep.subr.bf16.mxu0 0
        %1990 = vmatpush1.bf16.msra.mxu0 %v1982
        %1991 = vmatprep.subr.bf16.mxu0 0
        %1992 = vmatpush1.bf16.msra.mxu0 %v1983
        %1993 = vmatprep.subr.bf16.mxu0 0
        %1994 = vmatpush1.bf16.msra.mxu0 0
        %1995 = vmatprep.subr.bf16.mxu0 0
        %1996 = vmatpush1.bf16.msra.mxu0 0
        %1997 = vmatprep.subr.bf16.mxu0 0
        %1998 = vmatpush1.bf16.msra.mxu0 0
        %1999 = vmatprep.subr.bf16.mxu0 0
        %2000 = vmatpush1.bf16.msra.mxu0 0
        %2001 = vmatprep.subr.bf16.mxu0 0
        %2002 = vmatpush1.bf16.msra.mxu0 0
        %2003 = vmatprep.subr.bf16.mxu0 0
        %2004 = vmatpush1.bf16.msra.mxu0 0
        %2005 = vmatprep.subr.bf16.mxu0 0
        %2006 = vmatpush1.bf16.msra.mxu0 0
        %2007 = vmatprep.subr.bf16.mxu0 0
        %2008 = vmatpush1.bf16.msra.mxu0 0
        %2009 = vmatprep.subr.bf16.mxu0 0
        %2010 = vmatpush1.bf16.msra.mxu0 0
        %2011 = vmatprep.subr.bf16.mxu0 0
        %2012 = vmatpush1.bf16.msra.mxu0 0
        %2013 = vmatprep.subr.bf16.mxu0 0
        %2014 = vmatpush1.bf16.msra.mxu0 0
        %2015 = vmatprep.subr.bf16.mxu0 0
        %2016 = vmatpush1.bf16.msra.mxu0 0
        %2017 = vmatprep.subr.bf16.mxu0 0
        %2018 = vmatpush1.bf16.msra.mxu0 0
        %2019 = vmatprep.subr.bf16.mxu0 0
        %2020 = vmatpush1.bf16.msra.mxu0 0
        %2021 = vmatprep.mubr.bf16.mxu0 0
        %2022 = vmatmul.mubr.bf16.gmra.mrb[0].mxu0 %v1987
        %v2023 = vpop.f32.mrb[0].mxu0
        %v2024 = vadd.f32 %v1972, %v2023
        %v2025 = vpop.f32.mrb[0].mxu0
        %v2026 = vpop.f32.mrb[0].mxu0
        %v2027 = vpop.f32.mrb[0].mxu0
        %2028 = vdwg.mxu0
        %v2029 = vmul.f32 %v2024, 0.5
        %v2030 = vmul.f32 %v2024, 0.70710677
        %v2031 = verf.f32.pop %v2030
        %v2032 = vadd.f32 %v2031, 1.0
        %v2033 = vmul.f32 %v2029, %v2032
        %v2034 = vpack.c.bf16 %v2033, %v2033
        %v2035 = vld [vmem:[%s11] sm:$0xf]
        %v2036 = vld [vmem:[%s11 + $0x4] sm:$0xf]
        %v2037 = vld [vmem:[%s11 + $0x8] sm:$0xf]
        %v2038 = vld [vmem:[%s11 + $0xc] sm:$0xf]
        %v2039 = vld [vmem:[%s11 + $0x10] sm:$0xf]
        %v2040 = vld [vmem:[%s11 + $0x14] sm:$0xf]
        %v2041 = vld [vmem:[%s11 + $0x18] sm:$0xf]
        %v2042 = vld [vmem:[%s11 + $0x1c] sm:$0xf]
        %v2043 = vld [vmem:[%s12] sm:$0x1]
        %v2045 = vlaneseq
        %v2046 = vshrl.u32 %v2045, 7
        %v2047 = vsub.s32 0, %v2046
        %v2048 = vrot.slane %v2043, %v2047
        %v2058 = vunpack.c.l.b16 %v2035
        %v2059 = vunpack.c.l.b16 %v2036
        %v2060 = vunpack.c.l.b16 %v2037
        %v2061 = vunpack.c.l.b16 %v2038
        %v2062 = vunpack.c.l.b16 %v2039
        %v2063 = vunpack.c.l.b16 %v2040
        %v2064 = vunpack.c.l.b16 %v2041
        %v2065 = vunpack.c.l.b16 %v2042
        %v2066 = vpack.c.b16 %v2059, %v2058
        %v2067 = vpack.c.b16 %v2061, %v2060
        %v2068 = vpack.c.b16 %v2063, %v2062
        %v2069 = vpack.c.b16 %v2065, %v2064
        %vm2074 = vcmask 523264
        %v2076 = vsel %vm2074, %v2034, 0
        %2078 = vmatprep.subr.bf16.mxu0 0
        %2079 = vmatpush1.bf16.msra.mxu0 %v2066
        %2080 = vmatprep.subr.bf16.mxu0 0
        %2081 = vmatpush1.bf16.msra.mxu0 %v2067
        %2082 = vmatprep.subr.bf16.mxu0 0
        %2083 = vmatpush1.bf16.msra.mxu0 %v2068
        %2084 = vmatprep.subr.bf16.mxu0 0
        %2085 = vmatpush1.bf16.msra.mxu0 %v2069
        %2086 = vmatprep.subr.bf16.mxu0 0
        %2087 = vmatpush1.bf16.msra.mxu0 0
        %2088 = vmatprep.subr.bf16.mxu0 0
        %2089 = vmatpush1.bf16.msra.mxu0 0
        %2090 = vmatprep.subr.bf16.mxu0 0
        %2091 = vmatpush1.bf16.msra.mxu0 0
        %2092 = vmatprep.subr.bf16.mxu0 0
        %2093 = vmatpush1.bf16.msra.mxu0 0
        %2094 = vmatprep.subr.bf16.mxu0 0
        %2095 = vmatpush1.bf16.msra.mxu0 0
        %2096 = vmatprep.subr.bf16.mxu0 0
        %2097 = vmatpush1.bf16.msra.mxu0 0
        %2098 = vmatprep.subr.bf16.mxu0 0
        %2099 = vmatpush1.bf16.msra.mxu0 0
        %2100 = vmatprep.subr.bf16.mxu0 0
        %2101 = vmatpush1.bf16.msra.mxu0 0
        %2102 = vmatprep.subr.bf16.mxu0 0
        %2103 = vmatpush1.bf16.msra.mxu0 0
        %2104 = vmatprep.subr.bf16.mxu0 0
        %2105 = vmatpush1.bf16.msra.mxu0 0
        %2106 = vmatprep.subr.bf16.mxu0 0
        %2107 = vmatpush1.bf16.msra.mxu0 0
        %2108 = vmatprep.subr.bf16.mxu0 0
        %2109 = vmatpush1.bf16.msra.mxu0 0
        %2110 = vmatprep.mubr.bf16.mxu0 0
        %2111 = vmatmul.mubr.bf16.gmra.mrb[0].mxu0 %v2076
        %v2112 = vpop.f32.mrb[0].mxu0
        %v2113 = vadd.f32 %v2048, %v2112
        %v2114 = vpop.f32.mrb[0].mxu0
        %v2115 = vpop.f32.mrb[0].mxu0
        %v2116 = vpop.f32.mrb[0].mxu0
        %2117 = vdwg.mxu0
        %v2118 = vadd.f32 %v2113, %v1961
        %v2119 = vsel %vm611, %v2118, 0.0
        %2120 = vadd.xlane.f32.xlu0 %v2119
        %v2121 = vpop.xlane.xlu0 %2120
        %v2122 = vmul.f32 %v2121, %v1935
        %v2123 = vmul.f32 %v2118, %v2118
        %v2124 = vsel %vm611, %v2123, 0.0
        %2125 = vadd.xlane.f32.xlu0 %v2124
        %v2126 = vpop.xlane.xlu0 %2125
        %v2127 = vmul.f32 %v2126, %v1935
        %v2128 = vmul.f32 %v2122, %v2122
        %v2129 = vsub.f32 %v2127, %v2128
        %v2130 = vsub.f32 %v2118, %v2122
        %v2131 = vadd.f32 %v2129, 1e-05
        %v2132 = vrsqrt.pop %v2131
        %v2133 = vmul.f32 %v2130, %v2132
        %v2134 = vmul.f32 %v2133, %v1952
        %v2135 = vadd.f32 %v2134, %v1959
        %2136 = vst.msk [vmem:[%s571] sm:$0xff] %vm611, %v2135
        %s2137 = sand.u32 %s365, 1
        %s2138 = scalar_lea.sflag [#allocation4], %s2137
        %s2139 = sand.u32 %s365, 1
        %s2140 = smul.addr %s2139, 8
        %s2141 = scalar_lea.vmem [#allocation10], %s2140
        %s2142 = sand.u32 %s391, 1
        %s2143 = scalar_lea.sflag [#allocation12], %s2142
        %s2144 = sand.u32 %s391, 1
        %s2145 = smul.addr %s2144, 32
        %s2146 = scalar_lea.vmem [#allocation11], %s2145
        // Predicated region
        $region97: #{tpu_custom_call.1} parent=79 // pred_check
          %p2147 = pneg %p375
        $region98: #{tpu_custom_call.1} parent=79 // pred_check_branch
          %2149 = sbr.rel (%p2147) target = $region100
        $region99: #{tpu_custom_call.1} parent=79 // pred_region
          %s2151 = ssub.s32 128, 128
          %2152 = vsyncadd %s2138, %s2151
          %s2153 = smul.addr %s37, 128
          %s2154 = scalar_lea.hbm %s15, %s2153
          %s2156 = sshll.u32 %s2141, 4
          %s2157 = int_to_ptr.vmem [resolvable:$true] %s2156
          %2159 = dma.vmem_to_hbm [thread:$0]  %s2157, 128, %s2154, %s2138
        $region100: #{tpu_custom_call.1} parent=79 // pred_fallthru
          _
        // Predicated region
        $region101: #{tpu_custom_call.1} parent=79 // pred_check
          %p2160 = pneg %p401
        $region102: #{tpu_custom_call.1} parent=79 // pred_check_branch
          %2162 = sbr.rel (%p2160) target = $region104
        $region103: #{tpu_custom_call.1} parent=79 // pred_region
          %s2164 = ssub.s32 512, 512
          %2165 = vsyncadd %s2143, %s2164
          %s2166 = smul.addr %s37, 4
          %s2167 = smul.addr %s2166, 128
          %s2168 = scalar_lea.hbm %s16, %s2167
          %s2169 = sshll.u32 %s2146, 4
          %s2170 = int_to_ptr.vmem [resolvable:$true] %s2169
          %2175 = dma.vmem_to_hbm [thread:$0]  %s2170, 512, %s2168, %s2143, 128, 128, 8
        $region104: #{tpu_custom_call.1} parent=79 // pred_fallthru
          _
      $region80: #{tpu_custom_call.1} parent=5 // pred_fallthru
        _
      %p2176 = scmp.le.s32.totalorder 2, %s32
      // Predicated region
      $region105: #{tpu_custom_call.1} parent=5 // pred_check
        %p2177 = pneg %p2176
      $region106: #{tpu_custom_call.1} parent=5 // pred_check_branch
        %2179 = sbr.rel (%p2177) target = $region108
      $region107: #{tpu_custom_call.1} parent=5 // pred_region
        %s2180 = ssub.s32 %s32, 2
        // Predicated region
        $region109: #{tpu_custom_call.1} parent=107 // pred_check
          %p2181 = pneg %p381
        $region110: #{tpu_custom_call.1} parent=107 // pred_check_branch
          %2183 = sbr.rel (%p2181) target = $region112
        $region111: #{tpu_custom_call.1} parent=107 // pred_region
          %s2184 = sand.u32 %s366, 1
          %s2185 = scalar_lea.sflag [#allocation4], %s2184
          %s2186 = sand.u32 %s366, 1
          %s2187 = smul.addr %s2186, 8
          %s2188 = scalar_lea.vmem [#allocation10], %s2187
          %2189 = dma.done %s2185, 128
        $region112: #{tpu_custom_call.1} parent=107 // pred_fallthru
          _
        // Predicated region
        $region113: #{tpu_custom_call.1} parent=107 // pred_check
          %p2190 = pneg %p407
        $region114: #{tpu_custom_call.1} parent=107 // pred_check_branch
          %2192 = sbr.rel (%p2190) target = $region116
        $region115: #{tpu_custom_call.1} parent=107 // pred_region
          %s2193 = sand.u32 %s392, 1
          %s2194 = scalar_lea.sflag [#allocation12], %s2193
          %s2195 = sand.u32 %s392, 1
          %s2196 = smul.addr %s2195, 32
          %s2197 = scalar_lea.vmem [#allocation11], %s2196
          %2198 = dma.done %s2194, 512
        $region116: #{tpu_custom_call.1} parent=107 // pred_fallthru
          _
      $region108: #{tpu_custom_call.1} parent=5 // pred_fallthru
        _
    $region6: #{tpu_custom_call.1} parent=1 // loop_footer
      %s36 = sadd.s32 1, %s32
    $region7: #{tpu_custom_call.1} parent=1 // loop_footer_branch
      %31 = sbr.rel target = $region3
    $region8: #{tpu_custom_call.1} parent=1 // loop_exit
      _
    %2199 = vsyncpa [#allocation3], 1
    %s2200 = scalar_lea.sflag [#allocation3], 1
    %2201 = vsyncpa %s2200, 1
    %2202 = vsyncpa [#allocation6], 1
    %2203 = vsyncpa [#allocation9], 1
    %2204 = vsyncpa [#allocation4], 1
    %s2205 = scalar_lea.sflag [#allocation4], 1
    %2206 = vsyncpa %s2205, 1
    %2207 = vsyncpa [#allocation12], 1
    %s2208 = scalar_lea.sflag [#allocation12], 1
    %2209 = vsyncpa %s2208, 1

</llo_original>
